<compile_context>
chip_gen: v7x
topology: tpu7x:2x2x1
jax: 0.10.0
libtpu: 0.0.40
codegen_flags: <defaults>
</compile_context>

<pallas_src>
import functools
import math

import jax
import jax.numpy as jnp
from jax import lax
from jax.experimental import pallas as pl
from jax.experimental.pallas import tpu as pltpu

D_SHAPE = 32          # d_shape / out_channels / propagate_dimensions
SPACE_DIM = 3         # space_dimensions
SPACE_PAD = 8         # learned coords padded to 8 lanes (cols 3..7 are zero)
K_NEIGH = 40          # k
BN_EPS = 1e-5
BIG = 1e30            # "infinite" distance for cross-graph pairs
CONSUMED = 2e30       # key value marking an already-selected neighbor


def _elu(v):
    return jnp.where(v > 0.0, v, jnp.exp(jnp.minimum(v, 0.0)) - 1.0)


def _batchnorm(h, gamma, beta):
    mean = jnp.mean(h, axis=0, keepdims=True)
    var = jnp.mean((h - mean) ** 2, axis=0, keepdims=True)   # biased, training mode
    return (h - mean) * lax.rsqrt(var + BN_EPS) * gamma + beta


def _bdot(a, b_bf16):
    """bf16 x bf16 -> f32 MXU matmul (weights are pre-cast to bf16)."""
    return jnp.dot(a.astype(jnp.bfloat16), b_bf16,
                   preferred_element_type=jnp.float32)


# --------------------------------------------------------------------------
# Kernel A: pre_gravnet MLP + BatchNorm1 + GravNet lin_s / lin_h (needs all-N
# statistics -> single block).
# --------------------------------------------------------------------------
def prep_kernel(x_ref, w1_ref, b1_ref, w2_ref, b2_ref, g1_ref, be1_ref,
                ws_ref, bs_ref, wh_ref, bh_ref,
                xin_ref, feat_ref, spk_ref):
    h = _elu(_bdot(x_ref[...], w1_ref[...]) + b1_ref[...])
    h = _elu(_bdot(h, w2_ref[...]) + b2_ref[...])
    h = _batchnorm(h, g1_ref[...], be1_ref[...])            # (N, 32) f32 == x_input
    s = _bdot(h, ws_ref[...]) + bs_ref[...]                 # (N, 8), cols 3..7 == 0
    feat = _bdot(h, wh_ref[...]) + bh_ref[...]              # (N, 32)
    xin_ref[...] = h
    feat_ref[...] = feat.astype(jnp.bfloat16)
    spk_ref[...] = s


# --------------------------------------------------------------------------
# Kernel B: kNN (k=40) + exp(-10*d^2)-weighted mean/max aggregation + GravNet
# output linear + post_gravnet MLP.  Row-tiled over a parallel grid axis.
# --------------------------------------------------------------------------
def gravnet_kernel(bq_ref, bk_ref, xin_ref, spk_ref, spkT_ref, feat_ref,
                   wo_ref, bo_ref, wp1_ref, bp1_ref, wp2_ref, bp2_ref,
                   out_ref,
                   key_s, ssum_s, smax_s, cnt_s):
    tm = bq_ref.shape[0]
    n = bk_ref.shape[1]
    idx_bits = max(1, (n - 1).bit_length())   # column index bits packed into the key
    low_mask = (1 << idx_bits) - 1            # (assumes N <= 2^23 nodes)

    # ---- pairwise squared distances in the learned coordinate space (VPU) ----
    sq = spk_ref[...]                          # (TM, 8) query coords
    skT = spkT_ref[...]                        # (8, N)  key coords, lane-major
    d2 = jnp.zeros((tm, n), jnp.float32)
    for d in range(SPACE_DIM):                 # static 3-step unroll
        diff = sq[:, d:d + 1] - skT[d:d + 1, :]
        d2 = d2 + diff * diff

    same = bq_ref[...] == bk_ref[...]          # (TM, N) same-graph mask, in-kernel
    d2 = jnp.where(same, d2, BIG) + 1.0        # +1 keeps keys away from denormals

    # key = (shifted distance with low mantissa bits cleared) | column index.
    # A single f32 row-min then gives both the min distance and its argmin, with
    # ties broken towards the lower column index; keys are unique per row so the
    # selected entry can be recovered with one equality compare.
    col = lax.broadcasted_iota(jnp.int32, (tm, n), 1)
    key_i = (pltpu.bitcast(d2, jnp.int32) & jnp.int32(~low_mask)) | col
    key_s[...] = pltpu.bitcast(key_i, jnp.float32)

    ssum_s[...] = jnp.zeros((tm, D_SHAPE), jnp.float32)
    smax_s[...] = jnp.full((tm, D_SHAPE), -BIG, jnp.float32)
    cnt_s[...] = jnp.zeros((tm, 1), jnp.float32)

    @pl.loop(0, K_NEIGH)
    def _(t):
        key_f = key_s[...]
        kmin = jnp.min(key_f, axis=1, keepdims=True)           # ONE reduction / step
        dmin = kmin - 1.0                                      # ~min squared distance
        valid = dmin < (0.5 * BIG)
        w = jnp.where(valid, jnp.exp(-10.0 * dmin), 0.0)       # (TM, 1)

        onehot = key_f == kmin                                 # exactly one per row
        key_s[...] = jnp.where(onehot, CONSUMED, key_f)        # consume selection

        gathered = jnp.dot(onehot.astype(jnp.bfloat16), feat_ref[...],
                           preferred_element_type=jnp.float32)  # (TM, 32) bf16 MXU
        contrib = gathered * w
        ssum_s[...] = ssum_s[...] + contrib
        smax_s[...] = jnp.maximum(smax_s[...], jnp.where(valid, contrib, -BIG))
        cnt_s[...] = cnt_s[...] + valid.astype(jnp.float32)

    cnt = cnt_s[...]
    mean_agg = ssum_s[...] / jnp.maximum(cnt, 1.0)
    max_agg = jnp.where(cnt > 0.0, smax_s[...], 0.0)

    xin = xin_ref[...]                                          # (TM, 32) x_input

    # GravNetConv output linear on cat[x, mean, max]: single fused K=96 matmul.
    cat1 = jnp.concatenate([xin, mean_agg, max_agg], axis=1)
    xgn = _bdot(cat1, wo_ref[...]) + bo_ref[...]

    # post_gravnet: Linear(cat[xgn, gncoords, x_input]) -> ELU -> Linear -> ELU
    # (coords lane-padded to 8; padded weight rows are zero), fused K=72 matmul.
    cat2 = jnp.concatenate([xgn, sq, xin], axis=1)              # (TM, 72)
    p = _elu(_bdot(cat2, wp1_ref[...]) + bp1_ref[...])
    p = _elu(_bdot(p, wp2_ref[...]) + bp2_ref[...])
    out_ref[...] = p


# --------------------------------------------------------------------------
# Kernel C: BatchNorm2 (all-N statistics -> single block).
# --------------------------------------------------------------------------
def bn_kernel(x_ref, g_ref, b_ref, o_ref):
    o_ref[...] = _batchnorm(x_ref[...], g_ref[...], b_ref[...])


# --------------------------------------------------------------------------
# Parameters
# --------------------------------------------------------------------------
def init_params(key, in_channels):
    """xavier_uniform weights / zero biases (matches init_weights for the MLPs),
    BatchNorm gamma=1 / beta=0."""
    def xavier(k, fi, fo):
        a = math.sqrt(6.0 / (fi + fo))
        return jax.random.uniform(k, (fi, fo), jnp.float32, -a, a)

    keys = jax.random.split(key, 8)
    D, S, SP = D_SHAPE, SPACE_DIM, SPACE_PAD
    zeros = lambda c: jnp.zeros((1, c), jnp.float32)
    ones = lambda c: jnp.ones((1, c), jnp.float32)

    # lin_s (32 -> 3) padded to 8 output lanes.
    ws = jnp.zeros((D, SP), jnp.float32).at[:, :S].set(xavier(keys[2], D, S))

    # post_gravnet Linear(32+3+32=67, 32) embedded in a (72, 32) matrix whose rows
    # match cat[xgn(32), coords-padded(8), x_input(32)]; padding rows are zero.
    w67 = xavier(keys[5], 2 * D + S, D)
    wp1 = jnp.zeros((2 * D + SP, D), jnp.float32)
    wp1 = wp1.at[0:D, :].set(w67[0:D, :])             # xgn rows
    wp1 = wp1.at[D:D + S, :].set(w67[D:D + S, :])     # gncoords rows
    wp1 = wp1.at[D + SP:, :].set(w67[D + S:, :])      # x_input rows

    return {
        # pre_gravnet
        "w1": xavier(keys[0], in_channels, D), "b1": zeros(D),
        "w2": xavier(keys[1], D, D), "b2": zeros(D),
        # batchnorm_gravnet1
        "g1": ones(D), "be1": zeros(D),
        # GravNetConv
        "ws": ws, "bs": zeros(SP),
        "wh": xavier(keys[3], D, D), "bh": zeros(D),
        "wo": xavier(keys[4], 3 * D, D), "bo": zeros(D),   # lin(cat[x, mean, max])
        # post_gravnet
        "wp1": wp1, "bp1": zeros(D),
        "wp2": xavier(keys[6], D, D), "bp2": zeros(D),
        # batchnorm_gravnet2
        "g2": ones(D), "be2": zeros(D),
    }


def _pick_block_rows(n):
    for tm in (256, 128, 64, 32, 16, 8):
        if n % tm == 0:
            return tm
    return n


# --------------------------------------------------------------------------
# Wrapper
# --------------------------------------------------------------------------
def gravnet_block(x, batch, params, *, block_rows=None):
    """x: (N, in_channels) f32, batch: (N,) int32 graph ids.
    Returns (out (N,32), gncoords (N,3), loss_regularizing_neig, ll_r)."""
    n = x.shape[0]
    f32, bf16 = jnp.float32, jnp.bfloat16
    tm = block_rows if block_rows is not None else _pick_block_rows(n)
    assert n % tm == 0, "block_rows must divide the number of nodes"
    p = params
    wb = lambda k: p[k].astype(bf16)   # matmul weights go to the MXU as bf16

    # ---- kernel A: pre-MLP + BN1 + lin_s / lin_h ----
    xin, feat, spk = pl.pallas_call(
        prep_kernel,
        out_shape=(jax.ShapeDtypeStruct((n, D_SHAPE), f32),
                   jax.ShapeDtypeStruct((n, D_SHAPE), bf16),
                   jax.ShapeDtypeStruct((n, SPACE_PAD), f32)),
    )(x, wb("w1"), p["b1"], wb("w2"), p["b2"], p["g1"], p["be1"],
      wb("ws"), p["bs"], wb("wh"), p["bh"])

    # O(N) glue: lane-major key coords, per-row / per-lane graph ids.
    spkT = spk.T                                   # (8, N)
    gncoords = spk[:, :SPACE_DIM]                  # (N, 3)
    bcol = batch.reshape(n, 1).astype(jnp.int32)
    brow = batch.reshape(1, n).astype(jnp.int32)

    # ---- kernel B: kNN + aggregation + GravNet/post linears (row-tiled, parallel) ----
    full2 = lambda r, c: pl.BlockSpec((r, c), lambda i: (0, 0))
    p_pre = pl.pallas_call(
        gravnet_kernel,
        out_shape=jax.ShapeDtypeStruct((n, D_SHAPE), f32),
        grid=(n // tm,),
        in_specs=[
            pl.BlockSpec((tm, 1), lambda i: (i, 0)),            # batch ids (query rows)
            full2(1, n),                                        # batch ids (key lanes)
            pl.BlockSpec((tm, D_SHAPE), lambda i: (i, 0)),      # x_input block
            pl.BlockSpec((tm, SPACE_PAD), lambda i: (i, 0)),    # query coords block
            full2(SPACE_PAD, n),                                # key coords (transposed)
            full2(n, D_SHAPE),                                  # feat (bf16, all keys)
            full2(3 * D_SHAPE, D_SHAPE), full2(1, D_SHAPE),     # wo, bo
            full2(2 * D_SHAPE + SPACE_PAD, D_SHAPE),            # wp1
            full2(1, D_SHAPE),                                  # bp1
            full2(D_SHAPE, D_SHAPE), full2(1, D_SHAPE),         # wp2, bp2
        ],
        out_specs=pl.BlockSpec((tm, D_SHAPE), lambda i: (i, 0)),
        scratch_shapes=[
            pltpu.VMEM((tm, n), f32),        # keyed-distance working matrix
            pltpu.VMEM((tm, D_SHAPE), f32),  # sum aggregation
            pltpu.VMEM((tm, D_SHAPE), f32),  # max aggregation
            pltpu.VMEM((tm, 1), f32),        # valid-neighbor count
        ],
        compiler_params=pltpu.CompilerParams(
            dimension_semantics=("parallel",),
            vmem_limit_bytes=48 * 1024 * 1024),
    )(bcol, brow, xin, spk, spkT, feat,
      wb("wo"), p["bo"], wb("wp1"), p["bp1"], wb("wp2"), p["bp2"])

    # ---- kernel C: BatchNorm2 ----
    out = pl.pallas_call(
        bn_kernel,
        out_shape=jax.ShapeDtypeStruct((n, D_SHAPE), f32),
    )(p_pre, p["g2"], p["be2"])

    # TODO(synk): GravNetConv auxiliary outputs (graph object, loss_regularizing_neig,
    # ll_r), g.ndata['gncoords'] assignment and PlotCoordinates are host-side graph
    # bookkeeping / plotting with no kernel equivalent; placeholders are returned.
    loss_regularizing_neig = jnp.float32(0.0)
    ll_r = jnp.float32(0.0)
    return out, gncoords, loss_regularizing_neig, ll_r


if __name__ == "__main__":
    IN_CHANNELS = 16
    N_PER_GRAPH = 64
    N_GRAPHS = 2
    N = N_PER_GRAPH * N_GRAPHS     # 128 nodes, >= k=40 per graph

    key = jax.random.PRNGKey(0)
    kx, kp = jax.random.split(key)
    x = jax.random.normal(kx, (N, IN_CHANNELS), jnp.float32)
    batch = jnp.repeat(jnp.arange(N_GRAPHS, dtype=jnp.int32), N_PER_GRAPH)
    params = init_params(kp, IN_CHANNELS)

    # block_rows=64 -> grid=(2,) so the parallel row-tiling path is exercised
    # (and both TensorCores are used on v7x).
    fn = jax.jit(functools.partial(gravnet_block, block_rows=64))
    out, gncoords, _, _ = fn(x, batch, params)
    jax.block_until_ready((out, gncoords))

    assert out.shape == (N, D_SHAPE) and gncoords.shape == (N, SPACE_DIM)
    assert bool(jnp.all(jnp.isfinite(out)))
    assert bool(jnp.all(jnp.isfinite(gncoords)))
    print("KERNEL_OK")
</pallas_src>

<mosaic_0001>
module attributes {stable_mosaic.version = 11 : i64} {
  func.func @prep_kernel(%arg0: memref<128x16xf32, #tpu.memory_space<vmem>>, %arg1: memref<16x32xbf16, #tpu.memory_space<vmem>>, %arg2: memref<1x32xf32, #tpu.memory_space<vmem>>, %arg3: memref<32x32xbf16, #tpu.memory_space<vmem>>, %arg4: memref<1x32xf32, #tpu.memory_space<vmem>>, %arg5: memref<1x32xf32, #tpu.memory_space<vmem>>, %arg6: memref<1x32xf32, #tpu.memory_space<vmem>>, %arg7: memref<32x8xbf16, #tpu.memory_space<vmem>>, %arg8: memref<1x8xf32, #tpu.memory_space<vmem>>, %arg9: memref<32x32xbf16, #tpu.memory_space<vmem>>, %arg10: memref<1x32xf32, #tpu.memory_space<vmem>>, %arg11: memref<128x32xf32, #tpu.memory_space<vmem>>, %arg12: memref<128x32xbf16, #tpu.memory_space<vmem>>, %arg13: memref<128x8xf32, #tpu.memory_space<vmem>>) attributes {dimension_semantics = [], scalar_prefetch = 0 : i64, scratch_operands = 0 : i64, tpu.core_type = #tpu.core_type<tc>} {
    %c0 = arith.constant 0 : index
    %c0_0 = arith.constant 0 : index
    %0 = vector.load %arg0[%c0, %c0_0] : memref<128x16xf32, #tpu.memory_space<vmem>>, vector<128x16xf32>
    %c0_1 = arith.constant 0 : index
    %c0_2 = arith.constant 0 : index
    %1 = vector.load %arg1[%c0_1, %c0_2] : memref<16x32xbf16, #tpu.memory_space<vmem>>, vector<16x32xbf16>
    %2 = arith.truncf %0 : vector<128x16xf32> to vector<128x16xbf16>
    %cst = arith.constant dense<0.000000e+00> : vector<128x32xf32>
    %3 = tpu.matmul %2, %1, %cst {dimension_numbers = #tpu.dot_dimension_numbers<[1], [0], [0], [1], [0, 0, 1, 1], [], []>} : vector<128x16xbf16>, vector<16x32xbf16>, vector<128x32xf32> -> vector<128x32xf32>
    %c0_3 = arith.constant 0 : index
    %c0_4 = arith.constant 0 : index
    %4 = vector.load %arg2[%c0_3, %c0_4] : memref<1x32xf32, #tpu.memory_space<vmem>>, vector<1x32xf32>
    %5 = vector.broadcast %4 : vector<1x32xf32> to vector<128x32xf32>
    %6 = arith.addf %3, %5 : vector<128x32xf32>
    %cst_5 = arith.constant 0.000000e+00 : f32
    %7 = vector.broadcast %cst_5 : f32 to vector<128x32xf32>
    %8 = arith.cmpf ogt, %6, %7 : vector<128x32xf32>
    %cst_6 = arith.constant 0.000000e+00 : f32
    %9 = vector.broadcast %cst_6 : f32 to vector<128x32xf32>
    %10 = arith.minimumf %6, %9 : vector<128x32xf32>
    %11 = math.exp %10 : vector<128x32xf32>
    %cst_7 = arith.constant 1.000000e+00 : f32
    %12 = vector.broadcast %cst_7 : f32 to vector<128x32xf32>
    %13 = arith.subf %11, %12 : vector<128x32xf32>
    %14 = arith.select %8, %6, %13 : vector<128x32xi1>, vector<128x32xf32>
    %c0_8 = arith.constant 0 : index
    %c0_9 = arith.constant 0 : index
    %15 = vector.load %arg3[%c0_8, %c0_9] : memref<32x32xbf16, #tpu.memory_space<vmem>>, vector<32x32xbf16>
    %16 = arith.truncf %14 : vector<128x32xf32> to vector<128x32xbf16>
    %cst_10 = arith.constant dense<0.000000e+00> : vector<128x32xf32>
    %17 = tpu.matmul %16, %15, %cst_10 {dimension_numbers = #tpu.dot_dimension_numbers<[1], [0], [0], [1], [0, 0, 1, 1], [], []>} : vector<128x32xbf16>, vector<32x32xbf16>, vector<128x32xf32> -> vector<128x32xf32>
    %c0_11 = arith.constant 0 : index
    %c0_12 = arith.constant 0 : index
    %18 = vector.load %arg4[%c0_11, %c0_12] : memref<1x32xf32, #tpu.memory_space<vmem>>, vector<1x32xf32>
    %19 = vector.broadcast %18 : vector<1x32xf32> to vector<128x32xf32>
    %20 = arith.addf %17, %19 : vector<128x32xf32>
    %cst_13 = arith.constant 0.000000e+00 : f32
    %21 = vector.broadcast %cst_13 : f32 to vector<128x32xf32>
    %22 = arith.cmpf ogt, %20, %21 : vector<128x32xf32>
    %cst_14 = arith.constant 0.000000e+00 : f32
    %23 = vector.broadcast %cst_14 : f32 to vector<128x32xf32>
    %24 = arith.minimumf %20, %23 : vector<128x32xf32>
    %25 = math.exp %24 : vector<128x32xf32>
    %cst_15 = arith.constant 1.000000e+00 : f32
    %26 = vector.broadcast %cst_15 : f32 to vector<128x32xf32>
    %27 = arith.subf %25, %26 : vector<128x32xf32>
    %28 = arith.select %22, %20, %27 : vector<128x32xi1>, vector<128x32xf32>
    %c0_16 = arith.constant 0 : index
    %c0_17 = arith.constant 0 : index
    %29 = vector.load %arg5[%c0_16, %c0_17] : memref<1x32xf32, #tpu.memory_space<vmem>>, vector<1x32xf32>
    %c0_18 = arith.constant 0 : index
    %c0_19 = arith.constant 0 : index
    %30 = vector.load %arg6[%c0_18, %c0_19] : memref<1x32xf32, #tpu.memory_space<vmem>>, vector<1x32xf32>
    %cst_20 = arith.constant dense<0.000000e+00> : vector<32xf32>
    %31 = vector.multi_reduction <add>, %28, %cst_20 [0] : vector<128x32xf32> to vector<32xf32>
    %32 = vector.shape_cast %31 : vector<32xf32> to vector<1x32xf32>
    %cst_21 = arith.constant 1.280000e+02 : f32
    %33 = vector.broadcast %cst_21 : f32 to vector<1x32xf32>
    %34 = arith.divf %32, %33 : vector<1x32xf32>
    %35 = vector.broadcast %34 : vector<1x32xf32> to vector<128x32xf32>
    %36 = arith.subf %28, %35 : vector<128x32xf32>
    %37 = arith.mulf %36, %36 : vector<128x32xf32>
    %cst_22 = arith.constant dense<0.000000e+00> : vector<32xf32>
    %38 = vector.multi_reduction <add>, %37, %cst_22 [0] : vector<128x32xf32> to vector<32xf32>
    %39 = vector.shape_cast %38 : vector<32xf32> to vector<1x32xf32>
    %cst_23 = arith.constant 1.280000e+02 : f32
    %40 = vector.broadcast %cst_23 : f32 to vector<1x32xf32>
    %41 = arith.divf %39, %40 : vector<1x32xf32>
    %42 = vector.broadcast %34 : vector<1x32xf32> to vector<128x32xf32>
    %43 = arith.subf %28, %42 : vector<128x32xf32>
    %cst_24 = arith.constant 9.99999974E-6 : f32
    %44 = vector.broadcast %cst_24 : f32 to vector<1x32xf32>
    %45 = arith.addf %41, %44 : vector<1x32xf32>
    %46 = math.rsqrt %45 : vector<1x32xf32>
    %47 = vector.broadcast %46 : vector<1x32xf32> to vector<128x32xf32>
    %48 = arith.mulf %43, %47 : vector<128x32xf32>
    %49 = vector.broadcast %29 : vector<1x32xf32> to vector<128x32xf32>
    %50 = arith.mulf %48, %49 : vector<128x32xf32>
    %51 = vector.broadcast %30 : vector<1x32xf32> to vector<128x32xf32>
    %52 = arith.addf %50, %51 : vector<128x32xf32>
    %c0_25 = arith.constant 0 : index
    %c0_26 = arith.constant 0 : index
    %53 = vector.load %arg7[%c0_25, %c0_26] : memref<32x8xbf16, #tpu.memory_space<vmem>>, vector<32x8xbf16>
    %54 = arith.truncf %52 : vector<128x32xf32> to vector<128x32xbf16>
    %cst_27 = arith.constant dense<0.000000e+00> : vector<128x8xf32>
    %55 = tpu.matmul %54, %53, %cst_27 {dimension_numbers = #tpu.dot_dimension_numbers<[1], [0], [0], [1], [0, 0, 1, 1], [], []>} : vector<128x32xbf16>, vector<32x8xbf16>, vector<128x8xf32> -> vector<128x8xf32>
    %c0_28 = arith.constant 0 : index
    %c0_29 = arith.constant 0 : index
    %56 = vector.load %arg8[%c0_28, %c0_29] : memref<1x8xf32, #tpu.memory_space<vmem>>, vector<1x8xf32>
    %57 = vector.broadcast %56 : vector<1x8xf32> to vector<128x8xf32>
    %58 = arith.addf %55, %57 : vector<128x8xf32>
    %c0_30 = arith.constant 0 : index
    %c0_31 = arith.constant 0 : index
    %59 = vector.load %arg9[%c0_30, %c0_31] : memref<32x32xbf16, #tpu.memory_space<vmem>>, vector<32x32xbf16>
    %60 = arith.truncf %52 : vector<128x32xf32> to vector<128x32xbf16>
    %cst_32 = arith.constant dense<0.000000e+00> : vector<128x32xf32>
    %61 = tpu.matmul %60, %59, %cst_32 {dimension_numbers = #tpu.dot_dimension_numbers<[1], [0], [0], [1], [0, 0, 1, 1], [], []>} : vector<128x32xbf16>, vector<32x32xbf16>, vector<128x32xf32> -> vector<128x32xf32>
    %c0_33 = arith.constant 0 : index
    %c0_34 = arith.constant 0 : index
    %62 = vector.load %arg10[%c0_33, %c0_34] : memref<1x32xf32, #tpu.memory_space<vmem>>, vector<1x32xf32>
    %63 = vector.broadcast %62 : vector<1x32xf32> to vector<128x32xf32>
    %64 = arith.addf %61, %63 : vector<128x32xf32>
    %c0_35 = arith.constant 0 : index
    %c0_36 = arith.constant 0 : index
    %65 = vector.load %arg11[%c0_35, %c0_36] : memref<128x32xf32, #tpu.memory_space<vmem>>, vector<128x32xf32>
    tpu.vector_store %arg11[%c0_35, %c0_36], %52 {strides = array<i32>} : memref<128x32xf32, #tpu.memory_space<vmem>>, vector<128x32xf32>,
    %66 = arith.truncf %64 : vector<128x32xf32> to vector<128x32xbf16>
    %c0_37 = arith.constant 0 : index
    %c0_38 = arith.constant 0 : index
    %67 = vector.load %arg12[%c0_37, %c0_38] : memref<128x32xbf16, #tpu.memory_space<vmem>>, vector<128x32xbf16>
    tpu.vector_store %arg12[%c0_37, %c0_38], %66 {strides = array<i32>} : memref<128x32xbf16, #tpu.memory_space<vmem>>, vector<128x32xbf16>,
    %c0_39 = arith.constant 0 : index
    %c0_40 = arith.constant 0 : index
    %68 = vector.load %arg13[%c0_39, %c0_40] : memref<128x8xf32, #tpu.memory_space<vmem>>, vector<128x8xf32>
    tpu.vector_store %arg13[%c0_39, %c0_40], %58 {strides = array<i32>} : memref<128x8xf32, #tpu.memory_space<vmem>>, vector<128x8xf32>,
    return
  }
}

module attributes {stable_mosaic.version = 11 : i64} {
  func.func @bn_kernel(%arg0: memref<128x32xf32, #tpu.memory_space<vmem>>, %arg1: memref<1x32xf32, #tpu.memory_space<vmem>>, %arg2: memref<1x32xf32, #tpu.memory_space<vmem>>, %arg3: memref<128x32xf32, #tpu.memory_space<vmem>>) attributes {dimension_semantics = [], scalar_prefetch = 0 : i64, scratch_operands = 0 : i64, tpu.core_type = #tpu.core_type<tc>} {
    %c0 = arith.constant 0 : index
    %c0_0 = arith.constant 0 : index
    %0 = vector.load %arg0[%c0, %c0_0] : memref<128x32xf32, #tpu.memory_space<vmem>>, vector<128x32xf32>
    %c0_1 = arith.constant 0 : index
    %c0_2 = arith.constant 0 : index
    %1 = vector.load %arg1[%c0_1, %c0_2] : memref<1x32xf32, #tpu.memory_space<vmem>>, vector<1x32xf32>
    %c0_3 = arith.constant 0 : index
    %c0_4 = arith.constant 0 : index
    %2 = vector.load %arg2[%c0_3, %c0_4] : memref<1x32xf32, #tpu.memory_space<vmem>>, vector<1x32xf32>
    %cst = arith.constant dense<0.000000e+00> : vector<32xf32>
    %3 = vector.multi_reduction <add>, %0, %cst [0] : vector<128x32xf32> to vector<32xf32>
    %4 = vector.shape_cast %3 : vector<32xf32> to vector<1x32xf32>
    %cst_5 = arith.constant 1.280000e+02 : f32
    %5 = vector.broadcast %cst_5 : f32 to vector<1x32xf32>
    %6 = arith.divf %4, %5 : vector<1x32xf32>
    %7 = vector.broadcast %6 : vector<1x32xf32> to vector<128x32xf32>
    %8 = arith.subf %0, %7 : vector<128x32xf32>
    %9 = arith.mulf %8, %8 : vector<128x32xf32>
    %cst_6 = arith.constant dense<0.000000e+00> : vector<32xf32>
    %10 = vector.multi_reduction <add>, %9, %cst_6 [0] : vector<128x32xf32> to vector<32xf32>
    %11 = vector.shape_cast %10 : vector<32xf32> to vector<1x32xf32>
    %cst_7 = arith.constant 1.280000e+02 : f32
    %12 = vector.broadcast %cst_7 : f32 to vector<1x32xf32>
    %13 = arith.divf %11, %12 : vector<1x32xf32>
    %14 = vector.broadcast %6 : vector<1x32xf32> to vector<128x32xf32>
    %15 = arith.subf %0, %14 : vector<128x32xf32>
    %cst_8 = arith.constant 9.99999974E-6 : f32
    %16 = vector.broadcast %cst_8 : f32 to vector<1x32xf32>
    %17 = arith.addf %13, %16 : vector<1x32xf32>
    %18 = math.rsqrt %17 : vector<1x32xf32>
    %19 = vector.broadcast %18 : vector<1x32xf32> to vector<128x32xf32>
    %20 = arith.mulf %15, %19 : vector<128x32xf32>
    %21 = vector.broadcast %1 : vector<1x32xf32> to vector<128x32xf32>
    %22 = arith.mulf %20, %21 : vector<128x32xf32>
    %23 = vector.broadcast %2 : vector<1x32xf32> to vector<128x32xf32>
    %24 = arith.addf %22, %23 : vector<128x32xf32>
    %c0_9 = arith.constant 0 : index
    %c0_10 = arith.constant 0 : index
    %25 = vector.load %arg3[%c0_9, %c0_10] : memref<128x32xf32, #tpu.memory_space<vmem>>, vector<128x32xf32>
    tpu.vector_store %arg3[%c0_9, %c0_10], %24 {strides = array<i32>} : memref<128x32xf32, #tpu.memory_space<vmem>>, vector<128x32xf32>,
    return
  }
}

module attributes {stable_mosaic.version = 11 : i64} {
  func.func @gravnet_kernel(%arg0: i32, %arg1: memref<64x1xi32, #tpu.memory_space<vmem>>, %arg2: memref<1x128xi32, #tpu.memory_space<vmem>>, %arg3: memref<64x32xf32, #tpu.memory_space<vmem>>, %arg4: memref<64x8xf32, #tpu.memory_space<vmem>>, %arg5: memref<8x128xf32, #tpu.memory_space<vmem>>, %arg6: memref<128x32xbf16, #tpu.memory_space<vmem>>, %arg7: memref<96x32xbf16, #tpu.memory_space<vmem>>, %arg8: memref<1x32xf32, #tpu.memory_space<vmem>>, %arg9: memref<72x32xbf16, #tpu.memory_space<vmem>>, %arg10: memref<1x32xf32, #tpu.memory_space<vmem>>, %arg11: memref<32x32xbf16, #tpu.memory_space<vmem>>, %arg12: memref<1x32xf32, #tpu.memory_space<vmem>>, %arg13: memref<64x32xf32, #tpu.memory_space<vmem>>, %arg14: memref<64x128xf32, #tpu.memory_space<vmem>>, %arg15: memref<64x32xf32, #tpu.memory_space<vmem>>, %arg16: memref<64x32xf32, #tpu.memory_space<vmem>>, %arg17: memref<64x1xf32, #tpu.memory_space<vmem>>) attributes {dimension_semantics = [#tpu.dimension_semantics<parallel>], iteration_bounds = array<i64: 2>, scalar_prefetch = 0 : i64, scratch_operands = 4 : i64, tpu.core_type = #tpu.core_type<tc>, window_params = [{transform_indices = @transform_0, window_bounds = array<i64: 64, 1>}, {pipeline_mode = #tpu.pipeline_mode<synchronous>, transform_indices = @transform_1, window_bounds = array<i64: 1, 128>}, {transform_indices = @transform_2, window_bounds = array<i64: 64, 32>}, {transform_indices = @transform_3, window_bounds = array<i64: 64, 8>}, {pipeline_mode = #tpu.pipeline_mode<synchronous>, transform_indices = @transform_4, window_bounds = array<i64: 8, 128>}, {pipeline_mode = #tpu.pipeline_mode<synchronous>, transform_indices = @transform_5, window_bounds = array<i64: 128, 32>}, {pipeline_mode = #tpu.pipeline_mode<synchronous>, transform_indices = @transform_6, window_bounds = array<i64: 96, 32>}, {pipeline_mode = #tpu.pipeline_mode<synchronous>, transform_indices = @transform_7, window_bounds = array<i64: 1, 32>}, {pipeline_mode = #tpu.pipeline_mode<synchronous>, transform_indices = @transform_8, window_bounds = array<i64: 72, 32>}, {pipeline_mode = #tpu.pipeline_mode<synchronous>, transform_indices = @transform_9, window_bounds = array<i64: 1, 32>}, {pipeline_mode = #tpu.pipeline_mode<synchronous>, transform_indices = @transform_10, window_bounds = array<i64: 32, 32>}, {pipeline_mode = #tpu.pipeline_mode<synchronous>, transform_indices = @transform_11, window_bounds = array<i64: 1, 32>}, {transform_indices = @transform_12, window_bounds = array<i64: 64, 32>}]} {
    %c0 = arith.constant 0 : index
    %c0_0 = arith.constant 0 : index
    %0 = vector.load %arg4[%c0, %c0_0] : memref<64x8xf32, #tpu.memory_space<vmem>>, vector<64x8xf32>
    %c0_1 = arith.constant 0 : index
    %c0_2 = arith.constant 0 : index
    %1 = vector.load %arg5[%c0_1, %c0_2] : memref<8x128xf32, #tpu.memory_space<vmem>>, vector<8x128xf32>
    %cst = arith.constant 0.000000e+00 : f32
    %2 = vector.broadcast %cst : f32 to vector<64x128xf32>
    %3 = vector.extract_strided_slice %0 {offsets = [0, 0], sizes = [64, 1], strides = [1, 1]} : vector<64x8xf32> to vector<64x1xf32>
    %4 = vector.extract_strided_slice %1 {offsets = [0, 0], sizes = [1, 128], strides = [1, 1]} : vector<8x128xf32> to vector<1x128xf32>
    %5 = vector.broadcast %3 : vector<64x1xf32> to vector<64x128xf32>
    %6 = vector.broadcast %4 : vector<1x128xf32> to vector<64x128xf32>
    %7 = arith.subf %5, %6 : vector<64x128xf32>
    %8 = arith.mulf %7, %7 : vector<64x128xf32>
    %9 = arith.addf %2, %8 : vector<64x128xf32>
    %10 = vector.extract_strided_slice %0 {offsets = [0, 1], sizes = [64, 1], strides = [1, 1]} : vector<64x8xf32> to vector<64x1xf32>
    %11 = vector.extract_strided_slice %1 {offsets = [1, 0], sizes = [1, 128], strides = [1, 1]} : vector<8x128xf32> to vector<1x128xf32>
    %12 = vector.broadcast %10 : vector<64x1xf32> to vector<64x128xf32>
    %13 = vector.broadcast %11 : vector<1x128xf32> to vector<64x128xf32>
    %14 = arith.subf %12, %13 : vector<64x128xf32>
    %15 = arith.mulf %14, %14 : vector<64x128xf32>
    %16 = arith.addf %9, %15 : vector<64x128xf32>
    %17 = vector.extract_strided_slice %0 {offsets = [0, 2], sizes = [64, 1], strides = [1, 1]} : vector<64x8xf32> to vector<64x1xf32>
    %18 = vector.extract_strided_slice %1 {offsets = [2, 0], sizes = [1, 128], strides = [1, 1]} : vector<8x128xf32> to vector<1x128xf32>
    %19 = vector.broadcast %17 : vector<64x1xf32> to vector<64x128xf32>
    %20 = vector.broadcast %18 : vector<1x128xf32> to vector<64x128xf32>
    %21 = arith.subf %19, %20 : vector<64x128xf32>
    %22 = arith.mulf %21, %21 : vector<64x128xf32>
    %23 = arith.addf %16, %22 : vector<64x128xf32>
    %c0_3 = arith.constant 0 : index
    %c0_4 = arith.constant 0 : index
    %24 = vector.load %arg1[%c0_3, %c0_4] : memref<64x1xi32, #tpu.memory_space<vmem>>, vector<64x1xi32>
    %c0_5 = arith.constant 0 : index
    %c0_6 = arith.constant 0 : index
    %25 = vector.load %arg2[%c0_5, %c0_6] : memref<1x128xi32, #tpu.memory_space<vmem>>, vector<1x128xi32>
    %26 = vector.broadcast %24 : vector<64x1xi32> to vector<64x128xi32>
    %27 = vector.broadcast %25 : vector<1x128xi32> to vector<64x128xi32>
    %28 = arith.cmpi eq, %26, %27 : vector<64x128xi32>
    %cst_7 = arith.constant 1.000000e+30 : f32
    %29 = vector.broadcast %cst_7 : f32 to vector<64x128xf32>
    %30 = arith.select %28, %23, %29 : vector<64x128xi1>, vector<64x128xf32>
    %cst_8 = arith.constant 1.000000e+00 : f32
    %31 = vector.broadcast %cst_8 : f32 to vector<64x128xf32>
    %32 = arith.addf %30, %31 : vector<64x128xf32>
    %33 = tpu.iota {dimensions = array<i32: 1>} : vector<64x128xi32>
    %34 = tpu.bitcast %32 : vector<64x128xf32> -> vector<64x128xi32>
    %c-128_i32 = arith.constant -128 : i32
    %35 = vector.broadcast %c-128_i32 : i32 to vector<64x128xi32>
    %36 = arith.andi %34, %35 : vector<64x128xi32>
    %37 = arith.ori %36, %33 : vector<64x128xi32>
    %38 = tpu.bitcast %37 : vector<64x128xi32> -> vector<64x128xf32>
    %c0_9 = arith.constant 0 : index
    %c0_10 = arith.constant 0 : index
    %39 = vector.load %arg14[%c0_9, %c0_10] : memref<64x128xf32, #tpu.memory_space<vmem>>, vector<64x128xf32>
    tpu.vector_store %arg14[%c0_9, %c0_10], %38 {strides = array<i32>} : memref<64x128xf32, #tpu.memory_space<vmem>>, vector<64x128xf32>,
    %cst_11 = arith.constant 0.000000e+00 : f32
    %40 = vector.broadcast %cst_11 : f32 to vector<64x32xf32>
    %c0_12 = arith.constant 0 : index
    %c0_13 = arith.constant 0 : index
    %41 = vector.load %arg15[%c0_12, %c0_13] : memref<64x32xf32, #tpu.memory_space<vmem>>, vector<64x32xf32>
    tpu.vector_store %arg15[%c0_12, %c0_13], %40 {strides = array<i32>} : memref<64x32xf32, #tpu.memory_space<vmem>>, vector<64x32xf32>,
    %cst_14 = arith.constant -1.000000e+30 : f32
    %42 = vector.broadcast %cst_14 : f32 to vector<64x32xf32>
    %c0_15 = arith.constant 0 : index
    %c0_16 = arith.constant 0 : index
    %43 = vector.load %arg16[%c0_15, %c0_16] : memref<64x32xf32, #tpu.memory_space<vmem>>, vector<64x32xf32>
    tpu.vector_store %arg16[%c0_15, %c0_16], %42 {strides = array<i32>} : memref<64x32xf32, #tpu.memory_space<vmem>>, vector<64x32xf32>,
    %cst_17 = arith.constant 0.000000e+00 : f32
    %44 = vector.broadcast %cst_17 : f32 to vector<64x1xf32>
    %c0_18 = arith.constant 0 : index
    %c0_19 = arith.constant 0 : index
    %45 = vector.load %arg17[%c0_18, %c0_19] : memref<64x1xf32, #tpu.memory_space<vmem>>, vector<64x1xf32>
    tpu.vector_store %arg17[%c0_18, %c0_19], %44 {strides = array<i32>} : memref<64x1xf32, #tpu.memory_space<vmem>>, vector<64x1xf32>,
    %c0_i32 = arith.constant 0 : i32
    %c40_i32 = arith.constant 40 : i32
    %46 = arith.addi %c0_i32, %c40_i32 : i32
    %c1_i32 = arith.constant 1 : i32
    scf.for %arg18 = %c0_i32 to %46 step %c1_i32  : i32 {
      %c0_54 = arith.constant 0 : index
      %c0_55 = arith.constant 0 : index
      %98 = vector.load %arg14[%c0_54, %c0_55] : memref<64x128xf32, #tpu.memory_space<vmem>>, vector<64x128xf32>
      %cst_56 = arith.constant dense<0x7F800000> : vector<64xf32>
      %99 = vector.multi_reduction <minimumf>, %98, %cst_56 [1] : vector<64x128xf32> to vector<64xf32>
      %100 = vector.shape_cast %99 : vector<64xf32> to vector<64x1xf32>
      %cst_57 = arith.constant 1.000000e+00 : f32
      %101 = vector.broadcast %cst_57 : f32 to vector<64x1xf32>
      %102 = arith.subf %100, %101 : vector<64x1xf32>
      %cst_58 = arith.constant 5.000000e+29 : f32
      %103 = vector.broadcast %cst_58 : f32 to vector<64x1xf32>
      %104 = arith.cmpf olt, %102, %103 : vector<64x1xf32>
      %cst_59 = arith.constant -1.000000e+01 : f32
      %105 = vector.broadcast %cst_59 : f32 to vector<64x1xf32>
      %106 = arith.mulf %105, %102 : vector<64x1xf32>
      %107 = math.exp %106 : vector<64x1xf32>
      %cst_60 = arith.constant 0.000000e+00 : f32
      %108 = vector.broadcast %cst_60 : f32 to vector<64x1xf32>
      %109 = arith.select %104, %107, %108 : vector<64x1xi1>, vector<64x1xf32>
      %110 = vector.broadcast %100 : vector<64x1xf32> to vector<64x128xf32>
      %111 = arith.cmpf oeq, %98, %110 : vector<64x128xf32>
      %cst_61 = arith.constant 2.000000e+30 : f32
      %112 = vector.broadcast %cst_61 : f32 to vector<64x128xf32>
      %113 = arith.select %111, %112, %98 : vector<64x128xi1>, vector<64x128xf32>
      %c0_62 = arith.constant 0 : index
      %c0_63 = arith.constant 0 : index
      %114 = vector.load %arg14[%c0_62, %c0_63] : memref<64x128xf32, #tpu.memory_space<vmem>>, vector<64x128xf32>
      tpu.vector_store %arg14[%c0_62, %c0_63], %113 {strides = array<i32>} : memref<64x128xf32, #tpu.memory_space<vmem>>, vector<64x128xf32>,
      %115 = arith.extui %111 : vector<64x128xi1> to vector<64x128xi32>
      %116 = arith.sitofp %115 : vector<64x128xi32> to vector<64x128xf32>
      %117 = arith.truncf %116 : vector<64x128xf32> to vector<64x128xbf16>
      %c0_64 = arith.constant 0 : index
      %c0_65 = arith.constant 0 : index
      %118 = vector.load %arg6[%c0_64, %c0_65] : memref<128x32xbf16, #tpu.memory_space<vmem>>, vector<128x32xbf16>
      %cst_66 = arith.constant dense<0.000000e+00> : vector<64x32xf32>
      %119 = tpu.matmul %117, %118, %cst_66 {dimension_numbers = #tpu.dot_dimension_numbers<[1], [0], [0], [1], [0, 0, 1, 1], [], []>} : vector<64x128xbf16>, vector<128x32xbf16>, vector<64x32xf32> -> vector<64x32xf32>
      %120 = vector.broadcast %109 : vector<64x1xf32> to vector<64x32xf32>
      %121 = arith.mulf %119, %120 : vector<64x32xf32>
      %c0_67 = arith.constant 0 : index
      %c0_68 = arith.constant 0 : index
      %122 = vector.load %arg15[%c0_67, %c0_68] : memref<64x32xf32, #tpu.memory_space<vmem>>, vector<64x32xf32>
      %123 = arith.addf %122, %121 : vector<64x32xf32>
      %c0_69 = arith.constant 0 : index
      %c0_70 = arith.constant 0 : index
      %124 = vector.load %arg15[%c0_69, %c0_70] : memref<64x32xf32, #tpu.memory_space<vmem>>, vector<64x32xf32>
      tpu.vector_store %arg15[%c0_69, %c0_70], %123 {strides = array<i32>} : memref<64x32xf32, #tpu.memory_space<vmem>>, vector<64x32xf32>,
      %c0_71 = arith.constant 0 : index
      %c0_72 = arith.constant 0 : index
      %125 = vector.load %arg16[%c0_71, %c0_72] : memref<64x32xf32, #tpu.memory_space<vmem>>, vector<64x32xf32>
      %cst_73 = arith.constant -1.000000e+30 : f32
      %126 = vector.shape_cast %104 : vector<64x1xi1> to vector<64x1xi1>
      %127 = vector.broadcast %126 : vector<64x1xi1> to vector<64x32xi1>
      %128 = vector.broadcast %cst_73 : f32 to vector<64x32xf32>
      %129 = arith.select %127, %121, %128 : vector<64x32xi1>, vector<64x32xf32>
      %130 = arith.maximumf %125, %129 : vector<64x32xf32>
      %c0_74 = arith.constant 0 : index
      %c0_75 = arith.constant 0 : index
      %131 = vector.load %arg16[%c0_74, %c0_75] : memref<64x32xf32, #tpu.memory_space<vmem>>, vector<64x32xf32>
      tpu.vector_store %arg16[%c0_74, %c0_75], %130 {strides = array<i32>} : memref<64x32xf32, #tpu.memory_space<vmem>>, vector<64x32xf32>,
      %c0_76 = arith.constant 0 : index
      %c0_77 = arith.constant 0 : index
      %132 = vector.load %arg17[%c0_76, %c0_77] : memref<64x1xf32, #tpu.memory_space<vmem>>, vector<64x1xf32>
      %133 = arith.extui %104 : vector<64x1xi1> to vector<64x1xi32>
      %134 = arith.sitofp %133 : vector<64x1xi32> to vector<64x1xf32>
      %135 = arith.addf %132, %134 : vector<64x1xf32>
      %c0_78 = arith.constant 0 : index
      %c0_79 = arith.constant 0 : index
      %136 = vector.load %arg17[%c0_78, %c0_79] : memref<64x1xf32, #tpu.memory_space<vmem>>, vector<64x1xf32>
      tpu.vector_store %arg17[%c0_78, %c0_79], %135 {strides = array<i32>} : memref<64x1xf32, #tpu.memory_space<vmem>>, vector<64x1xf32>,
    }
    %c0_20 = arith.constant 0 : index
    %c0_21 = arith.constant 0 : index
    %47 = vector.load %arg17[%c0_20, %c0_21] : memref<64x1xf32, #tpu.memory_space<vmem>>, vector<64x1xf32>
    %c0_22 = arith.constant 0 : index
    %c0_23 = arith.constant 0 : index
    %48 = vector.load %arg15[%c0_22, %c0_23] : memref<64x32xf32, #tpu.memory_space<vmem>>, vector<64x32xf32>
    %cst_24 = arith.constant 1.000000e+00 : f32
    %49 = vector.broadcast %cst_24 : f32 to vector<64x1xf32>
    %50 = arith.maximumf %47, %49 : vector<64x1xf32>
    %51 = vector.broadcast %50 : vector<64x1xf32> to vector<64x32xf32>
    %52 = arith.divf %48, %51 : vector<64x32xf32>
    %cst_25 = arith.constant 0.000000e+00 : f32
    %53 = vector.broadcast %cst_25 : f32 to vector<64x1xf32>
    %54 = arith.cmpf ogt, %47, %53 : vector<64x1xf32>
    %c0_26 = arith.constant 0 : index
    %c0_27 = arith.constant 0 : index
    %55 = vector.load %arg16[%c0_26, %c0_27] : memref<64x32xf32, #tpu.memory_space<vmem>>, vector<64x32xf32>
    %cst_28 = arith.constant 0.000000e+00 : f32
    %56 = vector.shape_cast %54 : vector<64x1xi1> to vector<64x1xi1>
    %57 = vector.broadcast %56 : vector<64x1xi1> to vector<64x32xi1>
    %58 = vector.broadcast %cst_28 : f32 to vector<64x32xf32>
    %59 = arith.select %57, %55, %58 : vector<64x32xi1>, vector<64x32xf32>
    %c0_29 = arith.constant 0 : index
    %c0_30 = arith.constant 0 : index
    %60 = vector.load %arg3[%c0_29, %c0_30] : memref<64x32xf32, #tpu.memory_space<vmem>>, vector<64x32xf32>
    %61 = tpu.concatenate %60, %52, %59 in 1 : vector<64x32xf32>, vector<64x32xf32>, vector<64x32xf32> -> vector<64x96xf32>
    %c0_31 = arith.constant 0 : index
    %c0_32 = arith.constant 0 : index
    %62 = vector.load %arg7[%c0_31, %c0_32] : memref<96x32xbf16, #tpu.memory_space<vmem>>, vector<96x32xbf16>
    %63 = arith.truncf %61 : vector<64x96xf32> to vector<64x96xbf16>
    %cst_33 = arith.constant dense<0.000000e+00> : vector<64x32xf32>
    %64 = tpu.matmul %63, %62, %cst_33 {dimension_numbers = #tpu.dot_dimension_numbers<[1], [0], [0], [1], [0, 0, 1, 1], [], []>} : vector<64x96xbf16>, vector<96x32xbf16>, vector<64x32xf32> -> vector<64x32xf32>
    %c0_34 = arith.constant 0 : index
    %c0_35 = arith.constant 0 : index
    %65 = vector.load %arg8[%c0_34, %c0_35] : memref<1x32xf32, #tpu.memory_space<vmem>>, vector<1x32xf32>
    %66 = vector.broadcast %65 : vector<1x32xf32> to vector<64x32xf32>
    %67 = arith.addf %64, %66 : vector<64x32xf32>
    %68 = tpu.concatenate %67, %0, %60 in 1 : vector<64x32xf32>, vector<64x8xf32>, vector<64x32xf32> -> vector<64x72xf32>
    %c0_36 = arith.constant 0 : index
    %c0_37 = arith.constant 0 : index
    %69 = vector.load %arg9[%c0_36, %c0_37] : memref<72x32xbf16, #tpu.memory_space<vmem>>, vector<72x32xbf16>
    %70 = arith.truncf %68 : vector<64x72xf32> to vector<64x72xbf16>
    %cst_38 = arith.constant dense<0.000000e+00> : vector<64x32xf32>
    %71 = tpu.matmul %70, %69, %cst_38 {dimension_numbers = #tpu.dot_dimension_numbers<[1], [0], [0], [1], [0, 0, 1, 1], [], []>} : vector<64x72xbf16>, vector<72x32xbf16>, vector<64x32xf32> -> vector<64x32xf32>
    %c0_39 = arith.constant 0 : index
    %c0_40 = arith.constant 0 : index
    %72 = vector.load %arg10[%c0_39, %c0_40] : memref<1x32xf32, #tpu.memory_space<vmem>>, vector<1x32xf32>
    %73 = vector.broadcast %72 : vector<1x32xf32> to vector<64x32xf32>
    %74 = arith.addf %71, %73 : vector<64x32xf32>
    %cst_41 = arith.constant 0.000000e+00 : f32
    %75 = vector.broadcast %cst_41 : f32 to vector<64x32xf32>
    %76 = arith.cmpf ogt, %74, %75 : vector<64x32xf32>
    %cst_42 = arith.constant 0.000000e+00 : f32
    %77 = vector.broadcast %cst_42 : f32 to vector<64x32xf32>
    %78 = arith.minimumf %74, %77 : vector<64x32xf32>
    %79 = math.exp %78 : vector<64x32xf32>
    %cst_43 = arith.constant 1.000000e+00 : f32
    %80 = vector.broadcast %cst_43 : f32 to vector<64x32xf32>
    %81 = arith.subf %79, %80 : vector<64x32xf32>
    %82 = arith.select %76, %74, %81 : vector<64x32xi1>, vector<64x32xf32>
    %c0_44 = arith.constant 0 : index
    %c0_45 = arith.constant 0 : index
    %83 = vector.load %arg11[%c0_44, %c0_45] : memref<32x32xbf16, #tpu.memory_space<vmem>>, vector<32x32xbf16>
    %84 = arith.truncf %82 : vector<64x32xf32> to vector<64x32xbf16>
    %cst_46 = arith.constant dense<0.000000e+00> : vector<64x32xf32>
    %85 = tpu.matmul %84, %83, %cst_46 {dimension_numbers = #tpu.dot_dimension_numbers<[1], [0], [0], [1], [0, 0, 1, 1], [], []>} : vector<64x32xbf16>, vector<32x32xbf16>, vector<64x32xf32> -> vector<64x32xf32>
    %c0_47 = arith.constant 0 : index
    %c0_48 = arith.constant 0 : index
    %86 = vector.load %arg12[%c0_47, %c0_48] : memref<1x32xf32, #tpu.memory_space<vmem>>, vector<1x32xf32>
    %87 = vector.broadcast %86 : vector<1x32xf32> to vector<64x32xf32>
    %88 = arith.addf %85, %87 : vector<64x32xf32>
    %cst_49 = arith.constant 0.000000e+00 : f32
    %89 = vector.broadcast %cst_49 : f32 to vector<64x32xf32>
    %90 = arith.cmpf ogt, %88, %89 : vector<64x32xf32>
    %cst_50 = arith.constant 0.000000e+00 : f32
    %91 = vector.broadcast %cst_50 : f32 to vector<64x32xf32>
    %92 = arith.minimumf %88, %91 : vector<64x32xf32>
    %93 = math.exp %92 : vector<64x32xf32>
    %cst_51 = arith.constant 1.000000e+00 : f32
    %94 = vector.broadcast %cst_51 : f32 to vector<64x32xf32>
    %95 = arith.subf %93, %94 : vector<64x32xf32>
    %96 = arith.select %90, %88, %95 : vector<64x32xi1>, vector<64x32xf32>
    %c0_52 = arith.constant 0 : index
    %c0_53 = arith.constant 0 : index
    %97 = vector.load %arg13[%c0_52, %c0_53] : memref<64x32xf32, #tpu.memory_space<vmem>>, vector<64x32xf32>
    tpu.vector_store %arg13[%c0_52, %c0_53], %96 {strides = array<i32>} : memref<64x32xf32, #tpu.memory_space<vmem>>, vector<64x32xf32>,
    return
  }
  func.func @transform_0(%arg0: i32) -> (i32, i32) {
    %c0_i32 = arith.constant 0 : i32
    %c0_i32_0 = arith.constant 0 : i32
    return %arg0, %c0_i32 : i32, i32
  }
  func.func @transform_1(%arg0: i32) -> (i32, i32) {
    %c0_i32 = arith.constant 0 : i32
    %c0_i32_0 = arith.constant 0 : i32
    %c0_i32_1 = arith.constant 0 : i32
    return %c0_i32, %c0_i32_0 : i32, i32
  }
  func.func @transform_2(%arg0: i32) -> (i32, i32) {
    %c0_i32 = arith.constant 0 : i32
    %c0_i32_0 = arith.constant 0 : i32
    return %arg0, %c0_i32 : i32, i32
  }
  func.func @transform_3(%arg0: i32) -> (i32, i32) {
    %c0_i32 = arith.constant 0 : i32
    %c0_i32_0 = arith.constant 0 : i32
    return %arg0, %c0_i32 : i32, i32
  }
  func.func @transform_4(%arg0: i32) -> (i32, i32) {
    %c0_i32 = arith.constant 0 : i32
    %c0_i32_0 = arith.constant 0 : i32
    %c0_i32_1 = arith.constant 0 : i32
    return %c0_i32, %c0_i32_0 : i32, i32
  }
  func.func @transform_5(%arg0: i32) -> (i32, i32) {
    %c0_i32 = arith.constant 0 : i32
    %c0_i32_0 = arith.constant 0 : i32
    %c0_i32_1 = arith.constant 0 : i32
    return %c0_i32, %c0_i32_0 : i32, i32
  }
  func.func @transform_6(%arg0: i32) -> (i32, i32) {
    %c0_i32 = arith.constant 0 : i32
    %c0_i32_0 = arith.constant 0 : i32
    %c0_i32_1 = arith.constant 0 : i32
    return %c0_i32, %c0_i32_0 : i32, i32
  }
  func.func @transform_7(%arg0: i32) -> (i32, i32) {
    %c0_i32 = arith.constant 0 : i32
    %c0_i32_0 = arith.constant 0 : i32
    %c0_i32_1 = arith.constant 0 : i32
    return %c0_i32, %c0_i32_0 : i32, i32
  }
  func.func @transform_8(%arg0: i32) -> (i32, i32) {
    %c0_i32 = arith.constant 0 : i32
    %c0_i32_0 = arith.constant 0 : i32
    %c0_i32_1 = arith.constant 0 : i32
    return %c0_i32, %c0_i32_0 : i32, i32
  }
  func.func @transform_9(%arg0: i32) -> (i32, i32) {
    %c0_i32 = arith.constant 0 : i32
    %c0_i32_0 = arith.constant 0 : i32
    %c0_i32_1 = arith.constant 0 : i32
    return %c0_i32, %c0_i32_0 : i32, i32
  }
  func.func @transform_10(%arg0: i32) -> (i32, i32) {
    %c0_i32 = arith.constant 0 : i32
    %c0_i32_0 = arith.constant 0 : i32
    %c0_i32_1 = arith.constant 0 : i32
    return %c0_i32, %c0_i32_0 : i32, i32
  }
  func.func @transform_11(%arg0: i32) -> (i32, i32) {
    %c0_i32 = arith.constant 0 : i32
    %c0_i32_0 = arith.constant 0 : i32
    %c0_i32_1 = arith.constant 0 : i32
    return %c0_i32, %c0_i32_0 : i32, i32
  }
  func.func @transform_12(%arg0: i32) -> (i32, i32) {
    %c0_i32 = arith.constant 0 : i32
    %c0_i32_0 = arith.constant 0 : i32
    return %arg0, %c0_i32 : i32, i32
  }
}

</mosaic_0001>

<llo_original>
// kernel: gravnet_block.5
$region0: #{gravnet_block.5}
  #allocation0 [shape = 'u32[]', space=smem, size = 0x4, offset = 0x4, fixed_abs, tag = 'smem constant byte address 0x4 - core index']
  #allocation1 [shape = 'u32[144,128]{1,0:T(1,128)}', space=vmem, size = 0x12000, scoped, tag = 'internal scratch']
  %s0 = inlined_call_operand.vmem [shape: f32[128,32], index: 0, kind: input, shape index: {}]
  %s1 = inlined_call_operand.vmem [shape: f32[1,32], index: 1, kind: input, shape index: {}]
  %s2 = inlined_call_operand.vmem [shape: f32[1,32], index: 2, kind: input, shape index: {}]
  %s3 = inlined_call_operand.vmem [shape: f32[128,32], index: 3, kind: output, shape index: {}]
  %s4 = sld [smem:[#allocation0]]
  $region22: #{gravnet_block.5} parent=0
    _
  %s6 = ssub.s32 1, %s4
  %s7 = scalar_select 0, %s6, %s4
  // Predicated region
  $region2: #{gravnet_block.5} parent=0 // pred_check
    _
  $region3: #{gravnet_block.5} parent=0 // pred_check_branch
    %9 = sbr.rel (0) target = $region5
  $region4: #{gravnet_block.5} parent=0 // pred_region
    _
  $region5: #{gravnet_block.5} parent=0 // pred_fallthru
    _
  // Predicated region
  $region6: #{gravnet_block.5} parent=0 // pred_check
    _
  $region7: #{gravnet_block.5} parent=0 // pred_check_branch
    %11 = sbr.rel (0) target = $region9
  $region8: #{gravnet_block.5} parent=0 // pred_region
    _
  $region9: #{gravnet_block.5} parent=0 // pred_fallthru
    _
  // Predicated region
  $region10: #{gravnet_block.5} parent=0 // pred_check
    _
  $region11: #{gravnet_block.5} parent=0 // pred_check_branch
    %13 = sbr.rel (0) target = $region13
  $region12: #{gravnet_block.5} parent=0 // pred_region
    _
  $region13: #{gravnet_block.5} parent=0 // pred_fallthru
    _
  %v14 = vld [vmem:[%s0] sm:$0xff]
  %v15 = vld [vmem:[%s0 + $0x8] sm:$0xff]
  %v16 = vld [vmem:[%s0 + $0x10] sm:$0xff]
  %v17 = vld [vmem:[%s0 + $0x18] sm:$0xff]
  %v18 = vld [vmem:[%s0 + $0x20] sm:$0xff]
  %v19 = vld [vmem:[%s0 + $0x28] sm:$0xff]
  %v20 = vld [vmem:[%s0 + $0x30] sm:$0xff]
  %v21 = vld [vmem:[%s0 + $0x38] sm:$0xff]
  %v22 = vld [vmem:[%s0 + $0x40] sm:$0xff]
  %v23 = vld [vmem:[%s0 + $0x48] sm:$0xff]
  %v24 = vld [vmem:[%s0 + $0x50] sm:$0xff]
  %v25 = vld [vmem:[%s0 + $0x58] sm:$0xff]
  %v26 = vld [vmem:[%s0 + $0x60] sm:$0xff]
  %v27 = vld [vmem:[%s0 + $0x68] sm:$0xff]
  %v28 = vld [vmem:[%s0 + $0x70] sm:$0xff]
  %v29 = vld [vmem:[%s0 + $0x78] sm:$0xff]
  %v30 = vld [vmem:[%s1] sm:$0x1]
  %v31 = vld [vmem:[%s2] sm:$0x1]
  %vm32 = vcmask 261120
  %v33 = vsel %vm32, %v14, 0.0
  %v34 = vsel %vm32, %v15, 0.0
  %v35 = vadd.f32 %v33, %v34
  %v36 = vsel %vm32, %v16, 0.0
  %v37 = vadd.f32 %v35, %v36
  %v38 = vsel %vm32, %v17, 0.0
  %v39 = vadd.f32 %v37, %v38
  %v40 = vsel %vm32, %v18, 0.0
  %v41 = vadd.f32 %v39, %v40
  %v42 = vsel %vm32, %v19, 0.0
  %v43 = vadd.f32 %v41, %v42
  %v44 = vsel %vm32, %v20, 0.0
  %v45 = vadd.f32 %v43, %v44
  %v46 = vsel %vm32, %v21, 0.0
  %v47 = vadd.f32 %v45, %v46
  %v48 = vsel %vm32, %v22, 0.0
  %v49 = vadd.f32 %v47, %v48
  %v50 = vsel %vm32, %v23, 0.0
  %v51 = vadd.f32 %v49, %v50
  %v52 = vsel %vm32, %v24, 0.0
  %v53 = vadd.f32 %v51, %v52
  %v54 = vsel %vm32, %v25, 0.0
  %v55 = vadd.f32 %v53, %v54
  %v56 = vsel %vm32, %v26, 0.0
  %v57 = vadd.f32 %v55, %v56
  %v58 = vsel %vm32, %v27, 0.0
  %v59 = vadd.f32 %v57, %v58
  %v60 = vsel %vm32, %v28, 0.0
  %v61 = vadd.f32 %v59, %v60
  %v62 = vsel %vm32, %v29, 0.0
  %v63 = vadd.f32 %v61, %v62
  %v64 = vrot.slane %v63, 4
  %v65 = vadd.f32 %v63, %v64
  %v66 = vrot.slane %v65, 2
  %v67 = vadd.f32 %v65, %v66
  %v68 = vrot.slane %v67, 1
  %v69 = vadd.f32 %v67, %v68
  %v70 = vrcp.pop 128.0
  %v71 = vmul.f32 %v69, %v70
  %v72 = vsub.f32 %v14, %v71
  %v73 = vsub.f32 %v15, %v71
  %v74 = vsub.f32 %v16, %v71
  %v75 = vsub.f32 %v17, %v71
  %v76 = vsub.f32 %v18, %v71
  %v77 = vsub.f32 %v19, %v71
  %v78 = vsub.f32 %v20, %v71
  %v79 = vsub.f32 %v21, %v71
  %v80 = vsub.f32 %v22, %v71
  %v81 = vsub.f32 %v23, %v71
  %v82 = vsub.f32 %v24, %v71
  %v83 = vsub.f32 %v25, %v71
  %v84 = vsub.f32 %v26, %v71
  %v85 = vsub.f32 %v27, %v71
  %v86 = vsub.f32 %v28, %v71
  %v87 = vsub.f32 %v29, %v71
  %v88 = vmul.f32 %v72, %v72
  %v89 = vmul.f32 %v73, %v73
  %v90 = vmul.f32 %v74, %v74
  %v91 = vmul.f32 %v75, %v75
  %v92 = vmul.f32 %v76, %v76
  %v93 = vmul.f32 %v77, %v77
  %v94 = vmul.f32 %v78, %v78
  %v95 = vmul.f32 %v79, %v79
  %v96 = vmul.f32 %v80, %v80
  %v97 = vmul.f32 %v81, %v81
  %v98 = vmul.f32 %v82, %v82
  %v99 = vmul.f32 %v83, %v83
  %v100 = vmul.f32 %v84, %v84
  %v101 = vmul.f32 %v85, %v85
  %v102 = vmul.f32 %v86, %v86
  %v103 = vmul.f32 %v87, %v87
  %v104 = vsel %vm32, %v88, 0.0
  %v105 = vsel %vm32, %v89, 0.0
  %v106 = vadd.f32 %v104, %v105
  %v107 = vsel %vm32, %v90, 0.0
  %v108 = vadd.f32 %v106, %v107
  %v109 = vsel %vm32, %v91, 0.0
  %v110 = vadd.f32 %v108, %v109
  %v111 = vsel %vm32, %v92, 0.0
  %v112 = vadd.f32 %v110, %v111
  %v113 = vsel %vm32, %v93, 0.0
  %v114 = vadd.f32 %v112, %v113
  %v115 = vsel %vm32, %v94, 0.0
  %v116 = vadd.f32 %v114, %v115
  %v117 = vsel %vm32, %v95, 0.0
  %v118 = vadd.f32 %v116, %v117
  %v119 = vsel %vm32, %v96, 0.0
  %v120 = vadd.f32 %v118, %v119
  %v121 = vsel %vm32, %v97, 0.0
  %v122 = vadd.f32 %v120, %v121
  %v123 = vsel %vm32, %v98, 0.0
  %v124 = vadd.f32 %v122, %v123
  %v125 = vsel %vm32, %v99, 0.0
  %v126 = vadd.f32 %v124, %v125
  %v127 = vsel %vm32, %v100, 0.0
  %v128 = vadd.f32 %v126, %v127
  %v129 = vsel %vm32, %v101, 0.0
  %v130 = vadd.f32 %v128, %v129
  %v131 = vsel %vm32, %v102, 0.0
  %v132 = vadd.f32 %v130, %v131
  %v133 = vsel %vm32, %v103, 0.0
  %v134 = vadd.f32 %v132, %v133
  %v135 = vrot.slane %v134, 4
  %v136 = vadd.f32 %v134, %v135
  %v137 = vrot.slane %v136, 2
  %v138 = vadd.f32 %v136, %v137
  %v139 = vrot.slane %v138, 1
  %v140 = vadd.f32 %v138, %v139
  %v141 = vmul.f32 %v140, %v70
  %v142 = vadd.f32 %v141, 1e-05
  %v143 = vrsqrt.pop %v142
  %v144 = vmul.f32 %v72, %v143
  %v145 = vmul.f32 %v73, %v143
  %v146 = vmul.f32 %v74, %v143
  %v147 = vmul.f32 %v75, %v143
  %v148 = vmul.f32 %v76, %v143
  %v149 = vmul.f32 %v77, %v143
  %v150 = vmul.f32 %v78, %v143
  %v151 = vmul.f32 %v79, %v143
  %v152 = vmul.f32 %v80, %v143
  %v153 = vmul.f32 %v81, %v143
  %v154 = vmul.f32 %v82, %v143
  %v155 = vmul.f32 %v83, %v143
  %v156 = vmul.f32 %v84, %v143
  %v157 = vmul.f32 %v85, %v143
  %v158 = vmul.f32 %v86, %v143
  %v159 = vmul.f32 %v87, %v143
  %v161 = vlaneseq
  %v162 = vshrl.u32 %v161, 7
  %v163 = vsub.s32 0, %v162
  %v164 = vrot.slane %v30, %v163
  %v166 = vmul.f32 %v144, %v164
  %v167 = vmul.f32 %v145, %v164
  %v168 = vmul.f32 %v146, %v164
  %v169 = vmul.f32 %v147, %v164
  %v170 = vmul.f32 %v148, %v164
  %v171 = vmul.f32 %v149, %v164
  %v172 = vmul.f32 %v150, %v164
  %v173 = vmul.f32 %v151, %v164
  %v174 = vmul.f32 %v152, %v164
  %v175 = vmul.f32 %v153, %v164
  %v176 = vmul.f32 %v154, %v164
  %v177 = vmul.f32 %v155, %v164
  %v178 = vmul.f32 %v156, %v164
  %v179 = vmul.f32 %v157, %v164
  %v180 = vmul.f32 %v158, %v164
  %v181 = vmul.f32 %v159, %v164
  %v183 = vlaneseq
  %v184 = vshrl.u32 %v183, 7
  %v185 = vsub.s32 0, %v184
  %v186 = vrot.slane %v31, %v185
  %v188 = vadd.f32 %v166, %v186
  %v189 = vadd.f32 %v167, %v186
  %v190 = vadd.f32 %v168, %v186
  %v191 = vadd.f32 %v169, %v186
  %v192 = vadd.f32 %v170, %v186
  %v193 = vadd.f32 %v171, %v186
  %v194 = vadd.f32 %v172, %v186
  %v195 = vadd.f32 %v173, %v186
  %v196 = vadd.f32 %v174, %v186
  %v197 = vadd.f32 %v175, %v186
  %v198 = vadd.f32 %v176, %v186
  %v199 = vadd.f32 %v177, %v186
  %v200 = vadd.f32 %v178, %v186
  %v201 = vadd.f32 %v179, %v186
  %v202 = vadd.f32 %v180, %v186
  %v203 = vadd.f32 %v181, %v186
  %204 = vst.msk [vmem:[%s3] sm:$0xff] %vm32, %v188
  %205 = vst.msk [vmem:[%s3 + $0x8] sm:$0xff] %vm32, %v189
  %206 = vst.msk [vmem:[%s3 + $0x10] sm:$0xff] %vm32, %v190
  %207 = vst.msk [vmem:[%s3 + $0x18] sm:$0xff] %vm32, %v191
  %208 = vst.msk [vmem:[%s3 + $0x20] sm:$0xff] %vm32, %v192
  %209 = vst.msk [vmem:[%s3 + $0x28] sm:$0xff] %vm32, %v193
  %210 = vst.msk [vmem:[%s3 + $0x30] sm:$0xff] %vm32, %v194
  %211 = vst.msk [vmem:[%s3 + $0x38] sm:$0xff] %vm32, %v195
  %212 = vst.msk [vmem:[%s3 + $0x40] sm:$0xff] %vm32, %v196
  %213 = vst.msk [vmem:[%s3 + $0x48] sm:$0xff] %vm32, %v197
  %214 = vst.msk [vmem:[%s3 + $0x50] sm:$0xff] %vm32, %v198
  %215 = vst.msk [vmem:[%s3 + $0x58] sm:$0xff] %vm32, %v199
  %216 = vst.msk [vmem:[%s3 + $0x60] sm:$0xff] %vm32, %v200
  %217 = vst.msk [vmem:[%s3 + $0x68] sm:$0xff] %vm32, %v201
  %218 = vst.msk [vmem:[%s3 + $0x70] sm:$0xff] %vm32, %v202
  %219 = vst.msk [vmem:[%s3 + $0x78] sm:$0xff] %vm32, %v203
  // Predicated region
  $region14: #{gravnet_block.5} parent=0 // pred_check
    _
  $region15: #{gravnet_block.5} parent=0 // pred_check_branch
    %221 = sbr.rel (0) target = $region17
  $region16: #{gravnet_block.5} parent=0 // pred_region
    _
  $region17: #{gravnet_block.5} parent=0 // pred_fallthru
    _
  // Predicated region
  $region18: #{gravnet_block.5} parent=0 // pred_check
    _
  $region19: #{gravnet_block.5} parent=0 // pred_check_branch
    %223 = sbr.rel (0) target = $region21
  $region20: #{gravnet_block.5} parent=0 // pred_region
    _
  $region21: #{gravnet_block.5} parent=0 // pred_fallthru
    _

// kernel: gravnet_block.3
$region0: #{gravnet_block.3}
  #allocation0 [shape = 'u32[]', space=smem, size = 0x4, offset = 0x4, fixed_abs, tag = 'smem constant byte address 0x4 - core index']
  #allocation1 [shape = 'u32[144,128]{1,0:T(1,128)}', space=vmem, size = 0x12000, scoped, tag = 'internal scratch']
  %s0 = inlined_call_operand.vmem [shape: f32[128,16], index: 0, kind: input, shape index: {}]
  %s1 = inlined_call_operand.vmem [shape: bf16[16,32], index: 1, kind: input, shape index: {}]
  %s2 = inlined_call_operand.vmem [shape: f32[1,32], index: 2, kind: input, shape index: {}]
  %s3 = inlined_call_operand.vmem [shape: bf16[32,32], index: 3, kind: input, shape index: {}]
  %s4 = inlined_call_operand.vmem [shape: f32[1,32], index: 4, kind: input, shape index: {}]
  %s5 = inlined_call_operand.vmem [shape: f32[1,32], index: 5, kind: input, shape index: {}]
  %s6 = inlined_call_operand.vmem [shape: f32[1,32], index: 6, kind: input, shape index: {}]
  %s7 = inlined_call_operand.vmem [shape: bf16[32,8], index: 7, kind: input, shape index: {}]
  %s8 = inlined_call_operand.vmem [shape: f32[1,8], index: 8, kind: input, shape index: {}]
  %s9 = inlined_call_operand.vmem [shape: bf16[32,32], index: 9, kind: input, shape index: {}]
  %s10 = inlined_call_operand.vmem [shape: f32[1,32], index: 10, kind: input, shape index: {}]
  %s11 = inlined_call_operand.vmem [shape: f32[128,32], index: 11, kind: output, shape index: {0}]
  %s12 = inlined_call_operand.vmem [shape: bf16[128,32], index: 12, kind: output, shape index: {1}]
  %s13 = inlined_call_operand.vmem [shape: f32[128,8], index: 13, kind: output, shape index: {2}]
  %14 = xla_tuple %s11, %s12, %s13
  %s15 = sld [smem:[#allocation0]]
  $region70: #{gravnet_block.3} parent=0
    _
  %s17 = ssub.s32 1, %s15
  %s18 = scalar_select 0, %s17, %s15
  // Predicated region
  $region2: #{gravnet_block.3} parent=0 // pred_check
    _
  $region3: #{gravnet_block.3} parent=0 // pred_check_branch
    %20 = sbr.rel (0) target = $region5
  $region4: #{gravnet_block.3} parent=0 // pred_region
    _
  $region5: #{gravnet_block.3} parent=0 // pred_fallthru
    _
  // Predicated region
  $region6: #{gravnet_block.3} parent=0 // pred_check
    _
  $region7: #{gravnet_block.3} parent=0 // pred_check_branch
    %22 = sbr.rel (0) target = $region9
  $region8: #{gravnet_block.3} parent=0 // pred_region
    _
  $region9: #{gravnet_block.3} parent=0 // pred_fallthru
    _
  // Predicated region
  $region10: #{gravnet_block.3} parent=0 // pred_check
    _
  $region11: #{gravnet_block.3} parent=0 // pred_check_branch
    %24 = sbr.rel (0) target = $region13
  $region12: #{gravnet_block.3} parent=0 // pred_region
    _
  $region13: #{gravnet_block.3} parent=0 // pred_fallthru
    _
  // Predicated region
  $region14: #{gravnet_block.3} parent=0 // pred_check
    _
  $region15: #{gravnet_block.3} parent=0 // pred_check_branch
    %26 = sbr.rel (0) target = $region17
  $region16: #{gravnet_block.3} parent=0 // pred_region
    _
  $region17: #{gravnet_block.3} parent=0 // pred_fallthru
    _
  // Predicated region
  $region18: #{gravnet_block.3} parent=0 // pred_check
    _
  $region19: #{gravnet_block.3} parent=0 // pred_check_branch
    %28 = sbr.rel (0) target = $region21
  $region20: #{gravnet_block.3} parent=0 // pred_region
    _
  $region21: #{gravnet_block.3} parent=0 // pred_fallthru
    _
  // Predicated region
  $region22: #{gravnet_block.3} parent=0 // pred_check
    _
  $region23: #{gravnet_block.3} parent=0 // pred_check_branch
    %30 = sbr.rel (0) target = $region25
  $region24: #{gravnet_block.3} parent=0 // pred_region
    _
  $region25: #{gravnet_block.3} parent=0 // pred_fallthru
    _
  // Predicated region
  $region26: #{gravnet_block.3} parent=0 // pred_check
    _
  $region27: #{gravnet_block.3} parent=0 // pred_check_branch
    %32 = sbr.rel (0) target = $region29
  $region28: #{gravnet_block.3} parent=0 // pred_region
    _
  $region29: #{gravnet_block.3} parent=0 // pred_fallthru
    _
  // Predicated region
  $region30: #{gravnet_block.3} parent=0 // pred_check
    _
  $region31: #{gravnet_block.3} parent=0 // pred_check_branch
    %34 = sbr.rel (0) target = $region33
  $region32: #{gravnet_block.3} parent=0 // pred_region
    _
  $region33: #{gravnet_block.3} parent=0 // pred_fallthru
    _
  // Predicated region
  $region34: #{gravnet_block.3} parent=0 // pred_check
    _
  $region35: #{gravnet_block.3} parent=0 // pred_check_branch
    %36 = sbr.rel (0) target = $region37
  $region36: #{gravnet_block.3} parent=0 // pred_region
    _
  $region37: #{gravnet_block.3} parent=0 // pred_fallthru
    _
  // Predicated region
  $region38: #{gravnet_block.3} parent=0 // pred_check
    _
  $region39: #{gravnet_block.3} parent=0 // pred_check_branch
    %38 = sbr.rel (0) target = $region41
  $region40: #{gravnet_block.3} parent=0 // pred_region
    _
  $region41: #{gravnet_block.3} parent=0 // pred_fallthru
    _
  // Predicated region
  $region42: #{gravnet_block.3} parent=0 // pred_check
    _
  $region43: #{gravnet_block.3} parent=0 // pred_check_branch
    %40 = sbr.rel (0) target = $region45
  $region44: #{gravnet_block.3} parent=0 // pred_region
    _
  $region45: #{gravnet_block.3} parent=0 // pred_fallthru
    _
  %v42 = vld [vmem:[%s0] sm:$0xff]
  %v43 = vld [vmem:[%s0 + $0x8] sm:$0xff]
  %v44 = vld [vmem:[%s0 + $0x10] sm:$0xff]
  %v45 = vld [vmem:[%s0 + $0x18] sm:$0xff]
  %v46 = vld [vmem:[%s0 + $0x20] sm:$0xff]
  %v47 = vld [vmem:[%s0 + $0x28] sm:$0xff]
  %v48 = vld [vmem:[%s0 + $0x30] sm:$0xff]
  %v49 = vld [vmem:[%s0 + $0x38] sm:$0xff]
  %v50 = vld [vmem:[%s0 + $0x40] sm:$0xff]
  %v51 = vld [vmem:[%s0 + $0x48] sm:$0xff]
  %v52 = vld [vmem:[%s0 + $0x50] sm:$0xff]
  %v53 = vld [vmem:[%s0 + $0x58] sm:$0xff]
  %v54 = vld [vmem:[%s0 + $0x60] sm:$0xff]
  %v55 = vld [vmem:[%s0 + $0x68] sm:$0xff]
  %v56 = vld [vmem:[%s0 + $0x70] sm:$0xff]
  %v57 = vld [vmem:[%s0 + $0x78] sm:$0xff]
  %v58 = vld [vmem:[%s1] sm:$0xf]
  %v59 = vld [vmem:[%s1 + $0x4] sm:$0xf]
  %v60 = vpack.c.bf16 %v43, %v42
  %v61 = vpack.c.bf16 %v45, %v44
  %v62 = vpack.c.bf16 %v47, %v46
  %v63 = vpack.c.bf16 %v49, %v48
  %v64 = vpack.c.bf16 %v51, %v50
  %v65 = vpack.c.bf16 %v53, %v52
  %v66 = vpack.c.bf16 %v55, %v54
  %v67 = vpack.c.bf16 %v57, %v56
  %v68 = vld [vmem:[%s2] sm:$0x1]
  %v70 = vlaneseq
  %v71 = vshrl.u32 %v70, 7
  %v72 = vsub.s32 0, %v71
  %v73 = vrot.slane %v68, %v72
  %v77 = vunpack.c.l.b16 %v58
  %v78 = vunpack.c.l.b16 %v59
  %v79 = vpack.c.b16 %v78, %v77
  %vm81 = vcmask 130048
  %v83 = vsel %vm81, %v60, 0
  %v86 = vsel %vm81, %v61, 0
  %v89 = vsel %vm81, %v62, 0
  %v92 = vsel %vm81, %v63, 0
  %v95 = vsel %vm81, %v64, 0
  %v98 = vsel %vm81, %v65, 0
  %v101 = vsel %vm81, %v66, 0
  %v104 = vsel %vm81, %v67, 0
  %106 = vmatprep.subr.bf16.mxu0 0
  %107 = vmatpush1.bf16.msra.mxu0 %v79
  %108 = vmatprep.subr.bf16.mxu0 0
  %109 = vmatpush1.bf16.msra.mxu0 0
  %110 = vmatprep.subr.bf16.mxu0 0
  %111 = vmatpush1.bf16.msra.mxu0 0
  %112 = vmatprep.subr.bf16.mxu0 0
  %113 = vmatpush1.bf16.msra.mxu0 0
  %114 = vmatprep.subr.bf16.mxu0 0
  %115 = vmatpush1.bf16.msra.mxu0 0
  %116 = vmatprep.subr.bf16.mxu0 0
  %117 = vmatpush1.bf16.msra.mxu0 0
  %118 = vmatprep.subr.bf16.mxu0 0
  %119 = vmatpush1.bf16.msra.mxu0 0
  %120 = vmatprep.subr.bf16.mxu0 0
  %121 = vmatpush1.bf16.msra.mxu0 0
  %122 = vmatprep.subr.bf16.mxu0 0
  %123 = vmatpush1.bf16.msra.mxu0 0
  %124 = vmatprep.subr.bf16.mxu0 0
  %125 = vmatpush1.bf16.msra.mxu0 0
  %126 = vmatprep.subr.bf16.mxu0 0
  %127 = vmatpush1.bf16.msra.mxu0 0
  %128 = vmatprep.subr.bf16.mxu0 0
  %129 = vmatpush1.bf16.msra.mxu0 0
  %130 = vmatprep.subr.bf16.mxu0 0
  %131 = vmatpush1.bf16.msra.mxu0 0
  %132 = vmatprep.subr.bf16.mxu0 0
  %133 = vmatpush1.bf16.msra.mxu0 0
  %134 = vmatprep.subr.bf16.mxu0 0
  %135 = vmatpush1.bf16.msra.mxu0 0
  %136 = vmatprep.subr.bf16.mxu0 0
  %137 = vmatpush1.bf16.msra.mxu0 0
  %138 = vmatprep.mubr.bf16.mxu0 0
  %139 = vmatmul.mubr.bf16.gmra.mrb[0].mxu0 %v83
  %v140 = vpop.f32.mrb[0].mxu0
  %v141 = vadd.f32 %v73, %v140
  %v142 = vpop.f32.mrb[0].mxu0
  %v143 = vpop.f32.mrb[0].mxu0
  %v144 = vadd.f32 %v73, %v143
  %v145 = vpop.f32.mrb[0].mxu0
  %146 = vmatprep.mubr.bf16.mxu0 0
  %147 = vmatmul.mubr.bf16.gmra.mrb[0].mxu0 %v86
  %v148 = vpop.f32.mrb[0].mxu0
  %v149 = vadd.f32 %v73, %v148
  %v150 = vpop.f32.mrb[0].mxu0
  %v151 = vpop.f32.mrb[0].mxu0
  %v152 = vadd.f32 %v73, %v151
  %v153 = vpop.f32.mrb[0].mxu0
  %154 = vmatprep.mubr.bf16.mxu0 0
  %155 = vmatmul.mubr.bf16.gmra.mrb[0].mxu0 %v89
  %v156 = vpop.f32.mrb[0].mxu0
  %v157 = vadd.f32 %v73, %v156
  %v158 = vpop.f32.mrb[0].mxu0
  %v159 = vpop.f32.mrb[0].mxu0
  %v160 = vadd.f32 %v73, %v159
  %v161 = vpop.f32.mrb[0].mxu0
  %162 = vmatprep.mubr.bf16.mxu0 0
  %163 = vmatmul.mubr.bf16.gmra.mrb[0].mxu0 %v92
  %v164 = vpop.f32.mrb[0].mxu0
  %v165 = vadd.f32 %v73, %v164
  %v166 = vpop.f32.mrb[0].mxu0
  %v167 = vpop.f32.mrb[0].mxu0
  %v168 = vadd.f32 %v73, %v167
  %v169 = vpop.f32.mrb[0].mxu0
  %170 = vmatprep.mubr.bf16.mxu0 0
  %171 = vmatmul.mubr.bf16.gmra.mrb[0].mxu0 %v95
  %v172 = vpop.f32.mrb[0].mxu0
  %v173 = vadd.f32 %v73, %v172
  %v174 = vpop.f32.mrb[0].mxu0
  %v175 = vpop.f32.mrb[0].mxu0
  %v176 = vadd.f32 %v73, %v175
  %v177 = vpop.f32.mrb[0].mxu0
  %178 = vmatprep.mubr.bf16.mxu0 0
  %179 = vmatmul.mubr.bf16.gmra.mrb[0].mxu0 %v98
  %v180 = vpop.f32.mrb[0].mxu0
  %v181 = vadd.f32 %v73, %v180
  %v182 = vpop.f32.mrb[0].mxu0
  %v183 = vpop.f32.mrb[0].mxu0
  %v184 = vadd.f32 %v73, %v183
  %v185 = vpop.f32.mrb[0].mxu0
  %186 = vmatprep.mubr.bf16.mxu0 0
  %187 = vmatmul.mubr.bf16.gmra.mrb[0].mxu0 %v101
  %v188 = vpop.f32.mrb[0].mxu0
  %v189 = vadd.f32 %v73, %v188
  %v190 = vpop.f32.mrb[0].mxu0
  %v191 = vpop.f32.mrb[0].mxu0
  %v192 = vadd.f32 %v73, %v191
  %v193 = vpop.f32.mrb[0].mxu0
  %194 = vmatprep.mubr.bf16.mxu0 0
  %195 = vmatmul.mubr.bf16.gmra.mrb[0].mxu0 %v104
  %v196 = vpop.f32.mrb[0].mxu0
  %v197 = vadd.f32 %v73, %v196
  %v198 = vpop.f32.mrb[0].mxu0
  %v199 = vpop.f32.mrb[0].mxu0
  %v200 = vadd.f32 %v73, %v199
  %v201 = vpop.f32.mrb[0].mxu0
  %202 = vdwg.mxu0
  %vm203 = vcmp.gt.f32.partialorder %v141, 0.0
  %vm204 = vcmp.gt.f32.partialorder %v144, 0.0
  %vm205 = vcmp.gt.f32.partialorder %v149, 0.0
  %vm206 = vcmp.gt.f32.partialorder %v152, 0.0
  %vm207 = vcmp.gt.f32.partialorder %v157, 0.0
  %vm208 = vcmp.gt.f32.partialorder %v160, 0.0
  %vm209 = vcmp.gt.f32.partialorder %v165, 0.0
  %vm210 = vcmp.gt.f32.partialorder %v168, 0.0
  %vm211 = vcmp.gt.f32.partialorder %v173, 0.0
  %vm212 = vcmp.gt.f32.partialorder %v176, 0.0
  %vm213 = vcmp.gt.f32.partialorder %v181, 0.0
  %vm214 = vcmp.gt.f32.partialorder %v184, 0.0
  %vm215 = vcmp.gt.f32.partialorder %v189, 0.0
  %vm216 = vcmp.gt.f32.partialorder %v192, 0.0
  %vm217 = vcmp.gt.f32.partialorder %v197, 0.0
  %vm218 = vcmp.gt.f32.partialorder %v200, 0.0
  %v219 = vmin.f32 %v141, 0.0
  %v220 = vmin.f32 %v144, 0.0
  %v221 = vmin.f32 %v149, 0.0
  %v222 = vmin.f32 %v152, 0.0
  %v223 = vmin.f32 %v157, 0.0
  %v224 = vmin.f32 %v160, 0.0
  %v225 = vmin.f32 %v165, 0.0
  %v226 = vmin.f32 %v168, 0.0
  %v227 = vmin.f32 %v173, 0.0
  %v228 = vmin.f32 %v176, 0.0
  %v229 = vmin.f32 %v181, 0.0
  %v230 = vmin.f32 %v184, 0.0
  %v231 = vmin.f32 %v189, 0.0
  %v232 = vmin.f32 %v192, 0.0
  %v233 = vmin.f32 %v197, 0.0
  %v234 = vmin.f32 %v200, 0.0
  %v235 = vmul.f32 %v219, 1.442695
  %v236 = vpow.pop %v235
  %v237 = vmul.f32 %v220, 1.442695
  %v238 = vpow.pop %v237
  %v239 = vmul.f32 %v221, 1.442695
  %v240 = vpow.pop %v239
  %v241 = vmul.f32 %v222, 1.442695
  %v242 = vpow.pop %v241
  %v243 = vmul.f32 %v223, 1.442695
  %v244 = vpow.pop %v243
  %v245 = vmul.f32 %v224, 1.442695
  %v246 = vpow.pop %v245
  %v247 = vmul.f32 %v225, 1.442695
  %v248 = vpow.pop %v247
  %v249 = vmul.f32 %v226, 1.442695
  %v250 = vpow.pop %v249
  %v251 = vmul.f32 %v227, 1.442695
  %v252 = vpow.pop %v251
  %v253 = vmul.f32 %v228, 1.442695
  %v254 = vpow.pop %v253
  %v255 = vmul.f32 %v229, 1.442695
  %v256 = vpow.pop %v255
  %v257 = vmul.f32 %v230, 1.442695
  %v258 = vpow.pop %v257
  %v259 = vmul.f32 %v231, 1.442695
  %v260 = vpow.pop %v259
  %v261 = vmul.f32 %v232, 1.442695
  %v262 = vpow.pop %v261
  %v263 = vmul.f32 %v233, 1.442695
  %v264 = vpow.pop %v263
  %v265 = vmul.f32 %v234, 1.442695
  %v266 = vpow.pop %v265
  %v267 = vsub.f32 %v236, 1.0
  %v268 = vsub.f32 %v238, 1.0
  %v269 = vsub.f32 %v240, 1.0
  %v270 = vsub.f32 %v242, 1.0
  %v271 = vsub.f32 %v244, 1.0
  %v272 = vsub.f32 %v246, 1.0
  %v273 = vsub.f32 %v248, 1.0
  %v274 = vsub.f32 %v250, 1.0
  %v275 = vsub.f32 %v252, 1.0
  %v276 = vsub.f32 %v254, 1.0
  %v277 = vsub.f32 %v256, 1.0
  %v278 = vsub.f32 %v258, 1.0
  %v279 = vsub.f32 %v260, 1.0
  %v280 = vsub.f32 %v262, 1.0
  %v281 = vsub.f32 %v264, 1.0
  %v282 = vsub.f32 %v266, 1.0
  %v283 = vsel %vm203, %v141, %v267
  %v284 = vsel %vm204, %v144, %v268
  %v285 = vsel %vm205, %v149, %v269
  %v286 = vsel %vm206, %v152, %v270
  %v287 = vsel %vm207, %v157, %v271
  %v288 = vsel %vm208, %v160, %v272
  %v289 = vsel %vm209, %v165, %v273
  %v290 = vsel %vm210, %v168, %v274
  %v291 = vsel %vm211, %v173, %v275
  %v292 = vsel %vm212, %v176, %v276
  %v293 = vsel %vm213, %v181, %v277
  %v294 = vsel %vm214, %v184, %v278
  %v295 = vsel %vm215, %v189, %v279
  %v296 = vsel %vm216, %v192, %v280
  %v297 = vsel %vm217, %v197, %v281
  %v298 = vsel %vm218, %v200, %v282
  %v299 = vld [vmem:[%s3] sm:$0xf]
  %v300 = vld [vmem:[%s3 + $0x4] sm:$0xf]
  %v301 = vld [vmem:[%s3 + $0x8] sm:$0xf]
  %v302 = vld [vmem:[%s3 + $0xc] sm:$0xf]
  %v303 = vpack.c.bf16 %v284, %v283
  %v304 = vpack.c.bf16 %v286, %v285
  %v305 = vpack.c.bf16 %v288, %v287
  %v306 = vpack.c.bf16 %v290, %v289
  %v307 = vpack.c.bf16 %v292, %v291
  %v308 = vpack.c.bf16 %v294, %v293
  %v309 = vpack.c.bf16 %v296, %v295
  %v310 = vpack.c.bf16 %v298, %v297
  %v311 = vld [vmem:[%s4] sm:$0x1]
  %v313 = vlaneseq
  %v314 = vshrl.u32 %v313, 7
  %v315 = vsub.s32 0, %v314
  %v316 = vrot.slane %v311, %v315
  %v322 = vunpack.c.l.b16 %v299
  %v323 = vunpack.c.l.b16 %v300
  %v324 = vunpack.c.l.b16 %v301
  %v325 = vunpack.c.l.b16 %v302
  %v326 = vpack.c.b16 %v323, %v322
  %v327 = vpack.c.b16 %v325, %v324
  %vm330 = vcmask 261120
  %v332 = vsel %vm330, %v303, 0
  %v335 = vsel %vm330, %v304, 0
  %v338 = vsel %vm330, %v305, 0
  %v341 = vsel %vm330, %v306, 0
  %v344 = vsel %vm330, %v307, 0
  %v347 = vsel %vm330, %v308, 0
  %v350 = vsel %vm330, %v309, 0
  %v353 = vsel %vm330, %v310, 0
  %355 = vmatprep.subr.bf16.mxu0 0
  %356 = vmatpush1.bf16.msra.mxu0 %v326
  %357 = vmatprep.subr.bf16.mxu0 0
  %358 = vmatpush1.bf16.msra.mxu0 %v327
  %359 = vmatprep.subr.bf16.mxu0 0
  %360 = vmatpush1.bf16.msra.mxu0 0
  %361 = vmatprep.subr.bf16.mxu0 0
  %362 = vmatpush1.bf16.msra.mxu0 0
  %363 = vmatprep.subr.bf16.mxu0 0
  %364 = vmatpush1.bf16.msra.mxu0 0
  %365 = vmatprep.subr.bf16.mxu0 0
  %366 = vmatpush1.bf16.msra.mxu0 0
  %367 = vmatprep.subr.bf16.mxu0 0
  %368 = vmatpush1.bf16.msra.mxu0 0
  %369 = vmatprep.subr.bf16.mxu0 0
  %370 = vmatpush1.bf16.msra.mxu0 0
  %371 = vmatprep.subr.bf16.mxu0 0
  %372 = vmatpush1.bf16.msra.mxu0 0
  %373 = vmatprep.subr.bf16.mxu0 0
  %374 = vmatpush1.bf16.msra.mxu0 0
  %375 = vmatprep.subr.bf16.mxu0 0
  %376 = vmatpush1.bf16.msra.mxu0 0
  %377 = vmatprep.subr.bf16.mxu0 0
  %378 = vmatpush1.bf16.msra.mxu0 0
  %379 = vmatprep.subr.bf16.mxu0 0
  %380 = vmatpush1.bf16.msra.mxu0 0
  %381 = vmatprep.subr.bf16.mxu0 0
  %382 = vmatpush1.bf16.msra.mxu0 0
  %383 = vmatprep.subr.bf16.mxu0 0
  %384 = vmatpush1.bf16.msra.mxu0 0
  %385 = vmatprep.subr.bf16.mxu0 0
  %386 = vmatpush1.bf16.msra.mxu0 0
  %387 = vmatprep.mubr.bf16.mxu0 0
  %388 = vmatmul.mubr.bf16.gmra.mrb[0].mxu0 %v332
  %v389 = vpop.f32.mrb[0].mxu0
  %v390 = vadd.f32 %v316, %v389
  %v391 = vpop.f32.mrb[0].mxu0
  %v392 = vpop.f32.mrb[0].mxu0
  %v393 = vadd.f32 %v316, %v392
  %v394 = vpop.f32.mrb[0].mxu0
  %395 = vmatprep.mubr.bf16.mxu0 0
  %396 = vmatmul.mubr.bf16.gmra.mrb[0].mxu0 %v335
  %v397 = vpop.f32.mrb[0].mxu0
  %v398 = vadd.f32 %v316, %v397
  %v399 = vpop.f32.mrb[0].mxu0
  %v400 = vpop.f32.mrb[0].mxu0
  %v401 = vadd.f32 %v316, %v400
  %v402 = vpop.f32.mrb[0].mxu0
  %403 = vmatprep.mubr.bf16.mxu0 0
  %404 = vmatmul.mubr.bf16.gmra.mrb[0].mxu0 %v338
  %v405 = vpop.f32.mrb[0].mxu0
  %v406 = vadd.f32 %v316, %v405
  %v407 = vpop.f32.mrb[0].mxu0
  %v408 = vpop.f32.mrb[0].mxu0
  %v409 = vadd.f32 %v316, %v408
  %v410 = vpop.f32.mrb[0].mxu0
  %411 = vmatprep.mubr.bf16.mxu0 0
  %412 = vmatmul.mubr.bf16.gmra.mrb[0].mxu0 %v341
  %v413 = vpop.f32.mrb[0].mxu0
  %v414 = vadd.f32 %v316, %v413
  %v415 = vpop.f32.mrb[0].mxu0
  %v416 = vpop.f32.mrb[0].mxu0
  %v417 = vadd.f32 %v316, %v416
  %v418 = vpop.f32.mrb[0].mxu0
  %419 = vmatprep.mubr.bf16.mxu0 0
  %420 = vmatmul.mubr.bf16.gmra.mrb[0].mxu0 %v344
  %v421 = vpop.f32.mrb[0].mxu0
  %v422 = vadd.f32 %v316, %v421
  %v423 = vpop.f32.mrb[0].mxu0
  %v424 = vpop.f32.mrb[0].mxu0
  %v425 = vadd.f32 %v316, %v424
  %v426 = vpop.f32.mrb[0].mxu0
  %427 = vmatprep.mubr.bf16.mxu0 0
  %428 = vmatmul.mubr.bf16.gmra.mrb[0].mxu0 %v347
  %v429 = vpop.f32.mrb[0].mxu0
  %v430 = vadd.f32 %v316, %v429
  %v431 = vpop.f32.mrb[0].mxu0
  %v432 = vpop.f32.mrb[0].mxu0
  %v433 = vadd.f32 %v316, %v432
  %v434 = vpop.f32.mrb[0].mxu0
  %435 = vmatprep.mubr.bf16.mxu0 0
  %436 = vmatmul.mubr.bf16.gmra.mrb[0].mxu0 %v350
  %v437 = vpop.f32.mrb[0].mxu0
  %v438 = vadd.f32 %v316, %v437
  %v439 = vpop.f32.mrb[0].mxu0
  %v440 = vpop.f32.mrb[0].mxu0
  %v441 = vadd.f32 %v316, %v440
  %v442 = vpop.f32.mrb[0].mxu0
  %443 = vmatprep.mubr.bf16.mxu0 0
  %444 = vmatmul.mubr.bf16.gmra.mrb[0].mxu0 %v353
  %v445 = vpop.f32.mrb[0].mxu0
  %v446 = vadd.f32 %v316, %v445
  %v447 = vpop.f32.mrb[0].mxu0
  %v448 = vpop.f32.mrb[0].mxu0
  %v449 = vadd.f32 %v316, %v448
  %v450 = vpop.f32.mrb[0].mxu0
  %451 = vdwg.mxu0
  %vm452 = vcmp.gt.f32.partialorder %v390, 0.0
  %vm453 = vcmp.gt.f32.partialorder %v393, 0.0
  %vm454 = vcmp.gt.f32.partialorder %v398, 0.0
  %vm455 = vcmp.gt.f32.partialorder %v401, 0.0
  %vm456 = vcmp.gt.f32.partialorder %v406, 0.0
  %vm457 = vcmp.gt.f32.partialorder %v409, 0.0
  %vm458 = vcmp.gt.f32.partialorder %v414, 0.0
  %vm459 = vcmp.gt.f32.partialorder %v417, 0.0
  %vm460 = vcmp.gt.f32.partialorder %v422, 0.0
  %vm461 = vcmp.gt.f32.partialorder %v425, 0.0
  %vm462 = vcmp.gt.f32.partialorder %v430, 0.0
  %vm463 = vcmp.gt.f32.partialorder %v433, 0.0
  %vm464 = vcmp.gt.f32.partialorder %v438, 0.0
  %vm465 = vcmp.gt.f32.partialorder %v441, 0.0
  %vm466 = vcmp.gt.f32.partialorder %v446, 0.0
  %vm467 = vcmp.gt.f32.partialorder %v449, 0.0
  %v468 = vmin.f32 %v390, 0.0
  %v469 = vmin.f32 %v393, 0.0
  %v470 = vmin.f32 %v398, 0.0
  %v471 = vmin.f32 %v401, 0.0
  %v472 = vmin.f32 %v406, 0.0
  %v473 = vmin.f32 %v409, 0.0
  %v474 = vmin.f32 %v414, 0.0
  %v475 = vmin.f32 %v417, 0.0
  %v476 = vmin.f32 %v422, 0.0
  %v477 = vmin.f32 %v425, 0.0
  %v478 = vmin.f32 %v430, 0.0
  %v479 = vmin.f32 %v433, 0.0
  %v480 = vmin.f32 %v438, 0.0
  %v481 = vmin.f32 %v441, 0.0
  %v482 = vmin.f32 %v446, 0.0
  %v483 = vmin.f32 %v449, 0.0
  %v484 = vmul.f32 %v468, 1.442695
  %v485 = vpow.pop %v484
  %v486 = vmul.f32 %v469, 1.442695
  %v487 = vpow.pop %v486
  %v488 = vmul.f32 %v470, 1.442695
  %v489 = vpow.pop %v488
  %v490 = vmul.f32 %v471, 1.442695
  %v491 = vpow.pop %v490
  %v492 = vmul.f32 %v472, 1.442695
  %v493 = vpow.pop %v492
  %v494 = vmul.f32 %v473, 1.442695
  %v495 = vpow.pop %v494
  %v496 = vmul.f32 %v474, 1.442695
  %v497 = vpow.pop %v496
  %v498 = vmul.f32 %v475, 1.442695
  %v499 = vpow.pop %v498
  %v500 = vmul.f32 %v476, 1.442695
  %v501 = vpow.pop %v500
  %v502 = vmul.f32 %v477, 1.442695
  %v503 = vpow.pop %v502
  %v504 = vmul.f32 %v478, 1.442695
  %v505 = vpow.pop %v504
  %v506 = vmul.f32 %v479, 1.442695
  %v507 = vpow.pop %v506
  %v508 = vmul.f32 %v480, 1.442695
  %v509 = vpow.pop %v508
  %v510 = vmul.f32 %v481, 1.442695
  %v511 = vpow.pop %v510
  %v512 = vmul.f32 %v482, 1.442695
  %v513 = vpow.pop %v512
  %v514 = vmul.f32 %v483, 1.442695
  %v515 = vpow.pop %v514
  %v516 = vsub.f32 %v485, 1.0
  %v517 = vsub.f32 %v487, 1.0
  %v518 = vsub.f32 %v489, 1.0
  %v519 = vsub.f32 %v491, 1.0
  %v520 = vsub.f32 %v493, 1.0
  %v521 = vsub.f32 %v495, 1.0
  %v522 = vsub.f32 %v497, 1.0
  %v523 = vsub.f32 %v499, 1.0
  %v524 = vsub.f32 %v501, 1.0
  %v525 = vsub.f32 %v503, 1.0
  %v526 = vsub.f32 %v505, 1.0
  %v527 = vsub.f32 %v507, 1.0
  %v528 = vsub.f32 %v509, 1.0
  %v529 = vsub.f32 %v511, 1.0
  %v530 = vsub.f32 %v513, 1.0
  %v531 = vsub.f32 %v515, 1.0
  %v532 = vsel %vm452, %v390, %v516
  %v533 = vsel %vm453, %v393, %v517
  %v534 = vsel %vm454, %v398, %v518
  %v535 = vsel %vm455, %v401, %v519
  %v536 = vsel %vm456, %v406, %v520
  %v537 = vsel %vm457, %v409, %v521
  %v538 = vsel %vm458, %v414, %v522
  %v539 = vsel %vm459, %v417, %v523
  %v540 = vsel %vm460, %v422, %v524
  %v541 = vsel %vm461, %v425, %v525
  %v542 = vsel %vm462, %v430, %v526
  %v543 = vsel %vm463, %v433, %v527
  %v544 = vsel %vm464, %v438, %v528
  %v545 = vsel %vm465, %v441, %v529
  %v546 = vsel %vm466, %v446, %v530
  %v547 = vsel %vm467, %v449, %v531
  %v548 = vld [vmem:[%s5] sm:$0x1]
  %v549 = vld [vmem:[%s6] sm:$0x1]
  %v550 = vsel %vm330, %v532, 0.0
  %v551 = vsel %vm330, %v533, 0.0
  %v552 = vadd.f32 %v550, %v551
  %v553 = vsel %vm330, %v534, 0.0
  %v554 = vadd.f32 %v552, %v553
  %v555 = vsel %vm330, %v535, 0.0
  %v556 = vadd.f32 %v554, %v555
  %v557 = vsel %vm330, %v536, 0.0
  %v558 = vadd.f32 %v556, %v557
  %v559 = vsel %vm330, %v537, 0.0
  %v560 = vadd.f32 %v558, %v559
  %v561 = vsel %vm330, %v538, 0.0
  %v562 = vadd.f32 %v560, %v561
  %v563 = vsel %vm330, %v539, 0.0
  %v564 = vadd.f32 %v562, %v563
  %v565 = vsel %vm330, %v540, 0.0
  %v566 = vadd.f32 %v564, %v565
  %v567 = vsel %vm330, %v541, 0.0
  %v568 = vadd.f32 %v566, %v567
  %v569 = vsel %vm330, %v542, 0.0
  %v570 = vadd.f32 %v568, %v569
  %v571 = vsel %vm330, %v543, 0.0
  %v572 = vadd.f32 %v570, %v571
  %v573 = vsel %vm330, %v544, 0.0
  %v574 = vadd.f32 %v572, %v573
  %v575 = vsel %vm330, %v545, 0.0
  %v576 = vadd.f32 %v574, %v575
  %v577 = vsel %vm330, %v546, 0.0
  %v578 = vadd.f32 %v576, %v577
  %v579 = vsel %vm330, %v547, 0.0
  %v580 = vadd.f32 %v578, %v579
  %v581 = vrot.slane %v580, 4
  %v582 = vadd.f32 %v580, %v581
  %v583 = vrot.slane %v582, 2
  %v584 = vadd.f32 %v582, %v583
  %v585 = vrot.slane %v584, 1
  %v586 = vadd.f32 %v584, %v585
  %v587 = vrcp.pop 128.0
  %v588 = vmul.f32 %v586, %v587
  %v589 = vsub.f32 %v532, %v588
  %v590 = vsub.f32 %v533, %v588
  %v591 = vsub.f32 %v534, %v588
  %v592 = vsub.f32 %v535, %v588
  %v593 = vsub.f32 %v536, %v588
  %v594 = vsub.f32 %v537, %v588
  %v595 = vsub.f32 %v538, %v588
  %v596 = vsub.f32 %v539, %v588
  %v597 = vsub.f32 %v540, %v588
  %v598 = vsub.f32 %v541, %v588
  %v599 = vsub.f32 %v542, %v588
  %v600 = vsub.f32 %v543, %v588
  %v601 = vsub.f32 %v544, %v588
  %v602 = vsub.f32 %v545, %v588
  %v603 = vsub.f32 %v546, %v588
  %v604 = vsub.f32 %v547, %v588
  %v605 = vmul.f32 %v589, %v589
  %v606 = vmul.f32 %v590, %v590
  %v607 = vmul.f32 %v591, %v591
  %v608 = vmul.f32 %v592, %v592
  %v609 = vmul.f32 %v593, %v593
  %v610 = vmul.f32 %v594, %v594
  %v611 = vmul.f32 %v595, %v595
  %v612 = vmul.f32 %v596, %v596
  %v613 = vmul.f32 %v597, %v597
  %v614 = vmul.f32 %v598, %v598
  %v615 = vmul.f32 %v599, %v599
  %v616 = vmul.f32 %v600, %v600
  %v617 = vmul.f32 %v601, %v601
  %v618 = vmul.f32 %v602, %v602
  %v619 = vmul.f32 %v603, %v603
  %v620 = vmul.f32 %v604, %v604
  %v621 = vsel %vm330, %v605, 0.0
  %v622 = vsel %vm330, %v606, 0.0
  %v623 = vadd.f32 %v621, %v622
  %v624 = vsel %vm330, %v607, 0.0
  %v625 = vadd.f32 %v623, %v624
  %v626 = vsel %vm330, %v608, 0.0
  %v627 = vadd.f32 %v625, %v626
  %v628 = vsel %vm330, %v609, 0.0
  %v629 = vadd.f32 %v627, %v628
  %v630 = vsel %vm330, %v610, 0.0
  %v631 = vadd.f32 %v629, %v630
  %v632 = vsel %vm330, %v611, 0.0
  %v633 = vadd.f32 %v631, %v632
  %v634 = vsel %vm330, %v612, 0.0
  %v635 = vadd.f32 %v633, %v634
  %v636 = vsel %vm330, %v613, 0.0
  %v637 = vadd.f32 %v635, %v636
  %v638 = vsel %vm330, %v614, 0.0
  %v639 = vadd.f32 %v637, %v638
  %v640 = vsel %vm330, %v615, 0.0
  %v641 = vadd.f32 %v639, %v640
  %v642 = vsel %vm330, %v616, 0.0
  %v643 = vadd.f32 %v641, %v642
  %v644 = vsel %vm330, %v617, 0.0
  %v645 = vadd.f32 %v643, %v644
  %v646 = vsel %vm330, %v618, 0.0
  %v647 = vadd.f32 %v645, %v646
  %v648 = vsel %vm330, %v619, 0.0
  %v649 = vadd.f32 %v647, %v648
  %v650 = vsel %vm330, %v620, 0.0
  %v651 = vadd.f32 %v649, %v650
  %v652 = vrot.slane %v651, 4
  %v653 = vadd.f32 %v651, %v652
  %v654 = vrot.slane %v653, 2
  %v655 = vadd.f32 %v653, %v654
  %v656 = vrot.slane %v655, 1
  %v657 = vadd.f32 %v655, %v656
  %v658 = vmul.f32 %v657, %v587
  %v659 = vadd.f32 %v658, 1e-05
  %v660 = vrsqrt.pop %v659
  %v661 = vmul.f32 %v589, %v660
  %v662 = vmul.f32 %v590, %v660
  %v663 = vmul.f32 %v591, %v660
  %v664 = vmul.f32 %v592, %v660
  %v665 = vmul.f32 %v593, %v660
  %v666 = vmul.f32 %v594, %v660
  %v667 = vmul.f32 %v595, %v660
  %v668 = vmul.f32 %v596, %v660
  %v669 = vmul.f32 %v597, %v660
  %v670 = vmul.f32 %v598, %v660
  %v671 = vmul.f32 %v599, %v660
  %v672 = vmul.f32 %v600, %v660
  %v673 = vmul.f32 %v601, %v660
  %v674 = vmul.f32 %v602, %v660
  %v675 = vmul.f32 %v603, %v660
  %v676 = vmul.f32 %v604, %v660
  %v678 = vlaneseq
  %v679 = vshrl.u32 %v678, 7
  %v680 = vsub.s32 0, %v679
  %v681 = vrot.slane %v548, %v680
  %v683 = vmul.f32 %v661, %v681
  %v684 = vmul.f32 %v662, %v681
  %v685 = vmul.f32 %v663, %v681
  %v686 = vmul.f32 %v664, %v681
  %v687 = vmul.f32 %v665, %v681
  %v688 = vmul.f32 %v666, %v681
  %v689 = vmul.f32 %v667, %v681
  %v690 = vmul.f32 %v668, %v681
  %v691 = vmul.f32 %v669, %v681
  %v692 = vmul.f32 %v670, %v681
  %v693 = vmul.f32 %v671, %v681
  %v694 = vmul.f32 %v672, %v681
  %v695 = vmul.f32 %v673, %v681
  %v696 = vmul.f32 %v674, %v681
  %v697 = vmul.f32 %v675, %v681
  %v698 = vmul.f32 %v676, %v681
  %v700 = vlaneseq
  %v701 = vshrl.u32 %v700, 7
  %v702 = vsub.s32 0, %v701
  %v703 = vrot.slane %v549, %v702
  %v705 = vadd.f32 %v683, %v703
  %v706 = vadd.f32 %v684, %v703
  %v707 = vadd.f32 %v685, %v703
  %v708 = vadd.f32 %v686, %v703
  %v709 = vadd.f32 %v687, %v703
  %v710 = vadd.f32 %v688, %v703
  %v711 = vadd.f32 %v689, %v703
  %v712 = vadd.f32 %v690, %v703
  %v713 = vadd.f32 %v691, %v703
  %v714 = vadd.f32 %v692, %v703
  %v715 = vadd.f32 %v693, %v703
  %v716 = vadd.f32 %v694, %v703
  %v717 = vadd.f32 %v695, %v703
  %v718 = vadd.f32 %v696, %v703
  %v719 = vadd.f32 %v697, %v703
  %v720 = vadd.f32 %v698, %v703
  %v721 = vld [vmem:[%s7] sm:$0xf]
  %v722 = vld [vmem:[%s7 + $0x4] sm:$0xf]
  %v723 = vld [vmem:[%s7 + $0x8] sm:$0xf]
  %v724 = vld [vmem:[%s7 + $0xc] sm:$0xf]
  %v725 = vpack.c.bf16 %v706, %v705
  %v726 = vpack.c.bf16 %v708, %v707
  %v727 = vpack.c.bf16 %v710, %v709
  %v728 = vpack.c.bf16 %v712, %v711
  %v729 = vpack.c.bf16 %v714, %v713
  %v730 = vpack.c.bf16 %v716, %v715
  %v731 = vpack.c.bf16 %v718, %v717
  %v732 = vpack.c.bf16 %v720, %v719
  %v733 = vld [vmem:[%s8] sm:$0x1]
  %v735 = vlaneseq
  %v736 = vshrl.u32 %v735, 7
  %v737 = vsub.s32 0, %v736
  %v738 = vrot.slane %v733, %v737
  %v744 = vunpack.c.l.b16 %v721
  %v745 = vunpack.c.l.b16 %v722
  %v746 = vunpack.c.l.b16 %v723
  %v747 = vunpack.c.l.b16 %v724
  %v748 = vpack.c.b16 %v745, %v744
  %v749 = vpack.c.b16 %v747, %v746
  %v753 = vsel %vm330, %v725, 0
  %v756 = vsel %vm330, %v726, 0
  %v759 = vsel %vm330, %v727, 0
  %v762 = vsel %vm330, %v728, 0
  %v765 = vsel %vm330, %v729, 0
  %v768 = vsel %vm330, %v730, 0
  %v771 = vsel %vm330, %v731, 0
  %v774 = vsel %vm330, %v732, 0
  %776 = vmatprep.subr.bf16.mxu0 0
  %777 = vmatpush1.bf16.msra.mxu0 %v748
  %778 = vmatprep.subr.bf16.mxu0 0
  %779 = vmatpush1.bf16.msra.mxu0 %v749
  %780 = vmatprep.subr.bf16.mxu0 0
  %781 = vmatpush1.bf16.msra.mxu0 0
  %782 = vmatprep.subr.bf16.mxu0 0
  %783 = vmatpush1.bf16.msra.mxu0 0
  %784 = vmatprep.subr.bf16.mxu0 0
  %785 = vmatpush1.bf16.msra.mxu0 0
  %786 = vmatprep.subr.bf16.mxu0 0
  %787 = vmatpush1.bf16.msra.mxu0 0
  %788 = vmatprep.subr.bf16.mxu0 0
  %789 = vmatpush1.bf16.msra.mxu0 0
  %790 = vmatprep.subr.bf16.mxu0 0
  %791 = vmatpush1.bf16.msra.mxu0 0
  %792 = vmatprep.subr.bf16.mxu0 0
  %793 = vmatpush1.bf16.msra.mxu0 0
  %794 = vmatprep.subr.bf16.mxu0 0
  %795 = vmatpush1.bf16.msra.mxu0 0
  %796 = vmatprep.subr.bf16.mxu0 0
  %797 = vmatpush1.bf16.msra.mxu0 0
  %798 = vmatprep.subr.bf16.mxu0 0
  %799 = vmatpush1.bf16.msra.mxu0 0
  %800 = vmatprep.subr.bf16.mxu0 0
  %801 = vmatpush1.bf16.msra.mxu0 0
  %802 = vmatprep.subr.bf16.mxu0 0
  %803 = vmatpush1.bf16.msra.mxu0 0
  %804 = vmatprep.subr.bf16.mxu0 0
  %805 = vmatpush1.bf16.msra.mxu0 0
  %806 = vmatprep.subr.bf16.mxu0 0
  %807 = vmatpush1.bf16.msra.mxu0 0
  %808 = vmatprep.mubr.bf16.mxu0 0
  %809 = vmatmul.mubr.bf16.gmra.mrb[0].mxu0 %v753
  %v810 = vpop.f32.mrb[0].mxu0
  %v811 = vadd.f32 %v738, %v810
  %v812 = vpop.f32.mrb[0].mxu0
  %v813 = vpop.f32.mrb[0].mxu0
  %v814 = vadd.f32 %v738, %v813
  %v815 = vpop.f32.mrb[0].mxu0
  %816 = vmatprep.mubr.bf16.mxu0 0
  %817 = vmatmul.mubr.bf16.gmra.mrb[0].mxu0 %v756
  %v818 = vpop.f32.mrb[0].mxu0
  %v819 = vadd.f32 %v738, %v818
  %v820 = vpop.f32.mrb[0].mxu0
  %v821 = vpop.f32.mrb[0].mxu0
  %v822 = vadd.f32 %v738, %v821
  %v823 = vpop.f32.mrb[0].mxu0
  %824 = vmatprep.mubr.bf16.mxu0 0
  %825 = vmatmul.mubr.bf16.gmra.mrb[0].mxu0 %v759
  %v826 = vpop.f32.mrb[0].mxu0
  %v827 = vadd.f32 %v738, %v826
  %v828 = vpop.f32.mrb[0].mxu0
  %v829 = vpop.f32.mrb[0].mxu0
  %v830 = vadd.f32 %v738, %v829
  %v831 = vpop.f32.mrb[0].mxu0
  %832 = vmatprep.mubr.bf16.mxu0 0
  %833 = vmatmul.mubr.bf16.gmra.mrb[0].mxu0 %v762
  %v834 = vpop.f32.mrb[0].mxu0
  %v835 = vadd.f32 %v738, %v834
  %v836 = vpop.f32.mrb[0].mxu0
  %v837 = vpop.f32.mrb[0].mxu0
  %v838 = vadd.f32 %v738, %v837
  %v839 = vpop.f32.mrb[0].mxu0
  %840 = vmatprep.mubr.bf16.mxu0 0
  %841 = vmatmul.mubr.bf16.gmra.mrb[0].mxu0 %v765
  %v842 = vpop.f32.mrb[0].mxu0
  %v843 = vadd.f32 %v738, %v842
  %v844 = vpop.f32.mrb[0].mxu0
  %v845 = vpop.f32.mrb[0].mxu0
  %v846 = vadd.f32 %v738, %v845
  %v847 = vpop.f32.mrb[0].mxu0
  %848 = vmatprep.mubr.bf16.mxu0 0
  %849 = vmatmul.mubr.bf16.gmra.mrb[0].mxu0 %v768
  %v850 = vpop.f32.mrb[0].mxu0
  %v851 = vadd.f32 %v738, %v850
  %v852 = vpop.f32.mrb[0].mxu0
  %v853 = vpop.f32.mrb[0].mxu0
  %v854 = vadd.f32 %v738, %v853
  %v855 = vpop.f32.mrb[0].mxu0
  %856 = vmatprep.mubr.bf16.mxu0 0
  %857 = vmatmul.mubr.bf16.gmra.mrb[0].mxu0 %v771
  %v858 = vpop.f32.mrb[0].mxu0
  %v859 = vadd.f32 %v738, %v858
  %v860 = vpop.f32.mrb[0].mxu0
  %v861 = vpop.f32.mrb[0].mxu0
  %v862 = vadd.f32 %v738, %v861
  %v863 = vpop.f32.mrb[0].mxu0
  %864 = vmatprep.mubr.bf16.mxu0 0
  %865 = vmatmul.mubr.bf16.gmra.mrb[0].mxu0 %v774
  %v866 = vpop.f32.mrb[0].mxu0
  %v867 = vadd.f32 %v738, %v866
  %v868 = vpop.f32.mrb[0].mxu0
  %v869 = vpop.f32.mrb[0].mxu0
  %v870 = vadd.f32 %v738, %v869
  %v871 = vpop.f32.mrb[0].mxu0
  %872 = vdwg.mxu0
  %v873 = vld [vmem:[%s9] sm:$0xf]
  %v874 = vld [vmem:[%s9 + $0x4] sm:$0xf]
  %v875 = vld [vmem:[%s9 + $0x8] sm:$0xf]
  %v876 = vld [vmem:[%s9 + $0xc] sm:$0xf]
  %v877 = vld [vmem:[%s10] sm:$0x1]
  %v879 = vlaneseq
  %v880 = vshrl.u32 %v879, 7
  %v881 = vsub.s32 0, %v880
  %v882 = vrot.slane %v877, %v881
  %v888 = vunpack.c.l.b16 %v873
  %v889 = vunpack.c.l.b16 %v874
  %v890 = vunpack.c.l.b16 %v875
  %v891 = vunpack.c.l.b16 %v876
  %v892 = vpack.c.b16 %v889, %v888
  %v893 = vpack.c.b16 %v891, %v890
  %896 = vmatprep.subr.bf16.mxu0 0
  %897 = vmatpush1.bf16.msra.mxu0 %v892
  %898 = vmatprep.subr.bf16.mxu0 0
  %899 = vmatpush1.bf16.msra.mxu0 %v893
  %900 = vmatprep.subr.bf16.mxu0 0
  %901 = vmatpush1.bf16.msra.mxu0 0
  %902 = vmatprep.subr.bf16.mxu0 0
  %903 = vmatpush1.bf16.msra.mxu0 0
  %904 = vmatprep.subr.bf16.mxu0 0
  %905 = vmatpush1.bf16.msra.mxu0 0
  %906 = vmatprep.subr.bf16.mxu0 0
  %907 = vmatpush1.bf16.msra.mxu0 0
  %908 = vmatprep.subr.bf16.mxu0 0
  %909 = vmatpush1.bf16.msra.mxu0 0
  %910 = vmatprep.subr.bf16.mxu0 0
  %911 = vmatpush1.bf16.msra.mxu0 0
  %912 = vmatprep.subr.bf16.mxu0 0
  %913 = vmatpush1.bf16.msra.mxu0 0
  %914 = vmatprep.subr.bf16.mxu0 0
  %915 = vmatpush1.bf16.msra.mxu0 0
  %916 = vmatprep.subr.bf16.mxu0 0
  %917 = vmatpush1.bf16.msra.mxu0 0
  %918 = vmatprep.subr.bf16.mxu0 0
  %919 = vmatpush1.bf16.msra.mxu0 0
  %920 = vmatprep.subr.bf16.mxu0 0
  %921 = vmatpush1.bf16.msra.mxu0 0
  %922 = vmatprep.subr.bf16.mxu0 0
  %923 = vmatpush1.bf16.msra.mxu0 0
  %924 = vmatprep.subr.bf16.mxu0 0
  %925 = vmatpush1.bf16.msra.mxu0 0
  %926 = vmatprep.subr.bf16.mxu0 0
  %927 = vmatpush1.bf16.msra.mxu0 0
  %928 = vmatprep.mubr.bf16.mxu0 0
  %929 = vmatmul.mubr.bf16.gmra.mrb[0].mxu0 %v753
  %v930 = vpop.f32.mrb[0].mxu0
  %v931 = vadd.f32 %v882, %v930
  %v932 = vpop.f32.mrb[0].mxu0
  %v933 = vpop.f32.mrb[0].mxu0
  %v934 = vadd.f32 %v882, %v933
  %v935 = vpop.f32.mrb[0].mxu0
  %936 = vmatprep.mubr.bf16.mxu0 0
  %937 = vmatmul.mubr.bf16.gmra.mrb[0].mxu0 %v756
  %v938 = vpop.f32.mrb[0].mxu0
  %v939 = vadd.f32 %v882, %v938
  %v940 = vpop.f32.mrb[0].mxu0
  %v941 = vpop.f32.mrb[0].mxu0
  %v942 = vadd.f32 %v882, %v941
  %v943 = vpop.f32.mrb[0].mxu0
  %944 = vmatprep.mubr.bf16.mxu0 0
  %945 = vmatmul.mubr.bf16.gmra.mrb[0].mxu0 %v759
  %v946 = vpop.f32.mrb[0].mxu0
  %v947 = vadd.f32 %v882, %v946
  %v948 = vpop.f32.mrb[0].mxu0
  %v949 = vpop.f32.mrb[0].mxu0
  %v950 = vadd.f32 %v882, %v949
  %v951 = vpop.f32.mrb[0].mxu0
  %952 = vmatprep.mubr.bf16.mxu0 0
  %953 = vmatmul.mubr.bf16.gmra.mrb[0].mxu0 %v762
  %v954 = vpop.f32.mrb[0].mxu0
  %v955 = vadd.f32 %v882, %v954
  %v956 = vpop.f32.mrb[0].mxu0
  %v957 = vpop.f32.mrb[0].mxu0
  %v958 = vadd.f32 %v882, %v957
  %v959 = vpop.f32.mrb[0].mxu0
  %960 = vmatprep.mubr.bf16.mxu0 0
  %961 = vmatmul.mubr.bf16.gmra.mrb[0].mxu0 %v765
  %v962 = vpop.f32.mrb[0].mxu0
  %v963 = vadd.f32 %v882, %v962
  %v964 = vpop.f32.mrb[0].mxu0
  %v965 = vpop.f32.mrb[0].mxu0
  %v966 = vadd.f32 %v882, %v965
  %v967 = vpop.f32.mrb[0].mxu0
  %968 = vmatprep.mubr.bf16.mxu0 0
  %969 = vmatmul.mubr.bf16.gmra.mrb[0].mxu0 %v768
  %v970 = vpop.f32.mrb[0].mxu0
  %v971 = vadd.f32 %v882, %v970
  %v972 = vpop.f32.mrb[0].mxu0
  %v973 = vpop.f32.mrb[0].mxu0
  %v974 = vadd.f32 %v882, %v973
  %v975 = vpop.f32.mrb[0].mxu0
  %976 = vmatprep.mubr.bf16.mxu0 0
  %977 = vmatmul.mubr.bf16.gmra.mrb[0].mxu0 %v771
  %v978 = vpop.f32.mrb[0].mxu0
  %v979 = vadd.f32 %v882, %v978
  %v980 = vpop.f32.mrb[0].mxu0
  %v981 = vpop.f32.mrb[0].mxu0
  %v982 = vadd.f32 %v882, %v981
  %v983 = vpop.f32.mrb[0].mxu0
  %984 = vmatprep.mubr.bf16.mxu0 0
  %985 = vmatmul.mubr.bf16.gmra.mrb[0].mxu0 %v774
  %v986 = vpop.f32.mrb[0].mxu0
  %v987 = vadd.f32 %v882, %v986
  %v988 = vpop.f32.mrb[0].mxu0
  %v989 = vpop.f32.mrb[0].mxu0
  %v990 = vadd.f32 %v882, %v989
  %v991 = vpop.f32.mrb[0].mxu0
  %992 = vdwg.mxu0
  %993 = vst.msk [vmem:[%s11] sm:$0xff] %vm330, %v705
  %994 = vst.msk [vmem:[%s11 + $0x8] sm:$0xff] %vm330, %v706
  %995 = vst.msk [vmem:[%s11 + $0x10] sm:$0xff] %vm330, %v707
  %996 = vst.msk [vmem:[%s11 + $0x18] sm:$0xff] %vm330, %v708
  %997 = vst.msk [vmem:[%s11 + $0x20] sm:$0xff] %vm330, %v709
  %998 = vst.msk [vmem:[%s11 + $0x28] sm:$0xff] %vm330, %v710
  %999 = vst.msk [vmem:[%s11 + $0x30] sm:$0xff] %vm330, %v711
  %1000 = vst.msk [vmem:[%s11 + $0x38] sm:$0xff] %vm330, %v712
  %1001 = vst.msk [vmem:[%s11 + $0x40] sm:$0xff] %vm330, %v713
  %1002 = vst.msk [vmem:[%s11 + $0x48] sm:$0xff] %vm330, %v714
  %1003 = vst.msk [vmem:[%s11 + $0x50] sm:$0xff] %vm330, %v715
  %1004 = vst.msk [vmem:[%s11 + $0x58] sm:$0xff] %vm330, %v716
  %1005 = vst.msk [vmem:[%s11 + $0x60] sm:$0xff] %vm330, %v717
  %1006 = vst.msk [vmem:[%s11 + $0x68] sm:$0xff] %vm330, %v718
  %1007 = vst.msk [vmem:[%s11 + $0x70] sm:$0xff] %vm330, %v719
  %1008 = vst.msk [vmem:[%s11 + $0x78] sm:$0xff] %vm330, %v720
  %v1009 = vpack.c.bf16 %v934, %v931
  %v1010 = vpack.c.bf16 %v942, %v939
  %v1011 = vpack.c.bf16 %v950, %v947
  %v1012 = vpack.c.bf16 %v958, %v955
  %v1013 = vpack.c.bf16 %v966, %v963
  %v1014 = vpack.c.bf16 %v974, %v971
  %v1015 = vpack.c.bf16 %v982, %v979
  %v1016 = vpack.c.bf16 %v990, %v987
  %v1025 = vunpack.c.l.b16 %v1009
  %v1026 = vunpack.c.h.b16 %v1009
  %v1027 = vunpack.c.l.b16 %v1010
  %v1028 = vunpack.c.h.b16 %v1010
  %v1029 = vunpack.c.l.b16 %v1011
  %v1030 = vunpack.c.h.b16 %v1011
  %v1031 = vunpack.c.l.b16 %v1012
  %v1032 = vunpack.c.h.b16 %v1012
  %v1033 = vunpack.c.l.b16 %v1013
  %v1034 = vunpack.c.h.b16 %v1013
  %v1035 = vunpack.c.l.b16 %v1014
  %v1036 = vunpack.c.h.b16 %v1014
  %v1037 = vunpack.c.l.b16 %v1015
  %v1038 = vunpack.c.h.b16 %v1015
  %v1039 = vunpack.c.l.b16 %v1016
  %v1040 = vunpack.c.h.b16 %v1016
  %v1041 = vpack.c.b16 %v1025, %v1025
  %v1042 = vpack.c.b16 %v1026, %v1026
  %v1043 = vpack.c.b16 %v1027, %v1027
  %v1044 = vpack.c.b16 %v1028, %v1028
  %v1045 = vpack.c.b16 %v1029, %v1029
  %v1046 = vpack.c.b16 %v1030, %v1030
  %v1047 = vpack.c.b16 %v1031, %v1031
  %v1048 = vpack.c.b16 %v1032, %v1032
  %v1049 = vpack.c.b16 %v1033, %v1033
  %v1050 = vpack.c.b16 %v1034, %v1034
  %v1051 = vpack.c.b16 %v1035, %v1035
  %v1052 = vpack.c.b16 %v1036, %v1036
  %v1053 = vpack.c.b16 %v1037, %v1037
  %v1054 = vpack.c.b16 %v1038, %v1038
  %v1055 = vpack.c.b16 %v1039, %v1039
  %v1056 = vpack.c.b16 %v1040, %v1040
  %vm1073 = vcmask 257024
  %1074 = vst.msk [vmem:[%s12] sm:$0xf] %vm1073, %v1041
  %1075 = vst.msk [vmem:[%s12 + $0x4] sm:$0xf] %vm1073, %v1042
  %1076 = vst.msk [vmem:[%s12 + $0x8] sm:$0xf] %vm1073, %v1043
  %1077 = vst.msk [vmem:[%s12 + $0xc] sm:$0xf] %vm1073, %v1044
  %1078 = vst.msk [vmem:[%s12 + $0x10] sm:$0xf] %vm1073, %v1045
  %1079 = vst.msk [vmem:[%s12 + $0x14] sm:$0xf] %vm1073, %v1046
  %1080 = vst.msk [vmem:[%s12 + $0x18] sm:$0xf] %vm1073, %v1047
  %1081 = vst.msk [vmem:[%s12 + $0x1c] sm:$0xf] %vm1073, %v1048
  %1082 = vst.msk [vmem:[%s12 + $0x20] sm:$0xf] %vm1073, %v1049
  %1083 = vst.msk [vmem:[%s12 + $0x24] sm:$0xf] %vm1073, %v1050
  %1084 = vst.msk [vmem:[%s12 + $0x28] sm:$0xf] %vm1073, %v1051
  %1085 = vst.msk [vmem:[%s12 + $0x2c] sm:$0xf] %vm1073, %v1052
  %1086 = vst.msk [vmem:[%s12 + $0x30] sm:$0xf] %vm1073, %v1053
  %1087 = vst.msk [vmem:[%s12 + $0x34] sm:$0xf] %vm1073, %v1054
  %1088 = vst.msk [vmem:[%s12 + $0x38] sm:$0xf] %vm1073, %v1055
  %1089 = vst.msk [vmem:[%s12 + $0x3c] sm:$0xf] %vm1073, %v1056
  %vm1090 = vcmask 64512
  %1091 = vst.msk [vmem:[%s13] sm:$0xff] %vm1090, %v811
  %1092 = vst.msk [vmem:[%s13 + $0x8] sm:$0xff] %vm1090, %v814
  %1093 = vst.msk [vmem:[%s13 + $0x10] sm:$0xff] %vm1090, %v819
  %1094 = vst.msk [vmem:[%s13 + $0x18] sm:$0xff] %vm1090, %v822
  %1095 = vst.msk [vmem:[%s13 + $0x20] sm:$0xff] %vm1090, %v827
  %1096 = vst.msk [vmem:[%s13 + $0x28] sm:$0xff] %vm1090, %v830
  %1097 = vst.msk [vmem:[%s13 + $0x30] sm:$0xff] %vm1090, %v835
  %1098 = vst.msk [vmem:[%s13 + $0x38] sm:$0xff] %vm1090, %v838
  %1099 = vst.msk [vmem:[%s13 + $0x40] sm:$0xff] %vm1090, %v843
  %1100 = vst.msk [vmem:[%s13 + $0x48] sm:$0xff] %vm1090, %v846
  %1101 = vst.msk [vmem:[%s13 + $0x50] sm:$0xff] %vm1090, %v851
  %1102 = vst.msk [vmem:[%s13 + $0x58] sm:$0xff] %vm1090, %v854
  %1103 = vst.msk [vmem:[%s13 + $0x60] sm:$0xff] %vm1090, %v859
  %1104 = vst.msk [vmem:[%s13 + $0x68] sm:$0xff] %vm1090, %v862
  %1105 = vst.msk [vmem:[%s13 + $0x70] sm:$0xff] %vm1090, %v867
  %1106 = vst.msk [vmem:[%s13 + $0x78] sm:$0xff] %vm1090, %v870
  // Predicated region
  $region46: #{gravnet_block.3} parent=0 // pred_check
    _
  $region47: #{gravnet_block.3} parent=0 // pred_check_branch
    %1108 = sbr.rel (0) target = $region49
  $region48: #{gravnet_block.3} parent=0 // pred_region
    _
  $region49: #{gravnet_block.3} parent=0 // pred_fallthru
    _
  // Predicated region
  $region50: #{gravnet_block.3} parent=0 // pred_check
    _
  $region51: #{gravnet_block.3} parent=0 // pred_check_branch
    %1110 = sbr.rel (0) target = $region53
  $region52: #{gravnet_block.3} parent=0 // pred_region
    _
  $region53: #{gravnet_block.3} parent=0 // pred_fallthru
    _
  // Predicated region
  $region54: #{gravnet_block.3} parent=0 // pred_check
    _
  $region55: #{gravnet_block.3} parent=0 // pred_check_branch
    %1112 = sbr.rel (0) target = $region57
  $region56: #{gravnet_block.3} parent=0 // pred_region
    _
  $region57: #{gravnet_block.3} parent=0 // pred_fallthru
    _
  // Predicated region
  $region58: #{gravnet_block.3} parent=0 // pred_check
    _
  $region59: #{gravnet_block.3} parent=0 // pred_check_branch
    %1114 = sbr.rel (0) target = $region61
  $region60: #{gravnet_block.3} parent=0 // pred_region
    _
  $region61: #{gravnet_block.3} parent=0 // pred_fallthru
    _
  // Predicated region
  $region62: #{gravnet_block.3} parent=0 // pred_check
    _
  $region63: #{gravnet_block.3} parent=0 // pred_check_branch
    %1116 = sbr.rel (0) target = $region65
  $region64: #{gravnet_block.3} parent=0 // pred_region
    _
  $region65: #{gravnet_block.3} parent=0 // pred_fallthru
    _
  // Predicated region
  $region66: #{gravnet_block.3} parent=0 // pred_check
    _
  $region67: #{gravnet_block.3} parent=0 // pred_check_branch
    %1118 = sbr.rel (0) target = $region69
  $region68: #{gravnet_block.3} parent=0 // pred_region
    _
  $region69: #{gravnet_block.3} parent=0 // pred_fallthru
    _

// kernel: gravnet_block.4
$region0: #{gravnet_block.4}
  #allocation0 [shape = 'u32[]', space=smem, size = 0x4, offset = 0x4, fixed_abs, tag = 'smem constant byte address 0x4 - core index']
  #allocation1 [shape = 'u32[144,128]{1,0:T(1,128)}', space=vmem, size = 0x12000, scoped, tag = 'internal scratch']
  #allocation2 [shape = 'f32[64,128]{1,0:T(8,128)}', space=vmem, size = 0x8000, scoped, tag = 'scratch operand']
  #allocation3 [shape = 'f32[64,32]{1,0:T(8,128)}', space=vmem, size = 0x8000, scoped, tag = 'scratch operand']
  #allocation4 [shape = 'f32[64,32]{1,0:T(8,128)}', space=vmem, size = 0x8000, scoped, tag = 'scratch operand']
  #allocation5 [shape = 'f32[64,1]{1,0:T(8,128)}', space=vmem, size = 0x8000, scoped, tag = 'scratch operand']
  %s0 = inlined_call_operand.vmem [shape: s32[128,1], index: 0, kind: input, shape index: {}]
  %s1 = inlined_call_operand.vmem [shape: s32[1,128], index: 1, kind: input, shape index: {}]
  %s2 = inlined_call_operand.vmem [shape: f32[128,32], index: 2, kind: input, shape index: {}]
  %s3 = inlined_call_operand.vmem [shape: f32[128,8], index: 3, kind: input, shape index: {}]
  %s4 = inlined_call_operand.vmem [shape: f32[8,128], index: 4, kind: input, shape index: {}]
  %s5 = inlined_call_operand.vmem [shape: bf16[128,32], index: 5, kind: input, shape index: {}]
  %s6 = inlined_call_operand.vmem [shape: bf16[96,32], index: 6, kind: input, shape index: {}]
  %s7 = inlined_call_operand.vmem [shape: f32[1,32], index: 7, kind: input, shape index: {}]
  %s8 = inlined_call_operand.vmem [shape: bf16[72,32], index: 8, kind: input, shape index: {}]
  %s9 = inlined_call_operand.vmem [shape: f32[1,32], index: 9, kind: input, shape index: {}]
  %s10 = inlined_call_operand.vmem [shape: bf16[32,32], index: 10, kind: input, shape index: {}]
  %s11 = inlined_call_operand.vmem [shape: f32[1,32], index: 11, kind: input, shape index: {}]
  %s12 = inlined_call_operand.vmem [shape: f32[128,32], index: 12, kind: output, shape index: {}]
  %s13 = sld [smem:[#allocation0]]
  $region88: #{gravnet_block.4} parent=0
    _
  %s15 = ssub.s32 1, %s13
  %s16 = scalar_select 0, %s15, %s13
  loop: start=0, step=1, limit=4
  $region2: #{gravnet_block.4} parent=0 // loop_pre_header
    _
  $region3: #{gravnet_block.4} parent=0 // loop_header
    %s18 = sphi 0, %s22
    %p19 = scmp.ge.s32.totalorder %s18, 4
    %s28 = sphi 0, %s30
    %s31 = sphi 0, %s28
    %s32 = sphi 0, %s31
    %s48 = sphi 0, %s32
    %s52 = sphi 0, %s52
    %s54 = sphi 0, %s52
    %s55 = sphi 0, %s54
    %s69 = sphi 0, %s55
    %s75 = sphi 0, %s77
    %s78 = sphi 0, %s75
    %s79 = sphi 0, %s78
    %s95 = sphi 0, %s79
    %s101 = sphi 0, %s103
    %s104 = sphi 0, %s101
    %s105 = sphi 0, %s104
    %s121 = sphi 0, %s105
    %s125 = sphi 0, %s125
    %s127 = sphi 0, %s125
    %s128 = sphi 0, %s127
    %s142 = sphi 0, %s128
    %s146 = sphi 0, %s146
    %s148 = sphi 0, %s146
    %s149 = sphi 0, %s148
    %s163 = sphi 0, %s149
    %s167 = sphi 0, %s167
    %s169 = sphi 0, %s167
    %s170 = sphi 0, %s169
    %s184 = sphi 0, %s170
    %s188 = sphi 0, %s188
    %s190 = sphi 0, %s188
    %s191 = sphi 0, %s190
    %s205 = sphi 0, %s191
    %s209 = sphi 0, %s209
    %s211 = sphi 0, %s209
    %s212 = sphi 0, %s211
    %s226 = sphi 0, %s212
    %s230 = sphi 0, %s230
    %s232 = sphi 0, %s230
    %s233 = sphi 0, %s232
    %s247 = sphi 0, %s233
    %s251 = sphi 0, %s251
    %s253 = sphi 0, %s251
    %s254 = sphi 0, %s253
    %s268 = sphi 0, %s254
    %s272 = sphi 0, %s272
    %s274 = sphi 0, %s272
    %s275 = sphi 0, %s274
    %s289 = sphi 0, %s275
    %s295 = sphi 0, %s297
    %s298 = sphi 0, %s295
    %s299 = sphi 0, %s298
    %s315 = sphi 0, %s299
  $region4: #{gravnet_block.4} parent=0 // loop_header_branch
    %21 = sbr.rel (%p19) target = $region8
  $region5: #{gravnet_block.4} parent=0 // loop_body
    %s23 = ssub.s32 %s18, 1
    %s24 = ssub.s32 %s18, 2
    %s25 = sadd.s32 %s18, 1
    %s26 = ssub.s32 %s18, %s25
    %p27 = scmp.eq.s32.totalorder %s26, 0
    %s29 = sadd.s32 %s28, 1
    %s30 = scalar_select %p27, %s28, %s29
    %p33 = pneg %p27
    %p34 = scmp.eq.s32.totalorder %s18, 1
    %p35 = por %p33, %p34
    %p36 = scmp.ne.s32.totalorder %s28, %s31
    %p37 = scmp.eq.s32.totalorder %s18, 0
    %p38 = por %p36, %p37
    %p39 = scmp.ne.s32.totalorder %s28, %s31
    %p40 = scmp.eq.s32.totalorder %s23, 1
    %p41 = por %p39, %p40
    %p42 = scmp.ne.s32.totalorder %s31, %s32
    %p43 = scmp.eq.s32.totalorder %s23, 0
    %p44 = por %p42, %p43
    %p45 = scmp.ne.s32.totalorder %s31, %s32
    %p46 = scmp.eq.s32.totalorder %s24, 1
    %p47 = por %p45, %p46
    %p49 = scmp.ne.s32.totalorder %s32, %s48
    %p50 = scmp.eq.s32.totalorder %s24, 0
    %p51 = por %p49, %p50
    %s53 = sadd.s32 %s52, 1
    %p56 = scmp.eq.s32.totalorder %s18, 1
    %p57 = scmp.ne.s32.totalorder %s52, %s54
    %p58 = scmp.eq.s32.totalorder %s18, 0
    %p59 = por %p57, %p58
    %p60 = scmp.ne.s32.totalorder %s52, %s54
    %p61 = scmp.eq.s32.totalorder %s23, 1
    %p62 = por %p60, %p61
    %p63 = scmp.ne.s32.totalorder %s54, %s55
    %p64 = scmp.eq.s32.totalorder %s23, 0
    %p65 = por %p63, %p64
    %p66 = scmp.ne.s32.totalorder %s54, %s55
    %p67 = scmp.eq.s32.totalorder %s24, 1
    %p68 = por %p66, %p67
    %p70 = scmp.ne.s32.totalorder %s55, %s69
    %p71 = scmp.eq.s32.totalorder %s24, 0
    %p72 = por %p70, %p71
    %s73 = ssub.s32 %s18, %s25
    %p74 = scmp.eq.s32.totalorder %s73, 0
    %s76 = sadd.s32 %s75, 1
    %s77 = scalar_select %p74, %s75, %s76
    %p80 = pneg %p74
    %p81 = scmp.eq.s32.totalorder %s18, 1
    %p82 = por %p80, %p81
    %p83 = scmp.ne.s32.totalorder %s75, %s78
    %p84 = scmp.eq.s32.totalorder %s18, 0
    %p85 = por %p83, %p84
    %p86 = scmp.ne.s32.totalorder %s75, %s78
    %p87 = scmp.eq.s32.totalorder %s23, 1
    %p88 = por %p86, %p87
    %p89 = scmp.ne.s32.totalorder %s78, %s79
    %p90 = scmp.eq.s32.totalorder %s23, 0
    %p91 = por %p89, %p90
    %p92 = scmp.ne.s32.totalorder %s78, %s79
    %p93 = scmp.eq.s32.totalorder %s24, 1
    %p94 = por %p92, %p93
    %p96 = scmp.ne.s32.totalorder %s79, %s95
    %p97 = scmp.eq.s32.totalorder %s24, 0
    %p98 = por %p96, %p97
    %s99 = ssub.s32 %s18, %s25
    %p100 = scmp.eq.s32.totalorder %s99, 0
    %s102 = sadd.s32 %s101, 1
    %s103 = scalar_select %p100, %s101, %s102
    %p106 = pneg %p100
    %p107 = scmp.eq.s32.totalorder %s18, 1
    %p108 = por %p106, %p107
    %p109 = scmp.ne.s32.totalorder %s101, %s104
    %p110 = scmp.eq.s32.totalorder %s18, 0
    %p111 = por %p109, %p110
    %p112 = scmp.ne.s32.totalorder %s101, %s104
    %p113 = scmp.eq.s32.totalorder %s23, 1
    %p114 = por %p112, %p113
    %p115 = scmp.ne.s32.totalorder %s104, %s105
    %p116 = scmp.eq.s32.totalorder %s23, 0
    %p117 = por %p115, %p116
    %p118 = scmp.ne.s32.totalorder %s104, %s105
    %p119 = scmp.eq.s32.totalorder %s24, 1
    %p120 = por %p118, %p119
    %p122 = scmp.ne.s32.totalorder %s105, %s121
    %p123 = scmp.eq.s32.totalorder %s24, 0
    %p124 = por %p122, %p123
    %s126 = sadd.s32 %s125, 1
    %p129 = scmp.eq.s32.totalorder %s18, 1
    %p130 = scmp.ne.s32.totalorder %s125, %s127
    %p131 = scmp.eq.s32.totalorder %s18, 0
    %p132 = por %p130, %p131
    %p133 = scmp.ne.s32.totalorder %s125, %s127
    %p134 = scmp.eq.s32.totalorder %s23, 1
    %p135 = por %p133, %p134
    %p136 = scmp.ne.s32.totalorder %s127, %s128
    %p137 = scmp.eq.s32.totalorder %s23, 0
    %p138 = por %p136, %p137
    %p139 = scmp.ne.s32.totalorder %s127, %s128
    %p140 = scmp.eq.s32.totalorder %s24, 1
    %p141 = por %p139, %p140
    %p143 = scmp.ne.s32.totalorder %s128, %s142
    %p144 = scmp.eq.s32.totalorder %s24, 0
    %p145 = por %p143, %p144
    %s147 = sadd.s32 %s146, 1
    %p150 = scmp.eq.s32.totalorder %s18, 1
    %p151 = scmp.ne.s32.totalorder %s146, %s148
    %p152 = scmp.eq.s32.totalorder %s18, 0
    %p153 = por %p151, %p152
    %p154 = scmp.ne.s32.totalorder %s146, %s148
    %p155 = scmp.eq.s32.totalorder %s23, 1
    %p156 = por %p154, %p155
    %p157 = scmp.ne.s32.totalorder %s148, %s149
    %p158 = scmp.eq.s32.totalorder %s23, 0
    %p159 = por %p157, %p158
    %p160 = scmp.ne.s32.totalorder %s148, %s149
    %p161 = scmp.eq.s32.totalorder %s24, 1
    %p162 = por %p160, %p161
    %p164 = scmp.ne.s32.totalorder %s149, %s163
    %p165 = scmp.eq.s32.totalorder %s24, 0
    %p166 = por %p164, %p165
    %s168 = sadd.s32 %s167, 1
    %p171 = scmp.eq.s32.totalorder %s18, 1
    %p172 = scmp.ne.s32.totalorder %s167, %s169
    %p173 = scmp.eq.s32.totalorder %s18, 0
    %p174 = por %p172, %p173
    %p175 = scmp.ne.s32.totalorder %s167, %s169
    %p176 = scmp.eq.s32.totalorder %s23, 1
    %p177 = por %p175, %p176
    %p178 = scmp.ne.s32.totalorder %s169, %s170
    %p179 = scmp.eq.s32.totalorder %s23, 0
    %p180 = por %p178, %p179
    %p181 = scmp.ne.s32.totalorder %s169, %s170
    %p182 = scmp.eq.s32.totalorder %s24, 1
    %p183 = por %p181, %p182
    %p185 = scmp.ne.s32.totalorder %s170, %s184
    %p186 = scmp.eq.s32.totalorder %s24, 0
    %p187 = por %p185, %p186
    %s189 = sadd.s32 %s188, 1
    %p192 = scmp.eq.s32.totalorder %s18, 1
    %p193 = scmp.ne.s32.totalorder %s188, %s190
    %p194 = scmp.eq.s32.totalorder %s18, 0
    %p195 = por %p193, %p194
    %p196 = scmp.ne.s32.totalorder %s188, %s190
    %p197 = scmp.eq.s32.totalorder %s23, 1
    %p198 = por %p196, %p197
    %p199 = scmp.ne.s32.totalorder %s190, %s191
    %p200 = scmp.eq.s32.totalorder %s23, 0
    %p201 = por %p199, %p200
    %p202 = scmp.ne.s32.totalorder %s190, %s191
    %p203 = scmp.eq.s32.totalorder %s24, 1
    %p204 = por %p202, %p203
    %p206 = scmp.ne.s32.totalorder %s191, %s205
    %p207 = scmp.eq.s32.totalorder %s24, 0
    %p208 = por %p206, %p207
    %s210 = sadd.s32 %s209, 1
    %p213 = scmp.eq.s32.totalorder %s18, 1
    %p214 = scmp.ne.s32.totalorder %s209, %s211
    %p215 = scmp.eq.s32.totalorder %s18, 0
    %p216 = por %p214, %p215
    %p217 = scmp.ne.s32.totalorder %s209, %s211
    %p218 = scmp.eq.s32.totalorder %s23, 1
    %p219 = por %p217, %p218
    %p220 = scmp.ne.s32.totalorder %s211, %s212
    %p221 = scmp.eq.s32.totalorder %s23, 0
    %p222 = por %p220, %p221
    %p223 = scmp.ne.s32.totalorder %s211, %s212
    %p224 = scmp.eq.s32.totalorder %s24, 1
    %p225 = por %p223, %p224
    %p227 = scmp.ne.s32.totalorder %s212, %s226
    %p228 = scmp.eq.s32.totalorder %s24, 0
    %p229 = por %p227, %p228
    %s231 = sadd.s32 %s230, 1
    %p234 = scmp.eq.s32.totalorder %s18, 1
    %p235 = scmp.ne.s32.totalorder %s230, %s232
    %p236 = scmp.eq.s32.totalorder %s18, 0
    %p237 = por %p235, %p236
    %p238 = scmp.ne.s32.totalorder %s230, %s232
    %p239 = scmp.eq.s32.totalorder %s23, 1
    %p240 = por %p238, %p239
    %p241 = scmp.ne.s32.totalorder %s232, %s233
    %p242 = scmp.eq.s32.totalorder %s23, 0
    %p243 = por %p241, %p242
    %p244 = scmp.ne.s32.totalorder %s232, %s233
    %p245 = scmp.eq.s32.totalorder %s24, 1
    %p246 = por %p244, %p245
    %p248 = scmp.ne.s32.totalorder %s233, %s247
    %p249 = scmp.eq.s32.totalorder %s24, 0
    %p250 = por %p248, %p249
    %s252 = sadd.s32 %s251, 1
    %p255 = scmp.eq.s32.totalorder %s18, 1
    %p256 = scmp.ne.s32.totalorder %s251, %s253
    %p257 = scmp.eq.s32.totalorder %s18, 0
    %p258 = por %p256, %p257
    %p259 = scmp.ne.s32.totalorder %s251, %s253
    %p260 = scmp.eq.s32.totalorder %s23, 1
    %p261 = por %p259, %p260
    %p262 = scmp.ne.s32.totalorder %s253, %s254
    %p263 = scmp.eq.s32.totalorder %s23, 0
    %p264 = por %p262, %p263
    %p265 = scmp.ne.s32.totalorder %s253, %s254
    %p266 = scmp.eq.s32.totalorder %s24, 1
    %p267 = por %p265, %p266
    %p269 = scmp.ne.s32.totalorder %s254, %s268
    %p270 = scmp.eq.s32.totalorder %s24, 0
    %p271 = por %p269, %p270
    %s273 = sadd.s32 %s272, 1
    %p276 = scmp.eq.s32.totalorder %s18, 1
    %p277 = scmp.ne.s32.totalorder %s272, %s274
    %p278 = scmp.eq.s32.totalorder %s18, 0
    %p279 = por %p277, %p278
    %p280 = scmp.ne.s32.totalorder %s272, %s274
    %p281 = scmp.eq.s32.totalorder %s23, 1
    %p282 = por %p280, %p281
    %p283 = scmp.ne.s32.totalorder %s274, %s275
    %p284 = scmp.eq.s32.totalorder %s23, 0
    %p285 = por %p283, %p284
    %p286 = scmp.ne.s32.totalorder %s274, %s275
    %p287 = scmp.eq.s32.totalorder %s24, 1
    %p288 = por %p286, %p287
    %p290 = scmp.ne.s32.totalorder %s275, %s289
    %p291 = scmp.eq.s32.totalorder %s24, 0
    %p292 = por %p290, %p291
    %s293 = ssub.s32 %s18, %s25
    %p294 = scmp.eq.s32.totalorder %s293, 0
    %s296 = sadd.s32 %s295, 1
    %s297 = scalar_select %p294, %s295, %s296
    %p300 = pneg %p294
    %p301 = scmp.eq.s32.totalorder %s18, 1
    %p302 = por %p300, %p301
    %p303 = scmp.ne.s32.totalorder %s295, %s298
    %p304 = scmp.eq.s32.totalorder %s18, 0
    %p305 = por %p303, %p304
    %p306 = scmp.ne.s32.totalorder %s295, %s298
    %p307 = scmp.eq.s32.totalorder %s23, 1
    %p308 = por %p306, %p307
    %p309 = scmp.ne.s32.totalorder %s298, %s299
    %p310 = scmp.eq.s32.totalorder %s23, 0
    %p311 = por %p309, %p310
    %p312 = scmp.ne.s32.totalorder %s298, %s299
    %p313 = scmp.eq.s32.totalorder %s24, 1
    %p314 = por %p312, %p313
    %p316 = scmp.ne.s32.totalorder %s299, %s315
    %p317 = scmp.eq.s32.totalorder %s24, 0
    %p318 = por %p316, %p317
    %p319 = scmp.le.s32.totalorder 1, %s18
    %p320 = scmp.lt.s32.totalorder %s18, 3
    %p321 = pnand %p319, %p320
    %p322 = pneg %p321
    // Predicated region
    $region9: #{gravnet_block.4} parent=5 // pred_check
      _
    $region10: #{gravnet_block.4} parent=5 // pred_check_branch
      %324 = sbr.rel (%p321) target = $region12
    $region11: #{gravnet_block.4} parent=5 // pred_region
      %s325 = ssub.s32 %s18, 1
      // Predicated region
      $region13: #{gravnet_block.4} parent=11 // pred_check
        %p326 = pneg %p65
      $region14: #{gravnet_block.4} parent=11 // pred_check_branch
        %328 = sbr.rel (%p326) target = $region16
      $region15: #{gravnet_block.4} parent=11 // pred_region
        _
      $region16: #{gravnet_block.4} parent=11 // pred_fallthru
        _
      // Predicated region
      $region17: #{gravnet_block.4} parent=11 // pred_check
        %p329 = pneg %p138
      $region18: #{gravnet_block.4} parent=11 // pred_check_branch
        %331 = sbr.rel (%p329) target = $region20
      $region19: #{gravnet_block.4} parent=11 // pred_region
        _
      $region20: #{gravnet_block.4} parent=11 // pred_fallthru
        _
      // Predicated region
      $region21: #{gravnet_block.4} parent=11 // pred_check
        %p332 = pneg %p159
      $region22: #{gravnet_block.4} parent=11 // pred_check_branch
        %334 = sbr.rel (%p332) target = $region24
      $region23: #{gravnet_block.4} parent=11 // pred_region
        _
      $region24: #{gravnet_block.4} parent=11 // pred_fallthru
        _
      // Predicated region
      $region25: #{gravnet_block.4} parent=11 // pred_check
        %p335 = pneg %p180
      $region26: #{gravnet_block.4} parent=11 // pred_check_branch
        %337 = sbr.rel (%p335) target = $region28
      $region27: #{gravnet_block.4} parent=11 // pred_region
        _
      $region28: #{gravnet_block.4} parent=11 // pred_fallthru
        _
      // Predicated region
      $region29: #{gravnet_block.4} parent=11 // pred_check
        %p338 = pneg %p201
      $region30: #{gravnet_block.4} parent=11 // pred_check_branch
        %340 = sbr.rel (%p338) target = $region32
      $region31: #{gravnet_block.4} parent=11 // pred_region
        _
      $region32: #{gravnet_block.4} parent=11 // pred_fallthru
        _
      // Predicated region
      $region33: #{gravnet_block.4} parent=11 // pred_check
        %p341 = pneg %p222
      $region34: #{gravnet_block.4} parent=11 // pred_check_branch
        %343 = sbr.rel (%p341) target = $region36
      $region35: #{gravnet_block.4} parent=11 // pred_region
        _
      $region36: #{gravnet_block.4} parent=11 // pred_fallthru
        _
      // Predicated region
      $region37: #{gravnet_block.4} parent=11 // pred_check
        %p344 = pneg %p243
      $region38: #{gravnet_block.4} parent=11 // pred_check_branch
        %346 = sbr.rel (%p344) target = $region40
      $region39: #{gravnet_block.4} parent=11 // pred_region
        _
      $region40: #{gravnet_block.4} parent=11 // pred_fallthru
        _
      // Predicated region
      $region41: #{gravnet_block.4} parent=11 // pred_check
        %p347 = pneg %p264
      $region42: #{gravnet_block.4} parent=11 // pred_check_branch
        %349 = sbr.rel (%p347) target = $region44
      $region43: #{gravnet_block.4} parent=11 // pred_region
        _
      $region44: #{gravnet_block.4} parent=11 // pred_fallthru
        _
      // Predicated region
      $region45: #{gravnet_block.4} parent=11 // pred_check
        %p350 = pneg %p285
      $region46: #{gravnet_block.4} parent=11 // pred_check_branch
        %352 = sbr.rel (%p350) target = $region48
      $region47: #{gravnet_block.4} parent=11 // pred_region
        _
      $region48: #{gravnet_block.4} parent=11 // pred_fallthru
        _
    $region12: #{gravnet_block.4} parent=5 // pred_fallthru
      _
    %p353 = scmp.lt.s32.totalorder %s18, 2
    // Predicated region
    $region49: #{gravnet_block.4} parent=5 // pred_check
      %p354 = pneg %p353
    $region50: #{gravnet_block.4} parent=5 // pred_check_branch
      %356 = sbr.rel (%p354) target = $region52
    $region51: #{gravnet_block.4} parent=5 // pred_region
      // Predicated region
      $region53: #{gravnet_block.4} parent=51 // pred_check
        %p357 = pneg %p38
      $region54: #{gravnet_block.4} parent=51 // pred_check_branch
        %359 = sbr.rel (%p357) target = $region56
      $region55: #{gravnet_block.4} parent=51 // pred_region
        %s360 = smul.u32 8, %s18
        %p361 = scmp.lt.s32.totalorder %s360, 15
        %s362 = scalar_select %p361, %s360, 15
        %s363 = smul.addr %s362, 8
        %s364 = scalar_lea.vmem %s0, %s363
        %s365 = smul.u32 8, %s18
      $region56: #{gravnet_block.4} parent=51 // pred_fallthru
        _
      // Predicated region
      $region57: #{gravnet_block.4} parent=51 // pred_check
        %p366 = pneg %p85
      $region58: #{gravnet_block.4} parent=51 // pred_check_branch
        %368 = sbr.rel (%p366) target = $region60
      $region59: #{gravnet_block.4} parent=51 // pred_region
        %s369 = smul.u32 8, %s18
        %p370 = scmp.lt.s32.totalorder %s369, 15
        %s371 = scalar_select %p370, %s369, 15
        %s372 = smul.addr %s371, 8
        %s373 = scalar_lea.vmem %s2, %s372
        %s374 = smul.u32 8, %s18
      $region60: #{gravnet_block.4} parent=51 // pred_fallthru
        _
      // Predicated region
      $region61: #{gravnet_block.4} parent=51 // pred_check
        %p375 = pneg %p111
      $region62: #{gravnet_block.4} parent=51 // pred_check_branch
        %377 = sbr.rel (%p375) target = $region64
      $region63: #{gravnet_block.4} parent=51 // pred_region
        %s378 = smul.u32 8, %s18
        %p379 = scmp.lt.s32.totalorder %s378, 15
        %s380 = scalar_select %p379, %s378, 15
        %s381 = smul.addr %s380, 8
        %s382 = scalar_lea.vmem %s3, %s381
        %s383 = smul.u32 8, %s18
      $region64: #{gravnet_block.4} parent=51 // pred_fallthru
        _
    $region52: #{gravnet_block.4} parent=5 // pred_fallthru
      _
    %p384 = scmp.le.s32.totalorder 1, %s18
    %p385 = scmp.lt.s32.totalorder %s18, 3
    %p386 = pnand %p384, %p385
    %p387 = pneg %p386
    // Predicated region
    $region65: #{gravnet_block.4} parent=5 // pred_check
      _
    $region66: #{gravnet_block.4} parent=5 // pred_check_branch
      %389 = sbr.rel (%p386) target = $region68
    $region67: #{gravnet_block.4} parent=5 // pred_region
      %s390 = ssub.s32 %s18, 1
      %s391 = smul.u32 8, %s23
      %p392 = scmp.lt.s32.totalorder %s391, 15
      %s393 = scalar_select %p392, %s391, 15
      %s394 = smul.addr %s393, 8
      %s395 = scalar_lea.vmem %s0, %s394
      %p396 = pneg %p44
      %p397 = pneg %p41
      %p398 = pneg %p65
      %p399 = pneg %p62
      %s400 = smul.u32 8, %s23
      %p401 = scmp.lt.s32.totalorder %s400, 15
      %s402 = scalar_select %p401, %s400, 15
      %s403 = smul.addr %s402, 8
      %s404 = scalar_lea.vmem %s2, %s403
      %p405 = pneg %p91
      %p406 = pneg %p88
      %s407 = smul.u32 8, %s23
      %p408 = scmp.lt.s32.totalorder %s407, 15
      %s409 = scalar_select %p408, %s407, 15
      %s410 = smul.addr %s409, 8
      %s411 = scalar_lea.vmem %s3, %s410
      %p412 = pneg %p117
      %p413 = pneg %p114
      %p414 = pneg %p138
      %p415 = pneg %p135
      %p416 = pneg %p159
      %p417 = pneg %p156
      %p418 = pneg %p180
      %p419 = pneg %p177
      %p420 = pneg %p201
      %p421 = pneg %p198
      %p422 = pneg %p222
      %p423 = pneg %p219
      %p424 = pneg %p243
      %p425 = pneg %p240
      %p426 = pneg %p264
      %p427 = pneg %p261
      %p428 = pneg %p285
      %p429 = pneg %p282
      %p430 = pneg %p311
      %p431 = pneg %p308
      %s432 = smul.u32 8, %s23
      %p433 = scmp.lt.s32.totalorder %s432, 15
      %s434 = scalar_select %p433, %s432, 15
      %s435 = smul.addr %s434, 8
      %s436 = scalar_lea.vmem %s12, %s435
      %s437 = smul.u32 8, %s23
      %p438 = scmp.lt.s32.totalorder %s437, 15
      %s439 = scalar_select %p438, %s437, 15
      %s440 = smul.addr %s439, 8
      %s441 = scalar_lea.vmem %s0, %s440
      %s442 = smul.u32 8, %s23
      %s443 = smul.u32 8, %s23
      %p444 = scmp.lt.s32.totalorder %s443, 15
      %s445 = scalar_select %p444, %s443, 15
      %s446 = smul.addr %s445, 8
      %s447 = scalar_lea.vmem %s2, %s446
      %s448 = smul.u32 8, %s23
      %s449 = smul.u32 8, %s23
      %p450 = scmp.lt.s32.totalorder %s449, 15
      %s451 = scalar_select %p450, %s449, 15
      %s452 = smul.addr %s451, 8
      %s453 = scalar_lea.vmem %s3, %s452
      %s454 = smul.u32 8, %s23
      %s455 = smul.u32 8, %s23
      %p456 = scmp.lt.s32.totalorder %s455, 15
      %s457 = scalar_select %p456, %s455, 15
      %s458 = smul.addr %s457, 8
      %s459 = scalar_lea.vmem %s12, %s458
      %s460 = smul.u32 8, %s23
      %v462 = vld [vmem:[%s453] sm:$0xff]
      %v463 = vld [vmem:[%s453 + $0x8] sm:$0xff]
      %v464 = vld [vmem:[%s453 + $0x10] sm:$0xff]
      %v465 = vld [vmem:[%s453 + $0x18] sm:$0xff]
      %v466 = vld [vmem:[%s453 + $0x20] sm:$0xff]
      %v467 = vld [vmem:[%s453 + $0x28] sm:$0xff]
      %v468 = vld [vmem:[%s453 + $0x30] sm:$0xff]
      %v469 = vld [vmem:[%s453 + $0x38] sm:$0xff]
      %v470 = vld [vmem:[%s4] sm:$0xff]
      %472 = vset.pattern.permute.xlu0 0
      %473 = vperm.xlu0 %472, %v462
      %v474 = vpop.permute.xlu0 %473
      %477 = vset.pattern.permute.xlu0 0
      %478 = vperm.xlu0 %477, %v463
      %v479 = vpop.permute.xlu0 %478
      %482 = vset.pattern.permute.xlu0 0
      %483 = vperm.xlu0 %482, %v464
      %v484 = vpop.permute.xlu0 %483
      %487 = vset.pattern.permute.xlu0 0
      %488 = vperm.xlu0 %487, %v465
      %v489 = vpop.permute.xlu0 %488
      %492 = vset.pattern.permute.xlu0 0
      %493 = vperm.xlu0 %492, %v466
      %v494 = vpop.permute.xlu0 %493
      %497 = vset.pattern.permute.xlu0 0
      %498 = vperm.xlu0 %497, %v467
      %v499 = vpop.permute.xlu0 %498
      %502 = vset.pattern.permute.xlu0 0
      %503 = vperm.xlu0 %502, %v468
      %v504 = vpop.permute.xlu0 %503
      %507 = vset.pattern.permute.xlu0 0
      %508 = vperm.xlu0 %507, %v469
      %v509 = vpop.permute.xlu0 %508
      %v511 = vlaneseq
      %v512 = vshrl.u32 %v511, 7
      %v513 = vsub.s32 0, %v512
      %v514 = vrot.slane %v470, %v513
      %v515 = vsub.f32 %v474, %v514
      %v516 = vsub.f32 %v479, %v514
      %v517 = vsub.f32 %v484, %v514
      %v518 = vsub.f32 %v489, %v514
      %v519 = vsub.f32 %v494, %v514
      %v520 = vsub.f32 %v499, %v514
      %v521 = vsub.f32 %v504, %v514
      %v522 = vsub.f32 %v509, %v514
      %v523 = vmul.f32 %v515, %v515
      %v524 = vmul.f32 %v516, %v516
      %v525 = vmul.f32 %v517, %v517
      %v526 = vmul.f32 %v518, %v518
      %v527 = vmul.f32 %v519, %v519
      %v528 = vmul.f32 %v520, %v520
      %v529 = vmul.f32 %v521, %v521
      %v530 = vmul.f32 %v522, %v522
      %v531 = vadd.f32 %v523, 0.0
      %v532 = vadd.f32 %v524, 0.0
      %v533 = vadd.f32 %v525, 0.0
      %v534 = vadd.f32 %v526, 0.0
      %v535 = vadd.f32 %v527, 0.0
      %v536 = vadd.f32 %v528, 0.0
      %v537 = vadd.f32 %v529, 0.0
      %v538 = vadd.f32 %v530, 0.0
      %539 = vset.pattern.permute.xlu0 1
      %540 = vperm.xlu0 %539, %v462
      %v541 = vpop.permute.xlu0 %540
      %543 = vset.pattern.permute.xlu0 1
      %544 = vperm.xlu0 %543, %v463
      %v545 = vpop.permute.xlu0 %544
      %547 = vset.pattern.permute.xlu0 1
      %548 = vperm.xlu0 %547, %v464
      %v549 = vpop.permute.xlu0 %548
      %551 = vset.pattern.permute.xlu0 1
      %552 = vperm.xlu0 %551, %v465
      %v553 = vpop.permute.xlu0 %552
      %555 = vset.pattern.permute.xlu0 1
      %556 = vperm.xlu0 %555, %v466
      %v557 = vpop.permute.xlu0 %556
      %559 = vset.pattern.permute.xlu0 1
      %560 = vperm.xlu0 %559, %v467
      %v561 = vpop.permute.xlu0 %560
      %563 = vset.pattern.permute.xlu0 1
      %564 = vperm.xlu0 %563, %v468
      %v565 = vpop.permute.xlu0 %564
      %567 = vset.pattern.permute.xlu0 1
      %568 = vperm.xlu0 %567, %v469
      %v569 = vpop.permute.xlu0 %568
      %v571 = vlaneseq
      %v572 = vshrl.u32 %v571, 7
      %v573 = vsub.s32 1, %v572
      %v574 = vrot.slane %v470, %v573
      %v575 = vsub.f32 %v541, %v574
      %v576 = vsub.f32 %v545, %v574
      %v577 = vsub.f32 %v549, %v574
      %v578 = vsub.f32 %v553, %v574
      %v579 = vsub.f32 %v557, %v574
      %v580 = vsub.f32 %v561, %v574
      %v581 = vsub.f32 %v565, %v574
      %v582 = vsub.f32 %v569, %v574
      %v583 = vmul.f32 %v575, %v575
      %v584 = vmul.f32 %v576, %v576
      %v585 = vmul.f32 %v577, %v577
      %v586 = vmul.f32 %v578, %v578
      %v587 = vmul.f32 %v579, %v579
      %v588 = vmul.f32 %v580, %v580
      %v589 = vmul.f32 %v581, %v581
      %v590 = vmul.f32 %v582, %v582
      %v591 = vadd.f32 %v531, %v583
      %v592 = vadd.f32 %v532, %v584
      %v593 = vadd.f32 %v533, %v585
      %v594 = vadd.f32 %v534, %v586
      %v595 = vadd.f32 %v535, %v587
      %v596 = vadd.f32 %v536, %v588
      %v597 = vadd.f32 %v537, %v589
      %v598 = vadd.f32 %v538, %v590
      %599 = vset.pattern.permute.xlu0 2
      %600 = vperm.xlu0 %599, %v462
      %v601 = vpop.permute.xlu0 %600
      %603 = vset.pattern.permute.xlu0 2
      %604 = vperm.xlu0 %603, %v463
      %v605 = vpop.permute.xlu0 %604
      %607 = vset.pattern.permute.xlu0 2
      %608 = vperm.xlu0 %607, %v464
      %v609 = vpop.permute.xlu0 %608
      %611 = vset.pattern.permute.xlu0 2
      %612 = vperm.xlu0 %611, %v465
      %v613 = vpop.permute.xlu0 %612
      %615 = vset.pattern.permute.xlu0 2
      %616 = vperm.xlu0 %615, %v466
      %v617 = vpop.permute.xlu0 %616
      %619 = vset.pattern.permute.xlu0 2
      %620 = vperm.xlu0 %619, %v467
      %v621 = vpop.permute.xlu0 %620
      %623 = vset.pattern.permute.xlu0 2
      %624 = vperm.xlu0 %623, %v468
      %v625 = vpop.permute.xlu0 %624
      %627 = vset.pattern.permute.xlu0 2
      %628 = vperm.xlu0 %627, %v469
      %v629 = vpop.permute.xlu0 %628
      %v631 = vlaneseq
      %v632 = vshrl.u32 %v631, 7
      %v633 = vsub.s32 2, %v632
      %v634 = vrot.slane %v470, %v633
      %v635 = vsub.f32 %v601, %v634
      %v636 = vsub.f32 %v605, %v634
      %v637 = vsub.f32 %v609, %v634
      %v638 = vsub.f32 %v613, %v634
      %v639 = vsub.f32 %v617, %v634
      %v640 = vsub.f32 %v621, %v634
      %v641 = vsub.f32 %v625, %v634
      %v642 = vsub.f32 %v629, %v634
      %v643 = vmul.f32 %v635, %v635
      %v644 = vmul.f32 %v636, %v636
      %v645 = vmul.f32 %v637, %v637
      %v646 = vmul.f32 %v638, %v638
      %v647 = vmul.f32 %v639, %v639
      %v648 = vmul.f32 %v640, %v640
      %v649 = vmul.f32 %v641, %v641
      %v650 = vmul.f32 %v642, %v642
      %v651 = vadd.f32 %v591, %v643
      %v652 = vadd.f32 %v592, %v644
      %v653 = vadd.f32 %v593, %v645
      %v654 = vadd.f32 %v594, %v646
      %v655 = vadd.f32 %v595, %v647
      %v656 = vadd.f32 %v596, %v648
      %v657 = vadd.f32 %v597, %v649
      %v658 = vadd.f32 %v598, %v650
      %v659 = vld [vmem:[%s441] sm:$0xff]
      %v660 = vld [vmem:[%s441 + $0x8] sm:$0xff]
      %v661 = vld [vmem:[%s441 + $0x10] sm:$0xff]
      %v662 = vld [vmem:[%s441 + $0x18] sm:$0xff]
      %v663 = vld [vmem:[%s441 + $0x20] sm:$0xff]
      %v664 = vld [vmem:[%s441 + $0x28] sm:$0xff]
      %v665 = vld [vmem:[%s441 + $0x30] sm:$0xff]
      %v666 = vld [vmem:[%s441 + $0x38] sm:$0xff]
      %v667 = vld [vmem:[%s1] sm:$0x1]
      %668 = vset.pattern.permute.xlu0 0
      %669 = vperm.xlu0 %668, %v659
      %v670 = vpop.permute.xlu0 %669
      %671 = vset.pattern.permute.xlu0 0
      %672 = vperm.xlu0 %671, %v660
      %v673 = vpop.permute.xlu0 %672
      %674 = vset.pattern.permute.xlu0 0
      %675 = vperm.xlu0 %674, %v661
      %v676 = vpop.permute.xlu0 %675
      %677 = vset.pattern.permute.xlu0 0
      %678 = vperm.xlu0 %677, %v662
      %v679 = vpop.permute.xlu0 %678
      %680 = vset.pattern.permute.xlu0 0
      %681 = vperm.xlu0 %680, %v663
      %v682 = vpop.permute.xlu0 %681
      %683 = vset.pattern.permute.xlu0 0
      %684 = vperm.xlu0 %683, %v664
      %v685 = vpop.permute.xlu0 %684
      %686 = vset.pattern.permute.xlu0 0
      %687 = vperm.xlu0 %686, %v665
      %v688 = vpop.permute.xlu0 %687
      %689 = vset.pattern.permute.xlu0 0
      %690 = vperm.xlu0 %689, %v666
      %v691 = vpop.permute.xlu0 %690
      %v692 = vlaneseq
      %v693 = vshrl.u32 %v692, 7
      %v694 = vsub.s32 0, %v693
      %v695 = vrot.slane %v667, %v694
      %vm696 = vcmp.eq.s32.totalorder %v670, %v695
      %vm697 = vcmp.eq.s32.totalorder %v673, %v695
      %vm698 = vcmp.eq.s32.totalorder %v676, %v695
      %vm699 = vcmp.eq.s32.totalorder %v679, %v695
      %vm700 = vcmp.eq.s32.totalorder %v682, %v695
      %vm701 = vcmp.eq.s32.totalorder %v685, %v695
      %vm702 = vcmp.eq.s32.totalorder %v688, %v695
      %vm703 = vcmp.eq.s32.totalorder %v691, %v695
      %v704 = vsel %vm696, %v651, 1e+30
      %v705 = vsel %vm697, %v652, 1e+30
      %v706 = vsel %vm698, %v653, 1e+30
      %v707 = vsel %vm699, %v654, 1e+30
      %v708 = vsel %vm700, %v655, 1e+30
      %v709 = vsel %vm701, %v656, 1e+30
      %v710 = vsel %vm702, %v657, 1e+30
      %v711 = vsel %vm703, %v658, 1e+30
      %v712 = vadd.f32 %v704, 1.0
      %v713 = vadd.f32 %v705, 1.0
      %v714 = vadd.f32 %v706, 1.0
      %v715 = vadd.f32 %v707, 1.0
      %v716 = vadd.f32 %v708, 1.0
      %v717 = vadd.f32 %v709, 1.0
      %v718 = vadd.f32 %v710, 1.0
      %v719 = vadd.f32 %v711, 1.0
      %v720 = vlaneseq
      %v721 = vand.u32 %v720, 127
      %v730 = vand.u32 %v712, 4294967168
      %v731 = vand.u32 %v713, 4294967168
      %v732 = vand.u32 %v714, 4294967168
      %v733 = vand.u32 %v715, 4294967168
      %v734 = vand.u32 %v716, 4294967168
      %v735 = vand.u32 %v717, 4294967168
      %v736 = vand.u32 %v718, 4294967168
      %v737 = vand.u32 %v719, 4294967168
      %v738 = vor.u32 %v730, %v721
      %v739 = vor.u32 %v731, %v721
      %v740 = vor.u32 %v732, %v721
      %v741 = vor.u32 %v733, %v721
      %v742 = vor.u32 %v734, %v721
      %v743 = vor.u32 %v735, %v721
      %v744 = vor.u32 %v736, %v721
      %v745 = vor.u32 %v737, %v721
      %754 = vst [vmem:[#allocation2] sm:$0xff] %v738
      %755 = vst [vmem:[#allocation2 + $0x8] sm:$0xff] %v739
      %756 = vst [vmem:[#allocation2 + $0x10] sm:$0xff] %v740
      %757 = vst [vmem:[#allocation2 + $0x18] sm:$0xff] %v741
      %758 = vst [vmem:[#allocation2 + $0x20] sm:$0xff] %v742
      %759 = vst [vmem:[#allocation2 + $0x28] sm:$0xff] %v743
      %760 = vst [vmem:[#allocation2 + $0x30] sm:$0xff] %v744
      %761 = vst [vmem:[#allocation2 + $0x38] sm:$0xff] %v745
      %vm762 = vcmask 261120
      %763 = vst.msk [vmem:[#allocation3] sm:$0xff] %vm762, 0.0
      %764 = vst.msk [vmem:[#allocation3 + $0x8] sm:$0xff] %vm762, 0.0
      %765 = vst.msk [vmem:[#allocation3 + $0x10] sm:$0xff] %vm762, 0.0
      %766 = vst.msk [vmem:[#allocation3 + $0x18] sm:$0xff] %vm762, 0.0
      %767 = vst.msk [vmem:[#allocation3 + $0x20] sm:$0xff] %vm762, 0.0
      %768 = vst.msk [vmem:[#allocation3 + $0x28] sm:$0xff] %vm762, 0.0
      %769 = vst.msk [vmem:[#allocation3 + $0x30] sm:$0xff] %vm762, 0.0
      %770 = vst.msk [vmem:[#allocation3 + $0x38] sm:$0xff] %vm762, 0.0
      %771 = vst.msk [vmem:[#allocation4] sm:$0xff] %vm762, -1e+30
      %772 = vst.msk [vmem:[#allocation4 + $0x8] sm:$0xff] %vm762, -1e+30
      %773 = vst.msk [vmem:[#allocation4 + $0x10] sm:$0xff] %vm762, -1e+30
      %774 = vst.msk [vmem:[#allocation4 + $0x18] sm:$0xff] %vm762, -1e+30
      %775 = vst.msk [vmem:[#allocation4 + $0x20] sm:$0xff] %vm762, -1e+30
      %776 = vst.msk [vmem:[#allocation4 + $0x28] sm:$0xff] %vm762, -1e+30
      %777 = vst.msk [vmem:[#allocation4 + $0x30] sm:$0xff] %vm762, -1e+30
      %778 = vst.msk [vmem:[#allocation4 + $0x38] sm:$0xff] %vm762, -1e+30
      %vm779 = vcmask 7168
      %780 = vst.msk [vmem:[#allocation5] sm:$0xff] %vm779, 0.0
      %781 = vst.msk [vmem:[#allocation5 + $0x8] sm:$0xff] %vm779, 0.0
      %782 = vst.msk [vmem:[#allocation5 + $0x10] sm:$0xff] %vm779, 0.0
      %783 = vst.msk [vmem:[#allocation5 + $0x18] sm:$0xff] %vm779, 0.0
      %784 = vst.msk [vmem:[#allocation5 + $0x20] sm:$0xff] %vm779, 0.0
      %785 = vst.msk [vmem:[#allocation5 + $0x28] sm:$0xff] %vm779, 0.0
      %786 = vst.msk [vmem:[#allocation5 + $0x30] sm:$0xff] %vm779, 0.0
      %787 = vst.msk [vmem:[#allocation5 + $0x38] sm:$0xff] %vm779, 0.0
      loop: start=0, step=1, limit=40
      $region69: #{gravnet_block.4} parent=67 // loop_pre_header
        _
      $region70: #{gravnet_block.4} parent=67 // loop_header
        %s789 = sphi 0, %s793
        %p790 = scmp.ge.s32.totalorder %s789, 40
      $region71: #{gravnet_block.4} parent=67 // loop_header_branch
        %792 = sbr.rel (%p790) target = $region75
      $region72: #{gravnet_block.4} parent=67 // loop_body
        %v794 = vld [vmem:[#allocation2] sm:$0xff]
        %v795 = vld [vmem:[#allocation2 + $0x8] sm:$0xff]
        %v796 = vld [vmem:[#allocation2 + $0x10] sm:$0xff]
        %v797 = vld [vmem:[#allocation2 + $0x18] sm:$0xff]
        %v798 = vld [vmem:[#allocation2 + $0x20] sm:$0xff]
        %v799 = vld [vmem:[#allocation2 + $0x28] sm:$0xff]
        %v800 = vld [vmem:[#allocation2 + $0x30] sm:$0xff]
        %v801 = vld [vmem:[#allocation2 + $0x38] sm:$0xff]
        %802 = vmin.xlane.f32.xlu0 %v794
        %v803 = vpop.xlane.xlu0 %802
        %804 = vmin.xlane.f32.xlu0 %v795
        %v805 = vpop.xlane.xlu0 %804
        %806 = vmin.xlane.f32.xlu0 %v796
        %v807 = vpop.xlane.xlu0 %806
        %808 = vmin.xlane.f32.xlu0 %v797
        %v809 = vpop.xlane.xlu0 %808
        %810 = vmin.xlane.f32.xlu0 %v798
        %v811 = vpop.xlane.xlu0 %810
        %812 = vmin.xlane.f32.xlu0 %v799
        %v813 = vpop.xlane.xlu0 %812
        %814 = vmin.xlane.f32.xlu0 %v800
        %v815 = vpop.xlane.xlu0 %814
        %816 = vmin.xlane.f32.xlu0 %v801
        %v817 = vpop.xlane.xlu0 %816
        %v818 = vsub.f32 %v803, 1.0
        %v819 = vsub.f32 %v805, 1.0
        %v820 = vsub.f32 %v807, 1.0
        %v821 = vsub.f32 %v809, 1.0
        %v822 = vsub.f32 %v811, 1.0
        %v823 = vsub.f32 %v813, 1.0
        %v824 = vsub.f32 %v815, 1.0
        %v825 = vsub.f32 %v817, 1.0
        %vm826 = vcmp.lt.f32.partialorder %v818, 5e+29
        %vm827 = vcmp.lt.f32.partialorder %v819, 5e+29
        %vm828 = vcmp.lt.f32.partialorder %v820, 5e+29
        %vm829 = vcmp.lt.f32.partialorder %v821, 5e+29
        %vm830 = vcmp.lt.f32.partialorder %v822, 5e+29
        %vm831 = vcmp.lt.f32.partialorder %v823, 5e+29
        %vm832 = vcmp.lt.f32.partialorder %v824, 5e+29
        %vm833 = vcmp.lt.f32.partialorder %v825, 5e+29
        %v834 = vmul.f32 %v818, -10.0
        %v835 = vmul.f32 %v819, -10.0
        %v836 = vmul.f32 %v820, -10.0
        %v837 = vmul.f32 %v821, -10.0
        %v838 = vmul.f32 %v822, -10.0
        %v839 = vmul.f32 %v823, -10.0
        %v840 = vmul.f32 %v824, -10.0
        %v841 = vmul.f32 %v825, -10.0
        %v842 = vmul.f32 %v834, 1.442695
        %v843 = vpow.pop %v842
        %v844 = vmul.f32 %v835, 1.442695
        %v845 = vpow.pop %v844
        %v846 = vmul.f32 %v836, 1.442695
        %v847 = vpow.pop %v846
        %v848 = vmul.f32 %v837, 1.442695
        %v849 = vpow.pop %v848
        %v850 = vmul.f32 %v838, 1.442695
        %v851 = vpow.pop %v850
        %v852 = vmul.f32 %v839, 1.442695
        %v853 = vpow.pop %v852
        %v854 = vmul.f32 %v840, 1.442695
        %v855 = vpow.pop %v854
        %v856 = vmul.f32 %v841, 1.442695
        %v857 = vpow.pop %v856
        %v858 = vsel %vm826, %v843, 0.0
        %v859 = vsel %vm827, %v845, 0.0
        %v860 = vsel %vm828, %v847, 0.0
        %v861 = vsel %vm829, %v849, 0.0
        %v862 = vsel %vm830, %v851, 0.0
        %v863 = vsel %vm831, %v853, 0.0
        %v864 = vsel %vm832, %v855, 0.0
        %v865 = vsel %vm833, %v857, 0.0
        %vm866 = vcmp.eq.f32.partialorder %v794, %v803
        %vm867 = vcmp.eq.f32.partialorder %v795, %v805
        %vm868 = vcmp.eq.f32.partialorder %v796, %v807
        %vm869 = vcmp.eq.f32.partialorder %v797, %v809
        %vm870 = vcmp.eq.f32.partialorder %v798, %v811
        %vm871 = vcmp.eq.f32.partialorder %v799, %v813
        %vm872 = vcmp.eq.f32.partialorder %v800, %v815
        %vm873 = vcmp.eq.f32.partialorder %v801, %v817
        %v874 = vsel %vm866, 2e+30, %v794
        %v875 = vsel %vm867, 2e+30, %v795
        %v876 = vsel %vm868, 2e+30, %v796
        %v877 = vsel %vm869, 2e+30, %v797
        %v878 = vsel %vm870, 2e+30, %v798
        %v879 = vsel %vm871, 2e+30, %v799
        %v880 = vsel %vm872, 2e+30, %v800
        %v881 = vsel %vm873, 2e+30, %v801
        %882 = vst [vmem:[#allocation2] sm:$0xff] %v874
        %883 = vst [vmem:[#allocation2 + $0x8] sm:$0xff] %v875
        %884 = vst [vmem:[#allocation2 + $0x10] sm:$0xff] %v876
        %885 = vst [vmem:[#allocation2 + $0x18] sm:$0xff] %v877
        %886 = vst [vmem:[#allocation2 + $0x20] sm:$0xff] %v878
        %887 = vst [vmem:[#allocation2 + $0x28] sm:$0xff] %v879
        %888 = vst [vmem:[#allocation2 + $0x30] sm:$0xff] %v880
        %889 = vst [vmem:[#allocation2 + $0x38] sm:$0xff] %v881
        %v890 = vsel %vm866, 1, 0
        %v891 = vsel %vm867, 1, 0
        %v892 = vsel %vm868, 1, 0
        %v893 = vsel %vm869, 1, 0
        %v894 = vsel %vm870, 1, 0
        %v895 = vsel %vm871, 1, 0
        %v896 = vsel %vm872, 1, 0
        %v897 = vsel %vm873, 1, 0
        %v898 = vcvt.s32.f32 %v890
        %v899 = vcvt.s32.f32 %v891
        %v900 = vcvt.s32.f32 %v892
        %v901 = vcvt.s32.f32 %v893
        %v902 = vcvt.s32.f32 %v894
        %v903 = vcvt.s32.f32 %v895
        %v904 = vcvt.s32.f32 %v896
        %v905 = vcvt.s32.f32 %v897
        %v906 = vpack.c.bf16 %v899, %v898
        %v907 = vpack.c.bf16 %v901, %v900
        %v908 = vpack.c.bf16 %v903, %v902
        %v909 = vpack.c.bf16 %v905, %v904
        %v910 = vld [vmem:[%s5] sm:$0xf]
        %v911 = vld [vmem:[%s5 + $0x4] sm:$0xf]
        %v912 = vld [vmem:[%s5 + $0x8] sm:$0xf]
        %v913 = vld [vmem:[%s5 + $0xc] sm:$0xf]
        %v914 = vld [vmem:[%s5 + $0x10] sm:$0xf]
        %v915 = vld [vmem:[%s5 + $0x14] sm:$0xf]
        %v916 = vld [vmem:[%s5 + $0x18] sm:$0xf]
        %v917 = vld [vmem:[%s5 + $0x1c] sm:$0xf]
        %v918 = vld [vmem:[%s5 + $0x20] sm:$0xf]
        %v919 = vld [vmem:[%s5 + $0x24] sm:$0xf]
        %v920 = vld [vmem:[%s5 + $0x28] sm:$0xf]
        %v921 = vld [vmem:[%s5 + $0x2c] sm:$0xf]
        %v922 = vld [vmem:[%s5 + $0x30] sm:$0xf]
        %v923 = vld [vmem:[%s5 + $0x34] sm:$0xf]
        %v924 = vld [vmem:[%s5 + $0x38] sm:$0xf]
        %v925 = vld [vmem:[%s5 + $0x3c] sm:$0xf]
        %v942 = vunpack.c.l.b16 %v910
        %v943 = vunpack.c.l.b16 %v911
        %v944 = vunpack.c.l.b16 %v912
        %v945 = vunpack.c.l.b16 %v913
        %v946 = vunpack.c.l.b16 %v914
        %v947 = vunpack.c.l.b16 %v915
        %v948 = vunpack.c.l.b16 %v916
        %v949 = vunpack.c.l.b16 %v917
        %v950 = vunpack.c.l.b16 %v918
        %v951 = vunpack.c.l.b16 %v919
        %v952 = vunpack.c.l.b16 %v920
        %v953 = vunpack.c.l.b16 %v921
        %v954 = vunpack.c.l.b16 %v922
        %v955 = vunpack.c.l.b16 %v923
        %v956 = vunpack.c.l.b16 %v924
        %v957 = vunpack.c.l.b16 %v925
        %v958 = vpack.c.b16 %v943, %v942
        %v959 = vpack.c.b16 %v945, %v944
        %v960 = vpack.c.b16 %v947, %v946
        %v961 = vpack.c.b16 %v949, %v948
        %v962 = vpack.c.b16 %v951, %v950
        %v963 = vpack.c.b16 %v953, %v952
        %v964 = vpack.c.b16 %v955, %v954
        %v965 = vpack.c.b16 %v957, %v956
        %974 = vmatprep.subr.bf16.mxu0 0
        %975 = vmatpush1.bf16.msra.mxu0 %v958
        %976 = vmatprep.subr.bf16.mxu0 0
        %977 = vmatpush1.bf16.msra.mxu0 %v959
        %978 = vmatprep.subr.bf16.mxu0 0
        %979 = vmatpush1.bf16.msra.mxu0 %v960
        %980 = vmatprep.subr.bf16.mxu0 0
        %981 = vmatpush1.bf16.msra.mxu0 %v961
        %982 = vmatprep.subr.bf16.mxu0 0
        %983 = vmatpush1.bf16.msra.mxu0 %v962
        %984 = vmatprep.subr.bf16.mxu0 0
        %985 = vmatpush1.bf16.msra.mxu0 %v963
        %986 = vmatprep.subr.bf16.mxu0 0
        %987 = vmatpush1.bf16.msra.mxu0 %v964
        %988 = vmatprep.subr.bf16.mxu0 0
        %989 = vmatpush1.bf16.msra.mxu0 %v965
        %990 = vmatprep.subr.bf16.mxu0 0
        %991 = vmatpush1.bf16.msra.mxu0 0
        %992 = vmatprep.subr.bf16.mxu0 0
        %993 = vmatpush1.bf16.msra.mxu0 0
        %994 = vmatprep.subr.bf16.mxu0 0
        %995 = vmatpush1.bf16.msra.mxu0 0
        %996 = vmatprep.subr.bf16.mxu0 0
        %997 = vmatpush1.bf16.msra.mxu0 0
        %998 = vmatprep.subr.bf16.mxu0 0
        %999 = vmatpush1.bf16.msra.mxu0 0
        %1000 = vmatprep.subr.bf16.mxu0 0
        %1001 = vmatpush1.bf16.msra.mxu0 0
        %1002 = vmatprep.subr.bf16.mxu0 0
        %1003 = vmatpush1.bf16.msra.mxu0 0
        %1004 = vmatprep.subr.bf16.mxu0 0
        %1005 = vmatpush1.bf16.msra.mxu0 0
        %1006 = vmatprep.mubr.bf16.mxu0 0
        %1007 = vmatmul.mubr.bf16.gmra.mrb[0].mxu0 %v906
        %v1008 = vpop.f32.mrb[0].mxu0
        %v1009 = vadd.f32 0.0, %v1008
        %v1010 = vpop.f32.mrb[0].mxu0
        %v1011 = vpop.f32.mrb[0].mxu0
        %v1012 = vadd.f32 0.0, %v1011
        %v1013 = vpop.f32.mrb[0].mxu0
        %1014 = vmatprep.mubr.bf16.mxu0 0
        %1015 = vmatmul.mubr.bf16.gmra.mrb[0].mxu0 %v907
        %v1016 = vpop.f32.mrb[0].mxu0
        %v1017 = vadd.f32 0.0, %v1016
        %v1018 = vpop.f32.mrb[0].mxu0
        %v1019 = vpop.f32.mrb[0].mxu0
        %v1020 = vadd.f32 0.0, %v1019
        %v1021 = vpop.f32.mrb[0].mxu0
        %1022 = vmatprep.mubr.bf16.mxu0 0
        %1023 = vmatmul.mubr.bf16.gmra.mrb[0].mxu0 %v908
        %v1024 = vpop.f32.mrb[0].mxu0
        %v1025 = vadd.f32 0.0, %v1024
        %v1026 = vpop.f32.mrb[0].mxu0
        %v1027 = vpop.f32.mrb[0].mxu0
        %v1028 = vadd.f32 0.0, %v1027
        %v1029 = vpop.f32.mrb[0].mxu0
        %1030 = vmatprep.mubr.bf16.mxu0 0
        %1031 = vmatmul.mubr.bf16.gmra.mrb[0].mxu0 %v909
        %v1032 = vpop.f32.mrb[0].mxu0
        %v1033 = vadd.f32 0.0, %v1032
        %v1034 = vpop.f32.mrb[0].mxu0
        %v1035 = vpop.f32.mrb[0].mxu0
        %v1036 = vadd.f32 0.0, %v1035
        %v1037 = vpop.f32.mrb[0].mxu0
        %1038 = vdwg.mxu0
        %v1039 = vmul.f32 %v1009, %v858
        %v1040 = vmul.f32 %v1012, %v859
        %v1041 = vmul.f32 %v1017, %v860
        %v1042 = vmul.f32 %v1020, %v861
        %v1043 = vmul.f32 %v1025, %v862
        %v1044 = vmul.f32 %v1028, %v863
        %v1045 = vmul.f32 %v1033, %v864
        %v1046 = vmul.f32 %v1036, %v865
        %v1047 = vld [vmem:[#allocation3] sm:$0xff]
        %v1048 = vld [vmem:[#allocation3 + $0x8] sm:$0xff]
        %v1049 = vld [vmem:[#allocation3 + $0x10] sm:$0xff]
        %v1050 = vld [vmem:[#allocation3 + $0x18] sm:$0xff]
        %v1051 = vld [vmem:[#allocation3 + $0x20] sm:$0xff]
        %v1052 = vld [vmem:[#allocation3 + $0x28] sm:$0xff]
        %v1053 = vld [vmem:[#allocation3 + $0x30] sm:$0xff]
        %v1054 = vld [vmem:[#allocation3 + $0x38] sm:$0xff]
        %v1055 = vadd.f32 %v1047, %v1039
        %v1056 = vadd.f32 %v1048, %v1040
        %v1057 = vadd.f32 %v1049, %v1041
        %v1058 = vadd.f32 %v1050, %v1042
        %v1059 = vadd.f32 %v1051, %v1043
        %v1060 = vadd.f32 %v1052, %v1044
        %v1061 = vadd.f32 %v1053, %v1045
        %v1062 = vadd.f32 %v1054, %v1046
        %1063 = vst.msk [vmem:[#allocation3] sm:$0xff] %vm762, %v1055
        %1064 = vst.msk [vmem:[#allocation3 + $0x8] sm:$0xff] %vm762, %v1056
        %1065 = vst.msk [vmem:[#allocation3 + $0x10] sm:$0xff] %vm762, %v1057
        %1066 = vst.msk [vmem:[#allocation3 + $0x18] sm:$0xff] %vm762, %v1058
        %1067 = vst.msk [vmem:[#allocation3 + $0x20] sm:$0xff] %vm762, %v1059
        %1068 = vst.msk [vmem:[#allocation3 + $0x28] sm:$0xff] %vm762, %v1060
        %1069 = vst.msk [vmem:[#allocation3 + $0x30] sm:$0xff] %vm762, %v1061
        %1070 = vst.msk [vmem:[#allocation3 + $0x38] sm:$0xff] %vm762, %v1062
        %v1071 = vld [vmem:[#allocation4] sm:$0xff]
        %v1072 = vld [vmem:[#allocation4 + $0x8] sm:$0xff]
        %v1073 = vld [vmem:[#allocation4 + $0x10] sm:$0xff]
        %v1074 = vld [vmem:[#allocation4 + $0x18] sm:$0xff]
        %v1075 = vld [vmem:[#allocation4 + $0x20] sm:$0xff]
        %v1076 = vld [vmem:[#allocation4 + $0x28] sm:$0xff]
        %v1077 = vld [vmem:[#allocation4 + $0x30] sm:$0xff]
        %v1078 = vld [vmem:[#allocation4 + $0x38] sm:$0xff]
        %v1079 = vsel %vm826, 1, 0
        %v1080 = vsel %vm827, 1, 0
        %v1081 = vsel %vm828, 1, 0
        %v1082 = vsel %vm829, 1, 0
        %v1083 = vsel %vm830, 1, 0
        %v1084 = vsel %vm831, 1, 0
        %v1085 = vsel %vm832, 1, 0
        %v1086 = vsel %vm833, 1, 0
        %vm1087 = vcmp.eq.s32.totalorder %v1079, 1
        %vm1088 = vcmp.eq.s32.totalorder %v1080, 1
        %vm1089 = vcmp.eq.s32.totalorder %v1081, 1
        %vm1090 = vcmp.eq.s32.totalorder %v1082, 1
        %vm1091 = vcmp.eq.s32.totalorder %v1083, 1
        %vm1092 = vcmp.eq.s32.totalorder %v1084, 1
        %vm1093 = vcmp.eq.s32.totalorder %v1085, 1
        %vm1094 = vcmp.eq.s32.totalorder %v1086, 1
        %v1095 = vsel %vm1087, %v1039, -1e+30
        %v1096 = vsel %vm1088, %v1040, -1e+30
        %v1097 = vsel %vm1089, %v1041, -1e+30
        %v1098 = vsel %vm1090, %v1042, -1e+30
        %v1099 = vsel %vm1091, %v1043, -1e+30
        %v1100 = vsel %vm1092, %v1044, -1e+30
        %v1101 = vsel %vm1093, %v1045, -1e+30
        %v1102 = vsel %vm1094, %v1046, -1e+30
        %v1103 = vmax.f32 %v1071, %v1095
        %v1104 = vmax.f32 %v1072, %v1096
        %v1105 = vmax.f32 %v1073, %v1097
        %v1106 = vmax.f32 %v1074, %v1098
        %v1107 = vmax.f32 %v1075, %v1099
        %v1108 = vmax.f32 %v1076, %v1100
        %v1109 = vmax.f32 %v1077, %v1101
        %v1110 = vmax.f32 %v1078, %v1102
        %1111 = vst.msk [vmem:[#allocation4] sm:$0xff] %vm762, %v1103
        %1112 = vst.msk [vmem:[#allocation4 + $0x8] sm:$0xff] %vm762, %v1104
        %1113 = vst.msk [vmem:[#allocation4 + $0x10] sm:$0xff] %vm762, %v1105
        %1114 = vst.msk [vmem:[#allocation4 + $0x18] sm:$0xff] %vm762, %v1106
        %1115 = vst.msk [vmem:[#allocation4 + $0x20] sm:$0xff] %vm762, %v1107
        %1116 = vst.msk [vmem:[#allocation4 + $0x28] sm:$0xff] %vm762, %v1108
        %1117 = vst.msk [vmem:[#allocation4 + $0x30] sm:$0xff] %vm762, %v1109
        %1118 = vst.msk [vmem:[#allocation4 + $0x38] sm:$0xff] %vm762, %v1110
        %v1119 = vld [vmem:[#allocation5] sm:$0xff]
        %v1120 = vld [vmem:[#allocation5 + $0x8] sm:$0xff]
        %v1121 = vld [vmem:[#allocation5 + $0x10] sm:$0xff]
        %v1122 = vld [vmem:[#allocation5 + $0x18] sm:$0xff]
        %v1123 = vld [vmem:[#allocation5 + $0x20] sm:$0xff]
        %v1124 = vld [vmem:[#allocation5 + $0x28] sm:$0xff]
        %v1125 = vld [vmem:[#allocation5 + $0x30] sm:$0xff]
        %v1126 = vld [vmem:[#allocation5 + $0x38] sm:$0xff]
        %v1127 = vcvt.s32.f32 %v1079
        %v1128 = vcvt.s32.f32 %v1080
        %v1129 = vcvt.s32.f32 %v1081
        %v1130 = vcvt.s32.f32 %v1082
        %v1131 = vcvt.s32.f32 %v1083
        %v1132 = vcvt.s32.f32 %v1084
        %v1133 = vcvt.s32.f32 %v1085
        %v1134 = vcvt.s32.f32 %v1086
        %v1135 = vadd.f32 %v1119, %v1127
        %v1136 = vadd.f32 %v1120, %v1128
        %v1137 = vadd.f32 %v1121, %v1129
        %v1138 = vadd.f32 %v1122, %v1130
        %v1139 = vadd.f32 %v1123, %v1131
        %v1140 = vadd.f32 %v1124, %v1132
        %v1141 = vadd.f32 %v1125, %v1133
        %v1142 = vadd.f32 %v1126, %v1134
        %1143 = vst.msk [vmem:[#allocation5] sm:$0xff] %vm779, %v1135
        %1144 = vst.msk [vmem:[#allocation5 + $0x8] sm:$0xff] %vm779, %v1136
        %1145 = vst.msk [vmem:[#allocation5 + $0x10] sm:$0xff] %vm779, %v1137
        %1146 = vst.msk [vmem:[#allocation5 + $0x18] sm:$0xff] %vm779, %v1138
        %1147 = vst.msk [vmem:[#allocation5 + $0x20] sm:$0xff] %vm779, %v1139
        %1148 = vst.msk [vmem:[#allocation5 + $0x28] sm:$0xff] %vm779, %v1140
        %1149 = vst.msk [vmem:[#allocation5 + $0x30] sm:$0xff] %vm779, %v1141
        %1150 = vst.msk [vmem:[#allocation5 + $0x38] sm:$0xff] %vm779, %v1142
      $region73: #{gravnet_block.4} parent=67 // loop_footer
        %s793 = sadd.s32 1, %s789
      $region74: #{gravnet_block.4} parent=67 // loop_footer_branch
        %788 = sbr.rel target = $region70
      $region75: #{gravnet_block.4} parent=67 // loop_exit
        _
      %v1151 = vld [vmem:[#allocation5] sm:$0xff]
      %v1152 = vld [vmem:[#allocation5 + $0x8] sm:$0xff]
      %v1153 = vld [vmem:[#allocation5 + $0x10] sm:$0xff]
      %v1154 = vld [vmem:[#allocation5 + $0x18] sm:$0xff]
      %v1155 = vld [vmem:[#allocation5 + $0x20] sm:$0xff]
      %v1156 = vld [vmem:[#allocation5 + $0x28] sm:$0xff]
      %v1157 = vld [vmem:[#allocation5 + $0x30] sm:$0xff]
      %v1158 = vld [vmem:[#allocation5 + $0x38] sm:$0xff]
      %v1159 = vld [vmem:[#allocation3] sm:$0xff]
      %v1160 = vld [vmem:[#allocation3 + $0x8] sm:$0xff]
      %v1161 = vld [vmem:[#allocation3 + $0x10] sm:$0xff]
      %v1162 = vld [vmem:[#allocation3 + $0x18] sm:$0xff]
      %v1163 = vld [vmem:[#allocation3 + $0x20] sm:$0xff]
      %v1164 = vld [vmem:[#allocation3 + $0x28] sm:$0xff]
      %v1165 = vld [vmem:[#allocation3 + $0x30] sm:$0xff]
      %v1166 = vld [vmem:[#allocation3 + $0x38] sm:$0xff]
      %v1167 = vmax.f32 %v1151, 1.0
      %v1168 = vmax.f32 %v1152, 1.0
      %v1169 = vmax.f32 %v1153, 1.0
      %v1170 = vmax.f32 %v1154, 1.0
      %v1171 = vmax.f32 %v1155, 1.0
      %v1172 = vmax.f32 %v1156, 1.0
      %v1173 = vmax.f32 %v1157, 1.0
      %v1174 = vmax.f32 %v1158, 1.0
      %1176 = vset.pattern.permute.xlu0 0
      %1177 = vperm.xlu0 %1176, %v1167
      %v1178 = vpop.permute.xlu0 %1177
      %1181 = vset.pattern.permute.xlu0 0
      %1182 = vperm.xlu0 %1181, %v1168
      %v1183 = vpop.permute.xlu0 %1182
      %1186 = vset.pattern.permute.xlu0 0
      %1187 = vperm.xlu0 %1186, %v1169
      %v1188 = vpop.permute.xlu0 %1187
      %1191 = vset.pattern.permute.xlu0 0
      %1192 = vperm.xlu0 %1191, %v1170
      %v1193 = vpop.permute.xlu0 %1192
      %1196 = vset.pattern.permute.xlu0 0
      %1197 = vperm.xlu0 %1196, %v1171
      %v1198 = vpop.permute.xlu0 %1197
      %1201 = vset.pattern.permute.xlu0 0
      %1202 = vperm.xlu0 %1201, %v1172
      %v1203 = vpop.permute.xlu0 %1202
      %1206 = vset.pattern.permute.xlu0 0
      %1207 = vperm.xlu0 %1206, %v1173
      %v1208 = vpop.permute.xlu0 %1207
      %1211 = vset.pattern.permute.xlu0 0
      %1212 = vperm.xlu0 %1211, %v1174
      %v1213 = vpop.permute.xlu0 %1212
      %v1215 = vrcp.pop %v1178
      %v1216 = vmul.f32 %v1159, %v1215
      %v1217 = vrcp.pop %v1183
      %v1218 = vmul.f32 %v1160, %v1217
      %v1219 = vrcp.pop %v1188
      %v1220 = vmul.f32 %v1161, %v1219
      %v1221 = vrcp.pop %v1193
      %v1222 = vmul.f32 %v1162, %v1221
      %v1223 = vrcp.pop %v1198
      %v1224 = vmul.f32 %v1163, %v1223
      %v1225 = vrcp.pop %v1203
      %v1226 = vmul.f32 %v1164, %v1225
      %v1227 = vrcp.pop %v1208
      %v1228 = vmul.f32 %v1165, %v1227
      %v1229 = vrcp.pop %v1213
      %v1230 = vmul.f32 %v1166, %v1229
      %vm1231 = vcmp.gt.f32.partialorder %v1151, 0.0
      %vm1232 = vcmp.gt.f32.partialorder %v1152, 0.0
      %vm1233 = vcmp.gt.f32.partialorder %v1153, 0.0
      %vm1234 = vcmp.gt.f32.partialorder %v1154, 0.0
      %vm1235 = vcmp.gt.f32.partialorder %v1155, 0.0
      %vm1236 = vcmp.gt.f32.partialorder %v1156, 0.0
      %vm1237 = vcmp.gt.f32.partialorder %v1157, 0.0
      %vm1238 = vcmp.gt.f32.partialorder %v1158, 0.0
      %v1239 = vld [vmem:[#allocation4] sm:$0xff]
      %v1240 = vld [vmem:[#allocation4 + $0x8] sm:$0xff]
      %v1241 = vld [vmem:[#allocation4 + $0x10] sm:$0xff]
      %v1242 = vld [vmem:[#allocation4 + $0x18] sm:$0xff]
      %v1243 = vld [vmem:[#allocation4 + $0x20] sm:$0xff]
      %v1244 = vld [vmem:[#allocation4 + $0x28] sm:$0xff]
      %v1245 = vld [vmem:[#allocation4 + $0x30] sm:$0xff]
      %v1246 = vld [vmem:[#allocation4 + $0x38] sm:$0xff]
      %v1247 = vsel %vm1231, 1, 0
      %v1248 = vsel %vm1232, 1, 0
      %v1249 = vsel %vm1233, 1, 0
      %v1250 = vsel %vm1234, 1, 0
      %v1251 = vsel %vm1235, 1, 0
      %v1252 = vsel %vm1236, 1, 0
      %v1253 = vsel %vm1237, 1, 0
      %v1254 = vsel %vm1238, 1, 0
      %1255 = vset.pattern.permute.xlu0 0
      %1256 = vperm.xlu0 %1255, %v1247
      %v1257 = vpop.permute.xlu0 %1256
      %1258 = vset.pattern.permute.xlu0 0
      %1259 = vperm.xlu0 %1258, %v1248
      %v1260 = vpop.permute.xlu0 %1259
      %1261 = vset.pattern.permute.xlu0 0
      %1262 = vperm.xlu0 %1261, %v1249
      %v1263 = vpop.permute.xlu0 %1262
      %1264 = vset.pattern.permute.xlu0 0
      %1265 = vperm.xlu0 %1264, %v1250
      %v1266 = vpop.permute.xlu0 %1265
      %1267 = vset.pattern.permute.xlu0 0
      %1268 = vperm.xlu0 %1267, %v1251
      %v1269 = vpop.permute.xlu0 %1268
      %1270 = vset.pattern.permute.xlu0 0
      %1271 = vperm.xlu0 %1270, %v1252
      %v1272 = vpop.permute.xlu0 %1271
      %1273 = vset.pattern.permute.xlu0 0
      %1274 = vperm.xlu0 %1273, %v1253
      %v1275 = vpop.permute.xlu0 %1274
      %1276 = vset.pattern.permute.xlu0 0
      %1277 = vperm.xlu0 %1276, %v1254
      %v1278 = vpop.permute.xlu0 %1277
      %vm1279 = vcmp.eq.s32.totalorder %v1257, 1
      %vm1280 = vcmp.eq.s32.totalorder %v1260, 1
      %vm1281 = vcmp.eq.s32.totalorder %v1263, 1
      %vm1282 = vcmp.eq.s32.totalorder %v1266, 1
      %vm1283 = vcmp.eq.s32.totalorder %v1269, 1
      %vm1284 = vcmp.eq.s32.totalorder %v1272, 1
      %vm1285 = vcmp.eq.s32.totalorder %v1275, 1
      %vm1286 = vcmp.eq.s32.totalorder %v1278, 1
      %v1287 = vsel %vm1279, %v1239, 0.0
      %v1288 = vsel %vm1280, %v1240, 0.0
      %v1289 = vsel %vm1281, %v1241, 0.0
      %v1290 = vsel %vm1282, %v1242, 0.0
      %v1291 = vsel %vm1283, %v1243, 0.0
      %v1292 = vsel %vm1284, %v1244, 0.0
      %v1293 = vsel %vm1285, %v1245, 0.0
      %v1294 = vsel %vm1286, %v1246, 0.0
      %v1295 = vld [vmem:[%s447] sm:$0xff]
      %v1296 = vld [vmem:[%s447 + $0x8] sm:$0xff]
      %v1297 = vld [vmem:[%s447 + $0x10] sm:$0xff]
      %v1298 = vld [vmem:[%s447 + $0x18] sm:$0xff]
      %v1299 = vld [vmem:[%s447 + $0x20] sm:$0xff]
      %v1300 = vld [vmem:[%s447 + $0x28] sm:$0xff]
      %v1301 = vld [vmem:[%s447 + $0x30] sm:$0xff]
      %v1302 = vld [vmem:[%s447 + $0x38] sm:$0xff]
      %1311 = vrot.lane.b32.xlu0 %v1216, 32
      %v1312 = vpop.permute.xlu0 %1311
      %1313 = vrot.lane.b32.xlu0 %v1218, 32
      %v1314 = vpop.permute.xlu0 %1313
      %1315 = vrot.lane.b32.xlu0 %v1220, 32
      %v1316 = vpop.permute.xlu0 %1315
      %1317 = vrot.lane.b32.xlu0 %v1222, 32
      %v1318 = vpop.permute.xlu0 %1317
      %1319 = vrot.lane.b32.xlu0 %v1224, 32
      %v1320 = vpop.permute.xlu0 %1319
      %1321 = vrot.lane.b32.xlu0 %v1226, 32
      %v1322 = vpop.permute.xlu0 %1321
      %1323 = vrot.lane.b32.xlu0 %v1228, 32
      %v1324 = vpop.permute.xlu0 %1323
      %1325 = vrot.lane.b32.xlu0 %v1230, 32
      %v1326 = vpop.permute.xlu0 %1325
      %1343 = vrot.lane.b32.xlu0 %v1287, 64
      %v1344 = vpop.permute.xlu0 %1343
      %1345 = vrot.lane.b32.xlu0 %v1288, 64
      %v1346 = vpop.permute.xlu0 %1345
      %1347 = vrot.lane.b32.xlu0 %v1289, 64
      %v1348 = vpop.permute.xlu0 %1347
      %1349 = vrot.lane.b32.xlu0 %v1290, 64
      %v1350 = vpop.permute.xlu0 %1349
      %1351 = vrot.lane.b32.xlu0 %v1291, 64
      %v1352 = vpop.permute.xlu0 %1351
      %1353 = vrot.lane.b32.xlu0 %v1292, 64
      %v1354 = vpop.permute.xlu0 %1353
      %1355 = vrot.lane.b32.xlu0 %v1293, 64
      %v1356 = vpop.permute.xlu0 %1355
      %1357 = vrot.lane.b32.xlu0 %v1294, 64
      %v1358 = vpop.permute.xlu0 %1357
      %v1367 = vsel %vm762, %v1295, %v1312
      %v1368 = vsel %vm762, %v1296, %v1314
      %v1369 = vsel %vm762, %v1297, %v1316
      %v1370 = vsel %vm762, %v1298, %v1318
      %v1371 = vsel %vm762, %v1299, %v1320
      %v1372 = vsel %vm762, %v1300, %v1322
      %v1373 = vsel %vm762, %v1301, %v1324
      %v1374 = vsel %vm762, %v1302, %v1326
      %vm1375 = vcmask 523264
      %v1376 = vsel %vm1375, %v1367, %v1344
      %v1377 = vsel %vm1375, %v1368, %v1346
      %v1378 = vsel %vm1375, %v1369, %v1348
      %v1379 = vsel %vm1375, %v1370, %v1350
      %v1380 = vsel %vm1375, %v1371, %v1352
      %v1381 = vsel %vm1375, %v1372, %v1354
      %v1382 = vsel %vm1375, %v1373, %v1356
      %v1383 = vsel %vm1375, %v1374, %v1358
      %v1384 = vld [vmem:[%s6] sm:$0xf]
      %v1385 = vld [vmem:[%s6 + $0x4] sm:$0xf]
      %v1386 = vld [vmem:[%s6 + $0x8] sm:$0xf]
      %v1387 = vld [vmem:[%s6 + $0xc] sm:$0xf]
      %v1388 = vld [vmem:[%s6 + $0x10] sm:$0xf]
      %v1389 = vld [vmem:[%s6 + $0x14] sm:$0xf]
      %v1390 = vld [vmem:[%s6 + $0x18] sm:$0xf]
      %v1391 = vld [vmem:[%s6 + $0x1c] sm:$0xf]
      %v1392 = vld [vmem:[%s6 + $0x20] sm:$0xf]
      %v1393 = vld [vmem:[%s6 + $0x24] sm:$0xf]
      %v1394 = vld [vmem:[%s6 + $0x28] sm:$0xf]
      %v1395 = vld [vmem:[%s6 + $0x2c] sm:$0xf]
      %v1396 = vpack.c.bf16 %v1377, %v1376
      %v1397 = vpack.c.bf16 %v1379, %v1378
      %v1398 = vpack.c.bf16 %v1381, %v1380
      %v1399 = vpack.c.bf16 %v1383, %v1382
      %v1400 = vld [vmem:[%s7] sm:$0x1]
      %v1402 = vlaneseq
      %v1403 = vshrl.u32 %v1402, 7
      %v1404 = vsub.s32 0, %v1403
      %v1405 = vrot.slane %v1400, %v1404
      %v1419 = vunpack.c.l.b16 %v1384
      %v1420 = vunpack.c.l.b16 %v1385
      %v1421 = vunpack.c.l.b16 %v1386
      %v1422 = vunpack.c.l.b16 %v1387
      %v1423 = vunpack.c.l.b16 %v1388
      %v1424 = vunpack.c.l.b16 %v1389
      %v1425 = vunpack.c.l.b16 %v1390
      %v1426 = vunpack.c.l.b16 %v1391
      %v1427 = vunpack.c.l.b16 %v1392
      %v1428 = vunpack.c.l.b16 %v1393
      %v1429 = vunpack.c.l.b16 %v1394
      %v1430 = vunpack.c.l.b16 %v1395
      %v1431 = vpack.c.b16 %v1420, %v1419
      %v1432 = vpack.c.b16 %v1422, %v1421
      %v1433 = vpack.c.b16 %v1424, %v1423
      %v1434 = vpack.c.b16 %v1426, %v1425
      %v1435 = vpack.c.b16 %v1428, %v1427
      %v1436 = vpack.c.b16 %v1430, %v1429
      %vm1443 = vcmask 785408
      %v1445 = vsel %vm1443, %v1396, 0
      %v1448 = vsel %vm1443, %v1397, 0
      %v1451 = vsel %vm1443, %v1398, 0
      %v1454 = vsel %vm1443, %v1399, 0
      %1456 = vmatprep.subr.bf16.mxu0 0
      %1457 = vmatpush1.bf16.msra.mxu0 %v1431
      %1458 = vmatprep.subr.bf16.mxu0 0
      %1459 = vmatpush1.bf16.msra.mxu0 %v1432
      %1460 = vmatprep.subr.bf16.mxu0 0
      %1461 = vmatpush1.bf16.msra.mxu0 %v1433
      %1462 = vmatprep.subr.bf16.mxu0 0
      %1463 = vmatpush1.bf16.msra.mxu0 %v1434
      %1464 = vmatprep.subr.bf16.mxu0 0
      %1465 = vmatpush1.bf16.msra.mxu0 %v1435
      %1466 = vmatprep.subr.bf16.mxu0 0
      %1467 = vmatpush1.bf16.msra.mxu0 %v1436
      %1468 = vmatprep.subr.bf16.mxu0 0
      %1469 = vmatpush1.bf16.msra.mxu0 0
      %1470 = vmatprep.subr.bf16.mxu0 0
      %1471 = vmatpush1.bf16.msra.mxu0 0
      %1472 = vmatprep.subr.bf16.mxu0 0
      %1473 = vmatpush1.bf16.msra.mxu0 0
      %1474 = vmatprep.subr.bf16.mxu0 0
      %1475 = vmatpush1.bf16.msra.mxu0 0
      %1476 = vmatprep.subr.bf16.mxu0 0
      %1477 = vmatpush1.bf16.msra.mxu0 0
      %1478 = vmatprep.subr.bf16.mxu0 0
      %1479 = vmatpush1.bf16.msra.mxu0 0
      %1480 = vmatprep.subr.bf16.mxu0 0
      %1481 = vmatpush1.bf16.msra.mxu0 0
      %1482 = vmatprep.subr.bf16.mxu0 0
      %1483 = vmatpush1.bf16.msra.mxu0 0
      %1484 = vmatprep.subr.bf16.mxu0 0
      %1485 = vmatpush1.bf16.msra.mxu0 0
      %1486 = vmatprep.subr.bf16.mxu0 0
      %1487 = vmatpush1.bf16.msra.mxu0 0
      %1488 = vmatprep.mubr.bf16.mxu0 0
      %1489 = vmatmul.mubr.bf16.gmra.mrb[0].mxu0 %v1445
      %v1490 = vpop.f32.mrb[0].mxu0
      %v1491 = vadd.f32 %v1405, %v1490
      %v1492 = vpop.f32.mrb[0].mxu0
      %v1493 = vpop.f32.mrb[0].mxu0
      %v1494 = vadd.f32 %v1405, %v1493
      %v1495 = vpop.f32.mrb[0].mxu0
      %1496 = vmatprep.mubr.bf16.mxu0 0
      %1497 = vmatmul.mubr.bf16.gmra.mrb[0].mxu0 %v1448
      %v1498 = vpop.f32.mrb[0].mxu0
      %v1499 = vadd.f32 %v1405, %v1498
      %v1500 = vpop.f32.mrb[0].mxu0
      %v1501 = vpop.f32.mrb[0].mxu0
      %v1502 = vadd.f32 %v1405, %v1501
      %v1503 = vpop.f32.mrb[0].mxu0
      %1504 = vmatprep.mubr.bf16.mxu0 0
      %1505 = vmatmul.mubr.bf16.gmra.mrb[0].mxu0 %v1451
      %v1506 = vpop.f32.mrb[0].mxu0
      %v1507 = vadd.f32 %v1405, %v1506
      %v1508 = vpop.f32.mrb[0].mxu0
      %v1509 = vpop.f32.mrb[0].mxu0
      %v1510 = vadd.f32 %v1405, %v1509
      %v1511 = vpop.f32.mrb[0].mxu0
      %1512 = vmatprep.mubr.bf16.mxu0 0
      %1513 = vmatmul.mubr.bf16.gmra.mrb[0].mxu0 %v1454
      %v1514 = vpop.f32.mrb[0].mxu0
      %v1515 = vadd.f32 %v1405, %v1514
      %v1516 = vpop.f32.mrb[0].mxu0
      %v1517 = vpop.f32.mrb[0].mxu0
      %v1518 = vadd.f32 %v1405, %v1517
      %v1519 = vpop.f32.mrb[0].mxu0
      %1520 = vdwg.mxu0
      %1521 = vrot.lane.b32.xlu0 %v462, 32
      %v1522 = vpop.permute.xlu0 %1521
      %1523 = vrot.lane.b32.xlu0 %v463, 32
      %v1524 = vpop.permute.xlu0 %1523
      %1525 = vrot.lane.b32.xlu0 %v464, 32
      %v1526 = vpop.permute.xlu0 %1525
      %1527 = vrot.lane.b32.xlu0 %v465, 32
      %v1528 = vpop.permute.xlu0 %1527
      %1529 = vrot.lane.b32.xlu0 %v466, 32
      %v1530 = vpop.permute.xlu0 %1529
      %1531 = vrot.lane.b32.xlu0 %v467, 32
      %v1532 = vpop.permute.xlu0 %1531
      %1533 = vrot.lane.b32.xlu0 %v468, 32
      %v1534 = vpop.permute.xlu0 %1533
      %1535 = vrot.lane.b32.xlu0 %v469, 32
      %v1536 = vpop.permute.xlu0 %1535
      %1553 = vrot.lane.b32.xlu0 %v1295, 40
      %v1554 = vpop.permute.xlu0 %1553
      %1555 = vrot.lane.b32.xlu0 %v1296, 40
      %v1556 = vpop.permute.xlu0 %1555
      %1557 = vrot.lane.b32.xlu0 %v1297, 40
      %v1558 = vpop.permute.xlu0 %1557
      %1559 = vrot.lane.b32.xlu0 %v1298, 40
      %v1560 = vpop.permute.xlu0 %1559
      %1561 = vrot.lane.b32.xlu0 %v1299, 40
      %v1562 = vpop.permute.xlu0 %1561
      %1563 = vrot.lane.b32.xlu0 %v1300, 40
      %v1564 = vpop.permute.xlu0 %1563
      %1565 = vrot.lane.b32.xlu0 %v1301, 40
      %v1566 = vpop.permute.xlu0 %1565
      %1567 = vrot.lane.b32.xlu0 %v1302, 40
      %v1568 = vpop.permute.xlu0 %1567
      %v1577 = vsel %vm762, %v1491, %v1522
      %v1578 = vsel %vm762, %v1494, %v1524
      %v1579 = vsel %vm762, %v1499, %v1526
      %v1580 = vsel %vm762, %v1502, %v1528
      %v1581 = vsel %vm762, %v1507, %v1530
      %v1582 = vsel %vm762, %v1510, %v1532
      %v1583 = vsel %vm762, %v1515, %v1534
      %v1584 = vsel %vm762, %v1518, %v1536
      %vm1585 = vcmask 326656
      %v1586 = vsel %vm1585, %v1577, %v1554
      %v1587 = vsel %vm1585, %v1578, %v1556
      %v1588 = vsel %vm1585, %v1579, %v1558
      %v1589 = vsel %vm1585, %v1580, %v1560
      %v1590 = vsel %vm1585, %v1581, %v1562
      %v1591 = vsel %vm1585, %v1582, %v1564
      %v1592 = vsel %vm1585, %v1583, %v1566
      %v1593 = vsel %vm1585, %v1584, %v1568
      %v1594 = vld [vmem:[%s8] sm:$0xf]
      %v1595 = vld [vmem:[%s8 + $0x4] sm:$0xf]
      %v1596 = vld [vmem:[%s8 + $0x8] sm:$0xf]
      %v1597 = vld [vmem:[%s8 + $0xc] sm:$0xf]
      %v1598 = vld [vmem:[%s8 + $0x10] sm:$0xf]
      %v1599 = vld [vmem:[%s8 + $0x14] sm:$0xf]
      %v1600 = vld [vmem:[%s8 + $0x18] sm:$0xf]
      %v1601 = vld [vmem:[%s8 + $0x1c] sm:$0xf]
      %v1602 = vld [vmem:[%s8 + $0x20] sm:$0xf]
      %v1603 = vpack.c.bf16 %v1587, %v1586
      %v1604 = vpack.c.bf16 %v1589, %v1588
      %v1605 = vpack.c.bf16 %v1591, %v1590
      %v1606 = vpack.c.bf16 %v1593, %v1592
      %v1607 = vld [vmem:[%s9] sm:$0x1]
      %v1609 = vlaneseq
      %v1610 = vshrl.u32 %v1609, 7
      %v1611 = vsub.s32 0, %v1610
      %v1612 = vrot.slane %v1607, %v1611
      %v1623 = vunpack.c.l.b16 %v1594
      %v1624 = vunpack.c.l.b16 %v1595
      %v1625 = vunpack.c.l.b16 %v1596
      %v1626 = vunpack.c.l.b16 %v1597
      %v1627 = vunpack.c.l.b16 %v1598
      %v1628 = vunpack.c.l.b16 %v1599
      %v1629 = vunpack.c.l.b16 %v1600
      %v1630 = vunpack.c.l.b16 %v1601
      %v1631 = vunpack.c.l.b16 %v1602
      %v1632 = vpack.c.b16 %v1624, %v1623
      %v1633 = vpack.c.b16 %v1626, %v1625
      %v1634 = vpack.c.b16 %v1628, %v1627
      %v1635 = vpack.c.b16 %v1630, %v1629
      %v1636 = vpack.c.b16 %v1631, %v1631
      %vm1641 = vcmask 588800
      %v1643 = vsel %vm1641, %v1603, 0
      %v1646 = vsel %vm1641, %v1604, 0
      %v1649 = vsel %vm1641, %v1605, 0
      %v1652 = vsel %vm1641, %v1606, 0
      %vm1654 = vcmask 1043456
      %v1656 = vsel %vm1654, %v1636, 0
      %1658 = vmatprep.subr.bf16.mxu0 0
      %1659 = vmatpush1.bf16.msra.mxu0 %v1632
      %1660 = vmatprep.subr.bf16.mxu0 0
      %1661 = vmatpush1.bf16.msra.mxu0 %v1633
      %1662 = vmatprep.subr.bf16.mxu0 0
      %1663 = vmatpush1.bf16.msra.mxu0 %v1634
      %1664 = vmatprep.subr.bf16.mxu0 0
      %1665 = vmatpush1.bf16.msra.mxu0 %v1635
      %1666 = vmatprep.subr.bf16.mxu0 0
      %1667 = vmatpush1.bf16.msra.mxu0 %v1656
      %1668 = vmatprep.subr.bf16.mxu0 0
      %1669 = vmatpush1.bf16.msra.mxu0 0
      %1670 = vmatprep.subr.bf16.mxu0 0
      %1671 = vmatpush1.bf16.msra.mxu0 0
      %1672 = vmatprep.subr.bf16.mxu0 0
      %1673 = vmatpush1.bf16.msra.mxu0 0
      %1674 = vmatprep.subr.bf16.mxu0 0
      %1675 = vmatpush1.bf16.msra.mxu0 0
      %1676 = vmatprep.subr.bf16.mxu0 0
      %1677 = vmatpush1.bf16.msra.mxu0 0
      %1678 = vmatprep.subr.bf16.mxu0 0
      %1679 = vmatpush1.bf16.msra.mxu0 0
      %1680 = vmatprep.subr.bf16.mxu0 0
      %1681 = vmatpush1.bf16.msra.mxu0 0
      %1682 = vmatprep.subr.bf16.mxu0 0
      %1683 = vmatpush1.bf16.msra.mxu0 0
      %1684 = vmatprep.subr.bf16.mxu0 0
      %1685 = vmatpush1.bf16.msra.mxu0 0
      %1686 = vmatprep.subr.bf16.mxu0 0
      %1687 = vmatpush1.bf16.msra.mxu0 0
      %1688 = vmatprep.subr.bf16.mxu0 0
      %1689 = vmatpush1.bf16.msra.mxu0 0
      %1690 = vmatprep.mubr.bf16.mxu0 0
      %1691 = vmatmul.mubr.bf16.gmra.mrb[0].mxu0 %v1643
      %v1692 = vpop.f32.mrb[0].mxu0
      %v1693 = vadd.f32 %v1612, %v1692
      %v1694 = vpop.f32.mrb[0].mxu0
      %v1695 = vpop.f32.mrb[0].mxu0
      %v1696 = vadd.f32 %v1612, %v1695
      %v1697 = vpop.f32.mrb[0].mxu0
      %1698 = vmatprep.mubr.bf16.mxu0 0
      %1699 = vmatmul.mubr.bf16.gmra.mrb[0].mxu0 %v1646
      %v1700 = vpop.f32.mrb[0].mxu0
      %v1701 = vadd.f32 %v1612, %v1700
      %v1702 = vpop.f32.mrb[0].mxu0
      %v1703 = vpop.f32.mrb[0].mxu0
      %v1704 = vadd.f32 %v1612, %v1703
      %v1705 = vpop.f32.mrb[0].mxu0
      %1706 = vmatprep.mubr.bf16.mxu0 0
      %1707 = vmatmul.mubr.bf16.gmra.mrb[0].mxu0 %v1649
      %v1708 = vpop.f32.mrb[0].mxu0
      %v1709 = vadd.f32 %v1612, %v1708
      %v1710 = vpop.f32.mrb[0].mxu0
      %v1711 = vpop.f32.mrb[0].mxu0
      %v1712 = vadd.f32 %v1612, %v1711
      %v1713 = vpop.f32.mrb[0].mxu0
      %1714 = vmatprep.mubr.bf16.mxu0 0
      %1715 = vmatmul.mubr.bf16.gmra.mrb[0].mxu0 %v1652
      %v1716 = vpop.f32.mrb[0].mxu0
      %v1717 = vadd.f32 %v1612, %v1716
      %v1718 = vpop.f32.mrb[0].mxu0
      %v1719 = vpop.f32.mrb[0].mxu0
      %v1720 = vadd.f32 %v1612, %v1719
      %v1721 = vpop.f32.mrb[0].mxu0
      %1722 = vdwg.mxu0
      %vm1723 = vcmp.gt.f32.partialorder %v1693, 0.0
      %vm1724 = vcmp.gt.f32.partialorder %v1696, 0.0
      %vm1725 = vcmp.gt.f32.partialorder %v1701, 0.0
      %vm1726 = vcmp.gt.f32.partialorder %v1704, 0.0
      %vm1727 = vcmp.gt.f32.partialorder %v1709, 0.0
      %vm1728 = vcmp.gt.f32.partialorder %v1712, 0.0
      %vm1729 = vcmp.gt.f32.partialorder %v1717, 0.0
      %vm1730 = vcmp.gt.f32.partialorder %v1720, 0.0
      %v1731 = vmin.f32 %v1693, 0.0
      %v1732 = vmin.f32 %v1696, 0.0
      %v1733 = vmin.f32 %v1701, 0.0
      %v1734 = vmin.f32 %v1704, 0.0
      %v1735 = vmin.f32 %v1709, 0.0
      %v1736 = vmin.f32 %v1712, 0.0
      %v1737 = vmin.f32 %v1717, 0.0
      %v1738 = vmin.f32 %v1720, 0.0
      %v1739 = vmul.f32 %v1731, 1.442695
      %v1740 = vpow.pop %v1739
      %v1741 = vmul.f32 %v1732, 1.442695
      %v1742 = vpow.pop %v1741
      %v1743 = vmul.f32 %v1733, 1.442695
      %v1744 = vpow.pop %v1743
      %v1745 = vmul.f32 %v1734, 1.442695
      %v1746 = vpow.pop %v1745
      %v1747 = vmul.f32 %v1735, 1.442695
      %v1748 = vpow.pop %v1747
      %v1749 = vmul.f32 %v1736, 1.442695
      %v1750 = vpow.pop %v1749
      %v1751 = vmul.f32 %v1737, 1.442695
      %v1752 = vpow.pop %v1751
      %v1753 = vmul.f32 %v1738, 1.442695
      %v1754 = vpow.pop %v1753
      %v1755 = vsub.f32 %v1740, 1.0
      %v1756 = vsub.f32 %v1742, 1.0
      %v1757 = vsub.f32 %v1744, 1.0
      %v1758 = vsub.f32 %v1746, 1.0
      %v1759 = vsub.f32 %v1748, 1.0
      %v1760 = vsub.f32 %v1750, 1.0
      %v1761 = vsub.f32 %v1752, 1.0
      %v1762 = vsub.f32 %v1754, 1.0
      %v1763 = vsel %vm1723, %v1693, %v1755
      %v1764 = vsel %vm1724, %v1696, %v1756
      %v1765 = vsel %vm1725, %v1701, %v1757
      %v1766 = vsel %vm1726, %v1704, %v1758
      %v1767 = vsel %vm1727, %v1709, %v1759
      %v1768 = vsel %vm1728, %v1712, %v1760
      %v1769 = vsel %vm1729, %v1717, %v1761
      %v1770 = vsel %vm1730, %v1720, %v1762
      %v1771 = vld [vmem:[%s10] sm:$0xf]
      %v1772 = vld [vmem:[%s10 + $0x4] sm:$0xf]
      %v1773 = vld [vmem:[%s10 + $0x8] sm:$0xf]
      %v1774 = vld [vmem:[%s10 + $0xc] sm:$0xf]
      %v1775 = vpack.c.bf16 %v1764, %v1763
      %v1776 = vpack.c.bf16 %v1766, %v1765
      %v1777 = vpack.c.bf16 %v1768, %v1767
      %v1778 = vpack.c.bf16 %v1770, %v1769
      %v1779 = vld [vmem:[%s11] sm:$0x1]
      %v1781 = vlaneseq
      %v1782 = vshrl.u32 %v1781, 7
      %v1783 = vsub.s32 0, %v1782
      %v1784 = vrot.slane %v1779, %v1783
      %v1790 = vunpack.c.l.b16 %v1771
      %v1791 = vunpack.c.l.b16 %v1772
      %v1792 = vunpack.c.l.b16 %v1773
      %v1793 = vunpack.c.l.b16 %v1774
      %v1794 = vpack.c.b16 %v1791, %v1790
      %v1795 = vpack.c.b16 %v1793, %v1792
      %v1799 = vsel %vm762, %v1775, 0
      %v1802 = vsel %vm762, %v1776, 0
      %v1805 = vsel %vm762, %v1777, 0
      %v1808 = vsel %vm762, %v1778, 0
      %1810 = vmatprep.subr.bf16.mxu0 0
      %1811 = vmatpush1.bf16.msra.mxu0 %v1794
      %1812 = vmatprep.subr.bf16.mxu0 0
      %1813 = vmatpush1.bf16.msra.mxu0 %v1795
      %1814 = vmatprep.subr.bf16.mxu0 0
      %1815 = vmatpush1.bf16.msra.mxu0 0
      %1816 = vmatprep.subr.bf16.mxu0 0
      %1817 = vmatpush1.bf16.msra.mxu0 0
      %1818 = vmatprep.subr.bf16.mxu0 0
      %1819 = vmatpush1.bf16.msra.mxu0 0
      %1820 = vmatprep.subr.bf16.mxu0 0
      %1821 = vmatpush1.bf16.msra.mxu0 0
      %1822 = vmatprep.subr.bf16.mxu0 0
      %1823 = vmatpush1.bf16.msra.mxu0 0
      %1824 = vmatprep.subr.bf16.mxu0 0
      %1825 = vmatpush1.bf16.msra.mxu0 0
      %1826 = vmatprep.subr.bf16.mxu0 0
      %1827 = vmatpush1.bf16.msra.mxu0 0
      %1828 = vmatprep.subr.bf16.mxu0 0
      %1829 = vmatpush1.bf16.msra.mxu0 0
      %1830 = vmatprep.subr.bf16.mxu0 0
      %1831 = vmatpush1.bf16.msra.mxu0 0
      %1832 = vmatprep.subr.bf16.mxu0 0
      %1833 = vmatpush1.bf16.msra.mxu0 0
      %1834 = vmatprep.subr.bf16.mxu0 0
      %1835 = vmatpush1.bf16.msra.mxu0 0
      %1836 = vmatprep.subr.bf16.mxu0 0
      %1837 = vmatpush1.bf16.msra.mxu0 0
      %1838 = vmatprep.subr.bf16.mxu0 0
      %1839 = vmatpush1.bf16.msra.mxu0 0
      %1840 = vmatprep.subr.bf16.mxu0 0
      %1841 = vmatpush1.bf16.msra.mxu0 0
      %1842 = vmatprep.mubr.bf16.mxu0 0
      %1843 = vmatmul.mubr.bf16.gmra.mrb[0].mxu0 %v1799
      %v1844 = vpop.f32.mrb[0].mxu0
      %v1845 = vadd.f32 %v1784, %v1844
      %v1846 = vpop.f32.mrb[0].mxu0
      %v1847 = vpop.f32.mrb[0].mxu0
      %v1848 = vadd.f32 %v1784, %v1847
      %v1849 = vpop.f32.mrb[0].mxu0
      %1850 = vmatprep.mubr.bf16.mxu0 0
      %1851 = vmatmul.mubr.bf16.gmra.mrb[0].mxu0 %v1802
      %v1852 = vpop.f32.mrb[0].mxu0
      %v1853 = vadd.f32 %v1784, %v1852
      %v1854 = vpop.f32.mrb[0].mxu0
      %v1855 = vpop.f32.mrb[0].mxu0
      %v1856 = vadd.f32 %v1784, %v1855
      %v1857 = vpop.f32.mrb[0].mxu0
      %1858 = vmatprep.mubr.bf16.mxu0 0
      %1859 = vmatmul.mubr.bf16.gmra.mrb[0].mxu0 %v1805
      %v1860 = vpop.f32.mrb[0].mxu0
      %v1861 = vadd.f32 %v1784, %v1860
      %v1862 = vpop.f32.mrb[0].mxu0
      %v1863 = vpop.f32.mrb[0].mxu0
      %v1864 = vadd.f32 %v1784, %v1863
      %v1865 = vpop.f32.mrb[0].mxu0
      %1866 = vmatprep.mubr.bf16.mxu0 0
      %1867 = vmatmul.mubr.bf16.gmra.mrb[0].mxu0 %v1808
      %v1868 = vpop.f32.mrb[0].mxu0
      %v1869 = vadd.f32 %v1784, %v1868
      %v1870 = vpop.f32.mrb[0].mxu0
      %v1871 = vpop.f32.mrb[0].mxu0
      %v1872 = vadd.f32 %v1784, %v1871
      %v1873 = vpop.f32.mrb[0].mxu0
      %1874 = vdwg.mxu0
      %vm1875 = vcmp.gt.f32.partialorder %v1845, 0.0
      %vm1876 = vcmp.gt.f32.partialorder %v1848, 0.0
      %vm1877 = vcmp.gt.f32.partialorder %v1853, 0.0
      %vm1878 = vcmp.gt.f32.partialorder %v1856, 0.0
      %vm1879 = vcmp.gt.f32.partialorder %v1861, 0.0
      %vm1880 = vcmp.gt.f32.partialorder %v1864, 0.0
      %vm1881 = vcmp.gt.f32.partialorder %v1869, 0.0
      %vm1882 = vcmp.gt.f32.partialorder %v1872, 0.0
      %v1883 = vmin.f32 %v1845, 0.0
      %v1884 = vmin.f32 %v1848, 0.0
      %v1885 = vmin.f32 %v1853, 0.0
      %v1886 = vmin.f32 %v1856, 0.0
      %v1887 = vmin.f32 %v1861, 0.0
      %v1888 = vmin.f32 %v1864, 0.0
      %v1889 = vmin.f32 %v1869, 0.0
      %v1890 = vmin.f32 %v1872, 0.0
      %v1891 = vmul.f32 %v1883, 1.442695
      %v1892 = vpow.pop %v1891
      %v1893 = vmul.f32 %v1884, 1.442695
      %v1894 = vpow.pop %v1893
      %v1895 = vmul.f32 %v1885, 1.442695
      %v1896 = vpow.pop %v1895
      %v1897 = vmul.f32 %v1886, 1.442695
      %v1898 = vpow.pop %v1897
      %v1899 = vmul.f32 %v1887, 1.442695
      %v1900 = vpow.pop %v1899
      %v1901 = vmul.f32 %v1888, 1.442695
      %v1902 = vpow.pop %v1901
      %v1903 = vmul.f32 %v1889, 1.442695
      %v1904 = vpow.pop %v1903
      %v1905 = vmul.f32 %v1890, 1.442695
      %v1906 = vpow.pop %v1905
      %v1907 = vsub.f32 %v1892, 1.0
      %v1908 = vsub.f32 %v1894, 1.0
      %v1909 = vsub.f32 %v1896, 1.0
      %v1910 = vsub.f32 %v1898, 1.0
      %v1911 = vsub.f32 %v1900, 1.0
      %v1912 = vsub.f32 %v1902, 1.0
      %v1913 = vsub.f32 %v1904, 1.0
      %v1914 = vsub.f32 %v1906, 1.0
      %v1915 = vsel %vm1875, %v1845, %v1907
      %v1916 = vsel %vm1876, %v1848, %v1908
      %v1917 = vsel %vm1877, %v1853, %v1909
      %v1918 = vsel %vm1878, %v1856, %v1910
      %v1919 = vsel %vm1879, %v1861, %v1911
      %v1920 = vsel %vm1880, %v1864, %v1912
      %v1921 = vsel %vm1881, %v1869, %v1913
      %v1922 = vsel %vm1882, %v1872, %v1914
      %1923 = vst.msk [vmem:[%s459] sm:$0xff] %vm762, %v1915
      %1924 = vst.msk [vmem:[%s459 + $0x8] sm:$0xff] %vm762, %v1916
      %1925 = vst.msk [vmem:[%s459 + $0x10] sm:$0xff] %vm762, %v1917
      %1926 = vst.msk [vmem:[%s459 + $0x18] sm:$0xff] %vm762, %v1918
      %1927 = vst.msk [vmem:[%s459 + $0x20] sm:$0xff] %vm762, %v1919
      %1928 = vst.msk [vmem:[%s459 + $0x28] sm:$0xff] %vm762, %v1920
      %1929 = vst.msk [vmem:[%s459 + $0x30] sm:$0xff] %vm762, %v1921
      %1930 = vst.msk [vmem:[%s459 + $0x38] sm:$0xff] %vm762, %v1922
      %s1931 = smul.u32 8, %s23
      %p1932 = scmp.lt.s32.totalorder %s1931, 15
      %s1933 = scalar_select %p1932, %s1931, 15
      %s1934 = smul.addr %s1933, 8
      %s1935 = scalar_lea.vmem %s12, %s1934
      // Predicated region
      $region76: #{gravnet_block.4} parent=67 // pred_check
        %p1936 = pneg %p308
      $region77: #{gravnet_block.4} parent=67 // pred_check_branch
        %1938 = sbr.rel (%p1936) target = $region79
      $region78: #{gravnet_block.4} parent=67 // pred_region
        %s1939 = smul.u32 8, %s23
      $region79: #{gravnet_block.4} parent=67 // pred_fallthru
        _
    $region68: #{gravnet_block.4} parent=5 // pred_fallthru
      _
    %p1940 = scmp.le.s32.totalorder 2, %s18
    // Predicated region
    $region80: #{gravnet_block.4} parent=5 // pred_check
      %p1941 = pneg %p1940
    $region81: #{gravnet_block.4} parent=5 // pred_check_branch
      %1943 = sbr.rel (%p1941) target = $region83
    $region82: #{gravnet_block.4} parent=5 // pred_region
      %s1944 = ssub.s32 %s18, 2
      // Predicated region
      $region84: #{gravnet_block.4} parent=82 // pred_check
        %p1945 = pneg %p314
      $region85: #{gravnet_block.4} parent=82 // pred_check_branch
        %1947 = sbr.rel (%p1945) target = $region87
      $region86: #{gravnet_block.4} parent=82 // pred_region
        %s1948 = smul.u32 8, %s24
        %p1949 = scmp.lt.s32.totalorder %s1948, 15
        %s1950 = scalar_select %p1949, %s1948, 15
        %s1951 = smul.addr %s1950, 8
        %s1952 = scalar_lea.vmem %s12, %s1951
      $region87: #{gravnet_block.4} parent=82 // pred_fallthru
        _
    $region83: #{gravnet_block.4} parent=5 // pred_fallthru
      _
  $region6: #{gravnet_block.4} parent=0 // loop_footer
    %s22 = sadd.s32 1, %s18
  $region7: #{gravnet_block.4} parent=0 // loop_footer_branch
    %17 = sbr.rel target = $region3
  $region8: #{gravnet_block.4} parent=0 // loop_exit
    _

</llo_original>
